<compile_context>
chip_gen: v5e
topology: v5e:2x2
jax: 0.10.0
libtpu: 0.0.40
codegen_flags: <defaults>
</compile_context>

<pallas_src>
import math
import jax
import jax.numpy as jnp
from jax import lax
from jax.experimental import pallas as pl
from jax.experimental.pallas import tpu as pltpu

D = 128          # embedding_dim == hidden_dim
F = 512          # dim_feedforward
H = 2            # num_head
HD = D // H      # head dim = 64
C = 119          # num_class
C_PAD = 128      # lane-dense padded class dim
NUM_LAYERS = 2
LN_EPS = 1e-5
NEG_INF = -1e30


# ----------------------------- Pallas kernel ------------------------------- #

def _layer_norm(x, gamma, beta):
    mu = jnp.mean(x, axis=-1, keepdims=True)
    var = jnp.mean((x - mu) ** 2, axis=-1, keepdims=True)
    return (x - mu) * lax.rsqrt(var + LN_EPS) * gamma + beta


def fused_transformer_kernel(lens_ref, x_ref,
                             wqkv_ref, bqkv_ref, wo_ref, bo_ref,
                             g1_ref, be1_ref, w1_ref, b1_ref,
                             w2_ref, b2_ref, g2_ref, be2_ref,
                             ow_ref, ob_ref,
                             o_ref):
    # x_ref: (Bblk, S, D) activations for one batch block; o_ref: (Bblk, C_PAD) log-probs.
    Bblk, S, _ = x_ref.shape
    M = Bblk * S
    scale = 1.0 / math.sqrt(HD)

    # additive key-padding mask built in-kernel from lengths (0 valid, -1e30 pad)
    lens = lens_ref[...]                                            # (Bblk, 1) int32
    key_pos = lax.broadcasted_iota(jnp.int32, (Bblk, 1, S), 2)
    add_mask = jnp.where(key_pos < lens[:, :, None], 0.0, NEG_INF)  # (Bblk, 1, S) f32

    # flatten to (M, D) so projection / FFN matmuls have a dense M dimension
    x2 = x_ref[...].astype(jnp.float32).reshape(M, D)

    for l in range(NUM_LAYERS):                                     # unrolled in one kernel
        wqkv = wqkv_ref[l]
        wo = wo_ref[l]
        w1 = w1_ref[l]
        w2 = w2_ref[l]

        # --- self attention: fused QKV projection over M = Bblk*S rows ---
        qkv = jnp.dot(x2.astype(jnp.bfloat16), wqkv,
                      preferred_element_type=jnp.float32) + bqkv_ref[l]   # (M, 3D)

        attn = jnp.zeros((M, D), jnp.float32)
        for h in range(H):
            qh = qkv[:, h * HD:(h + 1) * HD].reshape(Bblk, S, HD)
            kh = qkv[:, D + h * HD:D + (h + 1) * HD].reshape(Bblk, S, HD)
            vh = qkv[:, 2 * D + h * HD:2 * D + (h + 1) * HD].reshape(Bblk, S, HD)

            s = jnp.einsum('bqd,bkd->bqk', qh, kh,
                           preferred_element_type=jnp.float32) * scale   # (Bblk, S, S)
            s = s + add_mask                                             # mask keys
            s = s - jnp.max(s, axis=-1, keepdims=True)
            p = jnp.exp(s)
            p = p * pl.reciprocal(jnp.sum(p, axis=-1, keepdims=True), approx=True)
            oh = jnp.einsum('bqk,bkd->bqd', p, vh,
                            preferred_element_type=jnp.float32)          # (Bblk, S, HD)
            # accumulate head_h @ wo-slice directly: no lane-concat of 64-wide heads
            attn = attn + jnp.dot(oh.reshape(M, HD).astype(jnp.bfloat16),
                                  wo[h * HD:(h + 1) * HD, :],
                                  preferred_element_type=jnp.float32)
        attn = attn + bo_ref[l]

        # --- residual + LayerNorm 1 (post-norm) ---
        y = _layer_norm(x2 + attn, g1_ref[l], be1_ref[l])

        # --- feed-forward (relu) ---
        f = jnp.dot(y.astype(jnp.bfloat16), w1,
                    preferred_element_type=jnp.float32) + b1_ref[l]
        f = jnp.maximum(f, 0.0)
        f = jnp.dot(f.astype(jnp.bfloat16), w2,
                    preferred_element_type=jnp.float32) + b2_ref[l]

        # --- residual + LayerNorm 2 ---
        x2 = _layer_norm(y + f, g2_ref[l], be2_ref[l])

    # --- classification head fused in: first token of each sequence only ---
    first = x2.reshape(Bblk, S, D)[:, 0, :]                              # (Bblk, D)
    logits = jnp.dot(first.astype(jnp.bfloat16), ow_ref[...],
                     preferred_element_type=jnp.float32) + ob_ref[...]   # (Bblk, C_PAD)
    # padded classes carry a -1e30 bias -> exp() == 0, so this equals log_softmax over C
    m = jnp.max(logits, axis=-1, keepdims=True)
    z = logits - m
    lse = jnp.log(jnp.sum(jnp.exp(z), axis=-1, keepdims=True))
    o_ref[...] = (z - lse).astype(o_ref.dtype)


# ------------------------------ wrapper ------------------------------------ #

def _const_spec(shape):
    n = len(shape)
    return pl.BlockSpec(shape, lambda b, _n=n: (0,) * _n)


def transformer_forward(inputs, lengths, params, block_b=None):
    """inputs: (B, S) int32 token ids; lengths: (B,) int32.  Returns (B, C) log-probs."""
    B, S = inputs.shape
    if block_b is None:
        # pack ~128 rows (block_b * S) per matmul; clamp to the actual batch
        block_b = max(1, min(max(1, 128 // S), B))
    nblk = pl.cdiv(B, block_b)
    B_pad = nblk * block_b

    # glue: embedding gather + positional encoding (== torch seq-first broadcast)
    x = params["embedding"][inputs] + params["pe"][:S][None, :, :]       # (B, S, D) f32
    lens = lengths.astype(jnp.int32)
    if B_pad != B:
        x = jnp.pad(x, ((0, B_pad - B), (0, 0), (0, 0)))
        lens = jnp.pad(lens, (0, B_pad - B), constant_values=S)
    lens2 = lens.reshape(B_pad, 1)

    L = NUM_LAYERS
    p = params
    out = pl.pallas_call(
        fused_transformer_kernel,
        out_shape=jax.ShapeDtypeStruct((B_pad, C_PAD), jnp.float32),
        grid=(nblk,),
        in_specs=[
            pl.BlockSpec((block_b, 1), lambda b: (b, 0)),
            pl.BlockSpec((block_b, S, D), lambda b: (b, 0, 0)),
            _const_spec((L, D, 3 * D)), _const_spec((L, 1, 3 * D)),
            _const_spec((L, D, D)),     _const_spec((L, 1, D)),
            _const_spec((L, 1, D)),     _const_spec((L, 1, D)),
            _const_spec((L, D, F)),     _const_spec((L, 1, F)),
            _const_spec((L, F, D)),     _const_spec((L, 1, D)),
            _const_spec((L, 1, D)),     _const_spec((L, 1, D)),
            _const_spec((D, C_PAD)),    _const_spec((1, C_PAD)),
        ],
        out_specs=pl.BlockSpec((block_b, C_PAD), lambda b: (b, 0)),
        compiler_params=pltpu.CompilerParams(
            dimension_semantics=("parallel",)),
    )(lens2, x,
      p["wqkv"], p["bqkv"], p["wo"], p["bo"],
      p["g1"], p["be1"], p["w1"], p["b1"],
      p["w2"], p["b2"], p["g2"], p["be2"],
      p["out_w"], p["out_b"])
    return out[:B, :C]


# --------------------------- parameter creation ----------------------------- #

def make_positional_encoding(max_len=512, d_model=D):
    position = jnp.arange(max_len, dtype=jnp.float32)[:, None]
    div_term = jnp.exp(jnp.arange(0, d_model, 2, dtype=jnp.float32)
                       * (-math.log(10000.0) / d_model))
    pe = jnp.zeros((max_len, d_model), jnp.float32)
    pe = pe.at[:, 0::2].set(jnp.sin(position * div_term))
    pe = pe.at[:, 1::2].set(jnp.cos(position * div_term))
    return pe


def init_params(key, vocab_size):
    keys = jax.random.split(key, 3)
    lkeys = jax.random.split(keys[2], NUM_LAYERS)
    wkeys = [jax.random.split(lkeys[i], 4) for i in range(NUM_LAYERS)]

    def stack(gen):
        return jnp.stack([gen(i) for i in range(NUM_LAYERS)], axis=0)

    # classification head padded lane-dense: zero weight / -1e30 bias on padded classes
    out_w = jax.random.normal(keys[1], (D, C), jnp.float32) * 0.02
    out_w = jnp.pad(out_w, ((0, 0), (0, C_PAD - C)))
    out_b = jnp.full((1, C_PAD), NEG_INF, jnp.float32).at[:, :C].set(0.0)

    params = {
        "embedding": jax.random.normal(keys[0], (vocab_size, D), jnp.float32) * 0.02,
        "pe": make_positional_encoding(),
        "out_w": out_w.astype(jnp.bfloat16),
        "out_b": out_b,
        # weights stored (in, out) so kernels do x @ W directly; matmul weights in bf16
        "wqkv": stack(lambda i: jax.random.normal(wkeys[i][0], (D, 3 * D), jnp.float32) * 0.02
                      ).astype(jnp.bfloat16),
        "bqkv": jnp.zeros((NUM_LAYERS, 1, 3 * D), jnp.float32),
        "wo":   stack(lambda i: jax.random.normal(wkeys[i][1], (D, D), jnp.float32) * 0.02
                      ).astype(jnp.bfloat16),
        "bo":   jnp.zeros((NUM_LAYERS, 1, D), jnp.float32),
        "g1":   jnp.ones((NUM_LAYERS, 1, D), jnp.float32),
        "be1":  jnp.zeros((NUM_LAYERS, 1, D), jnp.float32),
        "w1":   stack(lambda i: jax.random.normal(wkeys[i][2], (D, F), jnp.float32) * 0.02
                      ).astype(jnp.bfloat16),
        "b1":   jnp.zeros((NUM_LAYERS, 1, F), jnp.float32),
        "w2":   stack(lambda i: jax.random.normal(wkeys[i][3], (F, D), jnp.float32) * 0.02
                      ).astype(jnp.bfloat16),
        "b2":   jnp.zeros((NUM_LAYERS, 1, D), jnp.float32),
        "g2":   jnp.ones((NUM_LAYERS, 1, D), jnp.float32),
        "be2":  jnp.zeros((NUM_LAYERS, 1, D), jnp.float32),
    }
    return params


# --------------------------------- main ------------------------------------ #

if __name__ == "__main__":
    key = jax.random.PRNGKey(0)
    k_tok, k_par = jax.random.split(key)

    B, S, VOCAB = 2, 8, 100
    inputs = jax.random.randint(k_tok, (B, S), 0, VOCAB, dtype=jnp.int32)
    lengths = jnp.array([8, 5], dtype=jnp.int32)

    params = init_params(k_par, VOCAB)

    log_probs = jax.jit(transformer_forward)(inputs, lengths, params)
    log_probs = jax.block_until_ready(log_probs)

    # sanity checks: shape, finiteness, and that log-probs exponentiate to a distribution
    assert log_probs.shape == (B, C)
    assert bool(jnp.all(jnp.isfinite(log_probs)))
    row_sums = jnp.sum(jnp.exp(log_probs), axis=1)
    assert bool(jnp.all(jnp.abs(row_sums - 1.0) < 1e-4))

    print("KERNEL_OK")
</pallas_src>

<mosaic_0001>
module attributes {stable_mosaic.version = 11 : i64} {
  func.func @fused_transformer_kernel(%arg0: i32, %arg1: memref<2x1xi32, #tpu.memory_space<vmem>>, %arg2: memref<2x8x128xf32, #tpu.memory_space<vmem>>, %arg3: memref<2x128x384xbf16, #tpu.memory_space<vmem>>, %arg4: memref<2x1x384xf32, #tpu.memory_space<vmem>>, %arg5: memref<2x128x128xbf16, #tpu.memory_space<vmem>>, %arg6: memref<2x1x128xf32, #tpu.memory_space<vmem>>, %arg7: memref<2x1x128xf32, #tpu.memory_space<vmem>>, %arg8: memref<2x1x128xf32, #tpu.memory_space<vmem>>, %arg9: memref<2x128x512xbf16, #tpu.memory_space<vmem>>, %arg10: memref<2x1x512xf32, #tpu.memory_space<vmem>>, %arg11: memref<2x512x128xbf16, #tpu.memory_space<vmem>>, %arg12: memref<2x1x128xf32, #tpu.memory_space<vmem>>, %arg13: memref<2x1x128xf32, #tpu.memory_space<vmem>>, %arg14: memref<2x1x128xf32, #tpu.memory_space<vmem>>, %arg15: memref<128x128xbf16, #tpu.memory_space<vmem>>, %arg16: memref<1x128xf32, #tpu.memory_space<vmem>>, %arg17: memref<2x128xf32, #tpu.memory_space<vmem>>) attributes {dimension_semantics = [#tpu.dimension_semantics<parallel>], iteration_bounds = array<i64: 1>, scalar_prefetch = 0 : i64, scratch_operands = 0 : i64, tpu.core_type = #tpu.core_type<tc>, window_params = [{transform_indices = @transform_0, window_bounds = array<i64: 2, 1>}, {transform_indices = @transform_1, window_bounds = array<i64: 2, 8, 128>}, {pipeline_mode = #tpu.pipeline_mode<synchronous>, transform_indices = @transform_2, window_bounds = array<i64: 2, 128, 384>}, {pipeline_mode = #tpu.pipeline_mode<synchronous>, transform_indices = @transform_3, window_bounds = array<i64: 2, 1, 384>}, {pipeline_mode = #tpu.pipeline_mode<synchronous>, transform_indices = @transform_4, window_bounds = array<i64: 2, 128, 128>}, {pipeline_mode = #tpu.pipeline_mode<synchronous>, transform_indices = @transform_5, window_bounds = array<i64: 2, 1, 128>}, {pipeline_mode = #tpu.pipeline_mode<synchronous>, transform_indices = @transform_6, window_bounds = array<i64: 2, 1, 128>}, {pipeline_mode = #tpu.pipeline_mode<synchronous>, transform_indices = @transform_7, window_bounds = array<i64: 2, 1, 128>}, {pipeline_mode = #tpu.pipeline_mode<synchronous>, transform_indices = @transform_8, window_bounds = array<i64: 2, 128, 512>}, {pipeline_mode = #tpu.pipeline_mode<synchronous>, transform_indices = @transform_9, window_bounds = array<i64: 2, 1, 512>}, {pipeline_mode = #tpu.pipeline_mode<synchronous>, transform_indices = @transform_10, window_bounds = array<i64: 2, 512, 128>}, {pipeline_mode = #tpu.pipeline_mode<synchronous>, transform_indices = @transform_11, window_bounds = array<i64: 2, 1, 128>}, {pipeline_mode = #tpu.pipeline_mode<synchronous>, transform_indices = @transform_12, window_bounds = array<i64: 2, 1, 128>}, {pipeline_mode = #tpu.pipeline_mode<synchronous>, transform_indices = @transform_13, window_bounds = array<i64: 2, 1, 128>}, {pipeline_mode = #tpu.pipeline_mode<synchronous>, transform_indices = @transform_14, window_bounds = array<i64: 128, 128>}, {pipeline_mode = #tpu.pipeline_mode<synchronous>, transform_indices = @transform_15, window_bounds = array<i64: 1, 128>}, {transform_indices = @transform_16, window_bounds = array<i64: 2, 128>}]} {
    %c0 = arith.constant 0 : index
    %c0_0 = arith.constant 0 : index
    %0 = vector.load %arg1[%c0, %c0_0] : memref<2x1xi32, #tpu.memory_space<vmem>>, vector<2x1xi32>
    %1 = tpu.iota {dimensions = array<i32: 2>} : vector<2x1x8xi32>
    %2 = vector.shape_cast %0 : vector<2x1xi32> to vector<2x1x1xi32>
    %3 = vector.broadcast %2 : vector<2x1x1xi32> to vector<2x1x8xi32>
    %4 = arith.cmpi slt, %1, %3 : vector<2x1x8xi32>
    %cst = arith.constant 0.000000e+00 : f32
    %cst_1 = arith.constant -1.000000e+30 : f32
    %5 = vector.broadcast %cst : f32 to vector<2x1x8xf32>
    %6 = vector.broadcast %cst_1 : f32 to vector<2x1x8xf32>
    %7 = arith.select %4, %5, %6 : vector<2x1x8xi1>, vector<2x1x8xf32>
    %c0_2 = arith.constant 0 : index
    %c0_3 = arith.constant 0 : index
    %c0_4 = arith.constant 0 : index
    %8 = vector.load %arg2[%c0_2, %c0_3, %c0_4] : memref<2x8x128xf32, #tpu.memory_space<vmem>>, vector<2x8x128xf32>
    %9 = vector.shape_cast %8 : vector<2x8x128xf32> to vector<16x128xf32>
    %c0_5 = arith.constant 0 : index
    %c0_6 = arith.constant 0 : index
    %c0_7 = arith.constant 0 : index
    %10 = vector.load %arg3[%c0_5, %c0_6, %c0_7] : memref<2x128x384xbf16, #tpu.memory_space<vmem>>, vector<1x128x384xbf16>
    %11 = vector.shape_cast %10 : vector<1x128x384xbf16> to vector<128x384xbf16>
    %c0_8 = arith.constant 0 : index
    %c0_9 = arith.constant 0 : index
    %c0_10 = arith.constant 0 : index
    %12 = vector.load %arg5[%c0_8, %c0_9, %c0_10] : memref<2x128x128xbf16, #tpu.memory_space<vmem>>, vector<1x128x128xbf16>
    %13 = vector.shape_cast %12 : vector<1x128x128xbf16> to vector<128x128xbf16>
    %c0_11 = arith.constant 0 : index
    %c0_12 = arith.constant 0 : index
    %c0_13 = arith.constant 0 : index
    %14 = vector.load %arg9[%c0_11, %c0_12, %c0_13] : memref<2x128x512xbf16, #tpu.memory_space<vmem>>, vector<1x128x512xbf16>
    %15 = vector.shape_cast %14 : vector<1x128x512xbf16> to vector<128x512xbf16>
    %c0_14 = arith.constant 0 : index
    %c0_15 = arith.constant 0 : index
    %c0_16 = arith.constant 0 : index
    %16 = vector.load %arg11[%c0_14, %c0_15, %c0_16] : memref<2x512x128xbf16, #tpu.memory_space<vmem>>, vector<1x512x128xbf16>
    %17 = vector.shape_cast %16 : vector<1x512x128xbf16> to vector<512x128xbf16>
    %18 = arith.truncf %9 : vector<16x128xf32> to vector<16x128xbf16>
    %cst_17 = arith.constant dense<0.000000e+00> : vector<16x384xf32>
    %19 = tpu.matmul %18, %11, %cst_17 {dimension_numbers = #tpu.dot_dimension_numbers<[1], [0], [0], [1], [0, 0, 1, 1], [], []>} : vector<16x128xbf16>, vector<128x384xbf16>, vector<16x384xf32> -> vector<16x384xf32>
    %c0_18 = arith.constant 0 : index
    %c0_19 = arith.constant 0 : index
    %c0_20 = arith.constant 0 : index
    %20 = vector.load %arg4[%c0_18, %c0_19, %c0_20] : memref<2x1x384xf32, #tpu.memory_space<vmem>>, vector<1x1x384xf32>
    %21 = vector.shape_cast %20 : vector<1x1x384xf32> to vector<1x384xf32>
    %22 = vector.broadcast %21 : vector<1x384xf32> to vector<16x384xf32>
    %23 = arith.addf %19, %22 : vector<16x384xf32>
    %cst_21 = arith.constant 0.000000e+00 : f32
    %24 = vector.broadcast %cst_21 : f32 to vector<16x128xf32>
    %25 = vector.extract_strided_slice %23 {offsets = [0, 0], sizes = [16, 64], strides = [1, 1]} : vector<16x384xf32> to vector<16x64xf32>
    %26 = vector.shape_cast %25 : vector<16x64xf32> to vector<2x8x64xf32>
    %27 = vector.extract_strided_slice %23 {offsets = [0, 128], sizes = [16, 64], strides = [1, 1]} : vector<16x384xf32> to vector<16x64xf32>
    %28 = vector.shape_cast %27 : vector<16x64xf32> to vector<2x8x64xf32>
    %29 = vector.extract_strided_slice %23 {offsets = [0, 256], sizes = [16, 64], strides = [1, 1]} : vector<16x384xf32> to vector<16x64xf32>
    %30 = vector.shape_cast %29 : vector<16x64xf32> to vector<2x8x64xf32>
    "tpu.trace_start"() <{level = 10 : i32, message = "bqd,bkd->bqk"}> : () -> ()
    %cst_22 = arith.constant dense<0.000000e+00> : vector<2x8x8xf32>
    %31 = tpu.matmul %26, %28, %cst_22 {dimension_numbers = #tpu.dot_dimension_numbers<[2], [2], [1], [1], [0, 0, 0, 1, 1, 1], [0], [0]>} : vector<2x8x64xf32>, vector<2x8x64xf32>, vector<2x8x8xf32> -> vector<2x8x8xf32>
    "tpu.trace_stop"() : () -> ()
    %cst_23 = arith.constant 1.250000e-01 : f32
    %32 = vector.broadcast %cst_23 : f32 to vector<2x8x8xf32>
    %33 = arith.mulf %31, %32 : vector<2x8x8xf32>
    %34 = vector.broadcast %7 : vector<2x1x8xf32> to vector<2x8x8xf32>
    %35 = arith.addf %33, %34 : vector<2x8x8xf32>
    %cst_24 = arith.constant dense<0xFF800000> : vector<2x8xf32>
    %36 = vector.multi_reduction <maximumf>, %35, %cst_24 [2] : vector<2x8x8xf32> to vector<2x8xf32>
    %37 = vector.shape_cast %36 : vector<2x8xf32> to vector<2x8x1xf32>
    %38 = vector.broadcast %37 : vector<2x8x1xf32> to vector<2x8x8xf32>
    %39 = arith.subf %35, %38 : vector<2x8x8xf32>
    %40 = math.exp %39 : vector<2x8x8xf32>
    %cst_25 = arith.constant dense<0.000000e+00> : vector<2x8xf32>
    %41 = vector.multi_reduction <add>, %40, %cst_25 [2] : vector<2x8x8xf32> to vector<2x8xf32>
    %42 = vector.shape_cast %41 : vector<2x8xf32> to vector<2x8x1xf32>
    %43 = tpu.reciprocal %42 {approx = true} : vector<2x8x1xf32> -> vector<2x8x1xf32>
    %44 = vector.broadcast %43 : vector<2x8x1xf32> to vector<2x8x8xf32>
    %45 = arith.mulf %40, %44 : vector<2x8x8xf32>
    "tpu.trace_start"() <{level = 10 : i32, message = "bqk,bkd->bqd"}> : () -> ()
    %cst_26 = arith.constant dense<0.000000e+00> : vector<2x8x64xf32>
    %46 = tpu.matmul %45, %30, %cst_26 {dimension_numbers = #tpu.dot_dimension_numbers<[2], [1], [1], [2], [0, 0, 0, 1, 1, 2], [0], [0]>} : vector<2x8x8xf32>, vector<2x8x64xf32>, vector<2x8x64xf32> -> vector<2x8x64xf32>
    "tpu.trace_stop"() : () -> ()
    %47 = vector.shape_cast %46 : vector<2x8x64xf32> to vector<16x64xf32>
    %48 = arith.truncf %47 : vector<16x64xf32> to vector<16x64xbf16>
    %49 = vector.extract_strided_slice %13 {offsets = [0, 0], sizes = [64, 128], strides = [1, 1]} : vector<128x128xbf16> to vector<64x128xbf16>
    %cst_27 = arith.constant dense<0.000000e+00> : vector<16x128xf32>
    %50 = tpu.matmul %48, %49, %cst_27 {dimension_numbers = #tpu.dot_dimension_numbers<[1], [0], [0], [1], [0, 0, 1, 1], [], []>} : vector<16x64xbf16>, vector<64x128xbf16>, vector<16x128xf32> -> vector<16x128xf32>
    %51 = arith.addf %24, %50 : vector<16x128xf32>
    %52 = vector.extract_strided_slice %23 {offsets = [0, 64], sizes = [16, 64], strides = [1, 1]} : vector<16x384xf32> to vector<16x64xf32>
    %53 = vector.shape_cast %52 : vector<16x64xf32> to vector<2x8x64xf32>
    %54 = vector.extract_strided_slice %23 {offsets = [0, 192], sizes = [16, 64], strides = [1, 1]} : vector<16x384xf32> to vector<16x64xf32>
    %55 = vector.shape_cast %54 : vector<16x64xf32> to vector<2x8x64xf32>
    %56 = vector.extract_strided_slice %23 {offsets = [0, 320], sizes = [16, 64], strides = [1, 1]} : vector<16x384xf32> to vector<16x64xf32>
    %57 = vector.shape_cast %56 : vector<16x64xf32> to vector<2x8x64xf32>
    "tpu.trace_start"() <{level = 10 : i32, message = "bqd,bkd->bqk"}> : () -> ()
    %cst_28 = arith.constant dense<0.000000e+00> : vector<2x8x8xf32>
    %58 = tpu.matmul %53, %55, %cst_28 {dimension_numbers = #tpu.dot_dimension_numbers<[2], [2], [1], [1], [0, 0, 0, 1, 1, 1], [0], [0]>} : vector<2x8x64xf32>, vector<2x8x64xf32>, vector<2x8x8xf32> -> vector<2x8x8xf32>
    "tpu.trace_stop"() : () -> ()
    %cst_29 = arith.constant 1.250000e-01 : f32
    %59 = vector.broadcast %cst_29 : f32 to vector<2x8x8xf32>
    %60 = arith.mulf %58, %59 : vector<2x8x8xf32>
    %61 = vector.broadcast %7 : vector<2x1x8xf32> to vector<2x8x8xf32>
    %62 = arith.addf %60, %61 : vector<2x8x8xf32>
    %cst_30 = arith.constant dense<0xFF800000> : vector<2x8xf32>
    %63 = vector.multi_reduction <maximumf>, %62, %cst_30 [2] : vector<2x8x8xf32> to vector<2x8xf32>
    %64 = vector.shape_cast %63 : vector<2x8xf32> to vector<2x8x1xf32>
    %65 = vector.broadcast %64 : vector<2x8x1xf32> to vector<2x8x8xf32>
    %66 = arith.subf %62, %65 : vector<2x8x8xf32>
    %67 = math.exp %66 : vector<2x8x8xf32>
    %cst_31 = arith.constant dense<0.000000e+00> : vector<2x8xf32>
    %68 = vector.multi_reduction <add>, %67, %cst_31 [2] : vector<2x8x8xf32> to vector<2x8xf32>
    %69 = vector.shape_cast %68 : vector<2x8xf32> to vector<2x8x1xf32>
    %70 = tpu.reciprocal %69 {approx = true} : vector<2x8x1xf32> -> vector<2x8x1xf32>
    %71 = vector.broadcast %70 : vector<2x8x1xf32> to vector<2x8x8xf32>
    %72 = arith.mulf %67, %71 : vector<2x8x8xf32>
    "tpu.trace_start"() <{level = 10 : i32, message = "bqk,bkd->bqd"}> : () -> ()
    %cst_32 = arith.constant dense<0.000000e+00> : vector<2x8x64xf32>
    %73 = tpu.matmul %72, %57, %cst_32 {dimension_numbers = #tpu.dot_dimension_numbers<[2], [1], [1], [2], [0, 0, 0, 1, 1, 2], [0], [0]>} : vector<2x8x8xf32>, vector<2x8x64xf32>, vector<2x8x64xf32> -> vector<2x8x64xf32>
    "tpu.trace_stop"() : () -> ()
    %74 = vector.shape_cast %73 : vector<2x8x64xf32> to vector<16x64xf32>
    %75 = arith.truncf %74 : vector<16x64xf32> to vector<16x64xbf16>
    %76 = vector.extract_strided_slice %13 {offsets = [64, 0], sizes = [64, 128], strides = [1, 1]} : vector<128x128xbf16> to vector<64x128xbf16>
    %cst_33 = arith.constant dense<0.000000e+00> : vector<16x128xf32>
    %77 = tpu.matmul %75, %76, %cst_33 {dimension_numbers = #tpu.dot_dimension_numbers<[1], [0], [0], [1], [0, 0, 1, 1], [], []>} : vector<16x64xbf16>, vector<64x128xbf16>, vector<16x128xf32> -> vector<16x128xf32>
    %78 = arith.addf %51, %77 : vector<16x128xf32>
    %c0_34 = arith.constant 0 : index
    %c0_35 = arith.constant 0 : index
    %c0_36 = arith.constant 0 : index
    %79 = vector.load %arg6[%c0_34, %c0_35, %c0_36] : memref<2x1x128xf32, #tpu.memory_space<vmem>>, vector<1x1x128xf32>
    %80 = vector.shape_cast %79 : vector<1x1x128xf32> to vector<1x128xf32>
    %81 = vector.broadcast %80 : vector<1x128xf32> to vector<16x128xf32>
    %82 = arith.addf %78, %81 : vector<16x128xf32>
    %83 = arith.addf %9, %82 : vector<16x128xf32>
    %c0_37 = arith.constant 0 : index
    %c0_38 = arith.constant 0 : index
    %c0_39 = arith.constant 0 : index
    %84 = vector.load %arg7[%c0_37, %c0_38, %c0_39] : memref<2x1x128xf32, #tpu.memory_space<vmem>>, vector<1x1x128xf32>
    %85 = vector.shape_cast %84 : vector<1x1x128xf32> to vector<1x128xf32>
    %c0_40 = arith.constant 0 : index
    %c0_41 = arith.constant 0 : index
    %c0_42 = arith.constant 0 : index
    %86 = vector.load %arg8[%c0_40, %c0_41, %c0_42] : memref<2x1x128xf32, #tpu.memory_space<vmem>>, vector<1x1x128xf32>
    %87 = vector.shape_cast %86 : vector<1x1x128xf32> to vector<1x128xf32>
    %cst_43 = arith.constant dense<0.000000e+00> : vector<16xf32>
    %88 = vector.multi_reduction <add>, %83, %cst_43 [1] : vector<16x128xf32> to vector<16xf32>
    %89 = vector.shape_cast %88 : vector<16xf32> to vector<16x1xf32>
    %cst_44 = arith.constant 1.280000e+02 : f32
    %90 = vector.broadcast %cst_44 : f32 to vector<16x1xf32>
    %91 = arith.divf %89, %90 : vector<16x1xf32>
    %92 = vector.broadcast %91 : vector<16x1xf32> to vector<16x128xf32>
    %93 = arith.subf %83, %92 : vector<16x128xf32>
    %94 = arith.mulf %93, %93 : vector<16x128xf32>
    %cst_45 = arith.constant dense<0.000000e+00> : vector<16xf32>
    %95 = vector.multi_reduction <add>, %94, %cst_45 [1] : vector<16x128xf32> to vector<16xf32>
    %96 = vector.shape_cast %95 : vector<16xf32> to vector<16x1xf32>
    %cst_46 = arith.constant 1.280000e+02 : f32
    %97 = vector.broadcast %cst_46 : f32 to vector<16x1xf32>
    %98 = arith.divf %96, %97 : vector<16x1xf32>
    %99 = vector.broadcast %91 : vector<16x1xf32> to vector<16x128xf32>
    %100 = arith.subf %83, %99 : vector<16x128xf32>
    %cst_47 = arith.constant 9.99999974E-6 : f32
    %101 = vector.broadcast %cst_47 : f32 to vector<16x1xf32>
    %102 = arith.addf %98, %101 : vector<16x1xf32>
    %103 = math.rsqrt %102 : vector<16x1xf32>
    %104 = vector.broadcast %103 : vector<16x1xf32> to vector<16x128xf32>
    %105 = arith.mulf %100, %104 : vector<16x128xf32>
    %106 = vector.broadcast %85 : vector<1x128xf32> to vector<16x128xf32>
    %107 = arith.mulf %105, %106 : vector<16x128xf32>
    %108 = vector.broadcast %87 : vector<1x128xf32> to vector<16x128xf32>
    %109 = arith.addf %107, %108 : vector<16x128xf32>
    %110 = arith.truncf %109 : vector<16x128xf32> to vector<16x128xbf16>
    %cst_48 = arith.constant dense<0.000000e+00> : vector<16x512xf32>
    %111 = tpu.matmul %110, %15, %cst_48 {dimension_numbers = #tpu.dot_dimension_numbers<[1], [0], [0], [1], [0, 0, 1, 1], [], []>} : vector<16x128xbf16>, vector<128x512xbf16>, vector<16x512xf32> -> vector<16x512xf32>
    %c0_49 = arith.constant 0 : index
    %c0_50 = arith.constant 0 : index
    %c0_51 = arith.constant 0 : index
    %112 = vector.load %arg10[%c0_49, %c0_50, %c0_51] : memref<2x1x512xf32, #tpu.memory_space<vmem>>, vector<1x1x512xf32>
    %113 = vector.shape_cast %112 : vector<1x1x512xf32> to vector<1x512xf32>
    %114 = vector.broadcast %113 : vector<1x512xf32> to vector<16x512xf32>
    %115 = arith.addf %111, %114 : vector<16x512xf32>
    %cst_52 = arith.constant 0.000000e+00 : f32
    %116 = vector.broadcast %cst_52 : f32 to vector<16x512xf32>
    %117 = arith.maximumf %115, %116 : vector<16x512xf32>
    %118 = arith.truncf %117 : vector<16x512xf32> to vector<16x512xbf16>
    %cst_53 = arith.constant dense<0.000000e+00> : vector<16x128xf32>
    %119 = tpu.matmul %118, %17, %cst_53 {dimension_numbers = #tpu.dot_dimension_numbers<[1], [0], [0], [1], [0, 0, 1, 1], [], []>} : vector<16x512xbf16>, vector<512x128xbf16>, vector<16x128xf32> -> vector<16x128xf32>
    %c0_54 = arith.constant 0 : index
    %c0_55 = arith.constant 0 : index
    %c0_56 = arith.constant 0 : index
    %120 = vector.load %arg12[%c0_54, %c0_55, %c0_56] : memref<2x1x128xf32, #tpu.memory_space<vmem>>, vector<1x1x128xf32>
    %121 = vector.shape_cast %120 : vector<1x1x128xf32> to vector<1x128xf32>
    %122 = vector.broadcast %121 : vector<1x128xf32> to vector<16x128xf32>
    %123 = arith.addf %119, %122 : vector<16x128xf32>
    %124 = arith.addf %109, %123 : vector<16x128xf32>
    %c0_57 = arith.constant 0 : index
    %c0_58 = arith.constant 0 : index
    %c0_59 = arith.constant 0 : index
    %125 = vector.load %arg13[%c0_57, %c0_58, %c0_59] : memref<2x1x128xf32, #tpu.memory_space<vmem>>, vector<1x1x128xf32>
    %126 = vector.shape_cast %125 : vector<1x1x128xf32> to vector<1x128xf32>
    %c0_60 = arith.constant 0 : index
    %c0_61 = arith.constant 0 : index
    %c0_62 = arith.constant 0 : index
    %127 = vector.load %arg14[%c0_60, %c0_61, %c0_62] : memref<2x1x128xf32, #tpu.memory_space<vmem>>, vector<1x1x128xf32>
    %128 = vector.shape_cast %127 : vector<1x1x128xf32> to vector<1x128xf32>
    %cst_63 = arith.constant dense<0.000000e+00> : vector<16xf32>
    %129 = vector.multi_reduction <add>, %124, %cst_63 [1] : vector<16x128xf32> to vector<16xf32>
    %130 = vector.shape_cast %129 : vector<16xf32> to vector<16x1xf32>
    %cst_64 = arith.constant 1.280000e+02 : f32
    %131 = vector.broadcast %cst_64 : f32 to vector<16x1xf32>
    %132 = arith.divf %130, %131 : vector<16x1xf32>
    %133 = vector.broadcast %132 : vector<16x1xf32> to vector<16x128xf32>
    %134 = arith.subf %124, %133 : vector<16x128xf32>
    %135 = arith.mulf %134, %134 : vector<16x128xf32>
    %cst_65 = arith.constant dense<0.000000e+00> : vector<16xf32>
    %136 = vector.multi_reduction <add>, %135, %cst_65 [1] : vector<16x128xf32> to vector<16xf32>
    %137 = vector.shape_cast %136 : vector<16xf32> to vector<16x1xf32>
    %cst_66 = arith.constant 1.280000e+02 : f32
    %138 = vector.broadcast %cst_66 : f32 to vector<16x1xf32>
    %139 = arith.divf %137, %138 : vector<16x1xf32>
    %140 = vector.broadcast %132 : vector<16x1xf32> to vector<16x128xf32>
    %141 = arith.subf %124, %140 : vector<16x128xf32>
    %cst_67 = arith.constant 9.99999974E-6 : f32
    %142 = vector.broadcast %cst_67 : f32 to vector<16x1xf32>
    %143 = arith.addf %139, %142 : vector<16x1xf32>
    %144 = math.rsqrt %143 : vector<16x1xf32>
    %145 = vector.broadcast %144 : vector<16x1xf32> to vector<16x128xf32>
    %146 = arith.mulf %141, %145 : vector<16x128xf32>
    %147 = vector.broadcast %126 : vector<1x128xf32> to vector<16x128xf32>
    %148 = arith.mulf %146, %147 : vector<16x128xf32>
    %149 = vector.broadcast %128 : vector<1x128xf32> to vector<16x128xf32>
    %150 = arith.addf %148, %149 : vector<16x128xf32>
    %c1 = arith.constant 1 : index
    %c0_68 = arith.constant 0 : index
    %c0_69 = arith.constant 0 : index
    %151 = vector.load %arg3[%c1, %c0_68, %c0_69] : memref<2x128x384xbf16, #tpu.memory_space<vmem>>, vector<1x128x384xbf16>
    %152 = vector.shape_cast %151 : vector<1x128x384xbf16> to vector<128x384xbf16>
    %c1_70 = arith.constant 1 : index
    %c0_71 = arith.constant 0 : index
    %c0_72 = arith.constant 0 : index
    %153 = vector.load %arg5[%c1_70, %c0_71, %c0_72] : memref<2x128x128xbf16, #tpu.memory_space<vmem>>, vector<1x128x128xbf16>
    %154 = vector.shape_cast %153 : vector<1x128x128xbf16> to vector<128x128xbf16>
    %c1_73 = arith.constant 1 : index
    %c0_74 = arith.constant 0 : index
    %c0_75 = arith.constant 0 : index
    %155 = vector.load %arg9[%c1_73, %c0_74, %c0_75] : memref<2x128x512xbf16, #tpu.memory_space<vmem>>, vector<1x128x512xbf16>
    %156 = vector.shape_cast %155 : vector<1x128x512xbf16> to vector<128x512xbf16>
    %c1_76 = arith.constant 1 : index
    %c0_77 = arith.constant 0 : index
    %c0_78 = arith.constant 0 : index
    %157 = vector.load %arg11[%c1_76, %c0_77, %c0_78] : memref<2x512x128xbf16, #tpu.memory_space<vmem>>, vector<1x512x128xbf16>
    %158 = vector.shape_cast %157 : vector<1x512x128xbf16> to vector<512x128xbf16>
    %159 = arith.truncf %150 : vector<16x128xf32> to vector<16x128xbf16>
    %cst_79 = arith.constant dense<0.000000e+00> : vector<16x384xf32>
    %160 = tpu.matmul %159, %152, %cst_79 {dimension_numbers = #tpu.dot_dimension_numbers<[1], [0], [0], [1], [0, 0, 1, 1], [], []>} : vector<16x128xbf16>, vector<128x384xbf16>, vector<16x384xf32> -> vector<16x384xf32>
    %c1_80 = arith.constant 1 : index
    %c0_81 = arith.constant 0 : index
    %c0_82 = arith.constant 0 : index
    %161 = vector.load %arg4[%c1_80, %c0_81, %c0_82] : memref<2x1x384xf32, #tpu.memory_space<vmem>>, vector<1x1x384xf32>
    %162 = vector.shape_cast %161 : vector<1x1x384xf32> to vector<1x384xf32>
    %163 = vector.broadcast %162 : vector<1x384xf32> to vector<16x384xf32>
    %164 = arith.addf %160, %163 : vector<16x384xf32>
    %cst_83 = arith.constant 0.000000e+00 : f32
    %165 = vector.broadcast %cst_83 : f32 to vector<16x128xf32>
    %166 = vector.extract_strided_slice %164 {offsets = [0, 0], sizes = [16, 64], strides = [1, 1]} : vector<16x384xf32> to vector<16x64xf32>
    %167 = vector.shape_cast %166 : vector<16x64xf32> to vector<2x8x64xf32>
    %168 = vector.extract_strided_slice %164 {offsets = [0, 128], sizes = [16, 64], strides = [1, 1]} : vector<16x384xf32> to vector<16x64xf32>
    %169 = vector.shape_cast %168 : vector<16x64xf32> to vector<2x8x64xf32>
    %170 = vector.extract_strided_slice %164 {offsets = [0, 256], sizes = [16, 64], strides = [1, 1]} : vector<16x384xf32> to vector<16x64xf32>
    %171 = vector.shape_cast %170 : vector<16x64xf32> to vector<2x8x64xf32>
    "tpu.trace_start"() <{level = 10 : i32, message = "bqd,bkd->bqk"}> : () -> ()
    %cst_84 = arith.constant dense<0.000000e+00> : vector<2x8x8xf32>
    %172 = tpu.matmul %167, %169, %cst_84 {dimension_numbers = #tpu.dot_dimension_numbers<[2], [2], [1], [1], [0, 0, 0, 1, 1, 1], [0], [0]>} : vector<2x8x64xf32>, vector<2x8x64xf32>, vector<2x8x8xf32> -> vector<2x8x8xf32>
    "tpu.trace_stop"() : () -> ()
    %cst_85 = arith.constant 1.250000e-01 : f32
    %173 = vector.broadcast %cst_85 : f32 to vector<2x8x8xf32>
    %174 = arith.mulf %172, %173 : vector<2x8x8xf32>
    %175 = vector.broadcast %7 : vector<2x1x8xf32> to vector<2x8x8xf32>
    %176 = arith.addf %174, %175 : vector<2x8x8xf32>
    %cst_86 = arith.constant dense<0xFF800000> : vector<2x8xf32>
    %177 = vector.multi_reduction <maximumf>, %176, %cst_86 [2] : vector<2x8x8xf32> to vector<2x8xf32>
    %178 = vector.shape_cast %177 : vector<2x8xf32> to vector<2x8x1xf32>
    %179 = vector.broadcast %178 : vector<2x8x1xf32> to vector<2x8x8xf32>
    %180 = arith.subf %176, %179 : vector<2x8x8xf32>
    %181 = math.exp %180 : vector<2x8x8xf32>
    %cst_87 = arith.constant dense<0.000000e+00> : vector<2x8xf32>
    %182 = vector.multi_reduction <add>, %181, %cst_87 [2] : vector<2x8x8xf32> to vector<2x8xf32>
    %183 = vector.shape_cast %182 : vector<2x8xf32> to vector<2x8x1xf32>
    %184 = tpu.reciprocal %183 {approx = true} : vector<2x8x1xf32> -> vector<2x8x1xf32>
    %185 = vector.broadcast %184 : vector<2x8x1xf32> to vector<2x8x8xf32>
    %186 = arith.mulf %181, %185 : vector<2x8x8xf32>
    "tpu.trace_start"() <{level = 10 : i32, message = "bqk,bkd->bqd"}> : () -> ()
    %cst_88 = arith.constant dense<0.000000e+00> : vector<2x8x64xf32>
    %187 = tpu.matmul %186, %171, %cst_88 {dimension_numbers = #tpu.dot_dimension_numbers<[2], [1], [1], [2], [0, 0, 0, 1, 1, 2], [0], [0]>} : vector<2x8x8xf32>, vector<2x8x64xf32>, vector<2x8x64xf32> -> vector<2x8x64xf32>
    "tpu.trace_stop"() : () -> ()
    %188 = vector.shape_cast %187 : vector<2x8x64xf32> to vector<16x64xf32>
    %189 = arith.truncf %188 : vector<16x64xf32> to vector<16x64xbf16>
    %190 = vector.extract_strided_slice %154 {offsets = [0, 0], sizes = [64, 128], strides = [1, 1]} : vector<128x128xbf16> to vector<64x128xbf16>
    %cst_89 = arith.constant dense<0.000000e+00> : vector<16x128xf32>
    %191 = tpu.matmul %189, %190, %cst_89 {dimension_numbers = #tpu.dot_dimension_numbers<[1], [0], [0], [1], [0, 0, 1, 1], [], []>} : vector<16x64xbf16>, vector<64x128xbf16>, vector<16x128xf32> -> vector<16x128xf32>
    %192 = arith.addf %165, %191 : vector<16x128xf32>
    %193 = vector.extract_strided_slice %164 {offsets = [0, 64], sizes = [16, 64], strides = [1, 1]} : vector<16x384xf32> to vector<16x64xf32>
    %194 = vector.shape_cast %193 : vector<16x64xf32> to vector<2x8x64xf32>
    %195 = vector.extract_strided_slice %164 {offsets = [0, 192], sizes = [16, 64], strides = [1, 1]} : vector<16x384xf32> to vector<16x64xf32>
    %196 = vector.shape_cast %195 : vector<16x64xf32> to vector<2x8x64xf32>
    %197 = vector.extract_strided_slice %164 {offsets = [0, 320], sizes = [16, 64], strides = [1, 1]} : vector<16x384xf32> to vector<16x64xf32>
    %198 = vector.shape_cast %197 : vector<16x64xf32> to vector<2x8x64xf32>
    "tpu.trace_start"() <{level = 10 : i32, message = "bqd,bkd->bqk"}> : () -> ()
    %cst_90 = arith.constant dense<0.000000e+00> : vector<2x8x8xf32>
    %199 = tpu.matmul %194, %196, %cst_90 {dimension_numbers = #tpu.dot_dimension_numbers<[2], [2], [1], [1], [0, 0, 0, 1, 1, 1], [0], [0]>} : vector<2x8x64xf32>, vector<2x8x64xf32>, vector<2x8x8xf32> -> vector<2x8x8xf32>
    "tpu.trace_stop"() : () -> ()
    %cst_91 = arith.constant 1.250000e-01 : f32
    %200 = vector.broadcast %cst_91 : f32 to vector<2x8x8xf32>
    %201 = arith.mulf %199, %200 : vector<2x8x8xf32>
    %202 = vector.broadcast %7 : vector<2x1x8xf32> to vector<2x8x8xf32>
    %203 = arith.addf %201, %202 : vector<2x8x8xf32>
    %cst_92 = arith.constant dense<0xFF800000> : vector<2x8xf32>
    %204 = vector.multi_reduction <maximumf>, %203, %cst_92 [2] : vector<2x8x8xf32> to vector<2x8xf32>
    %205 = vector.shape_cast %204 : vector<2x8xf32> to vector<2x8x1xf32>
    %206 = vector.broadcast %205 : vector<2x8x1xf32> to vector<2x8x8xf32>
    %207 = arith.subf %203, %206 : vector<2x8x8xf32>
    %208 = math.exp %207 : vector<2x8x8xf32>
    %cst_93 = arith.constant dense<0.000000e+00> : vector<2x8xf32>
    %209 = vector.multi_reduction <add>, %208, %cst_93 [2] : vector<2x8x8xf32> to vector<2x8xf32>
    %210 = vector.shape_cast %209 : vector<2x8xf32> to vector<2x8x1xf32>
    %211 = tpu.reciprocal %210 {approx = true} : vector<2x8x1xf32> -> vector<2x8x1xf32>
    %212 = vector.broadcast %211 : vector<2x8x1xf32> to vector<2x8x8xf32>
    %213 = arith.mulf %208, %212 : vector<2x8x8xf32>
    "tpu.trace_start"() <{level = 10 : i32, message = "bqk,bkd->bqd"}> : () -> ()
    %cst_94 = arith.constant dense<0.000000e+00> : vector<2x8x64xf32>
    %214 = tpu.matmul %213, %198, %cst_94 {dimension_numbers = #tpu.dot_dimension_numbers<[2], [1], [1], [2], [0, 0, 0, 1, 1, 2], [0], [0]>} : vector<2x8x8xf32>, vector<2x8x64xf32>, vector<2x8x64xf32> -> vector<2x8x64xf32>
    "tpu.trace_stop"() : () -> ()
    %215 = vector.shape_cast %214 : vector<2x8x64xf32> to vector<16x64xf32>
    %216 = arith.truncf %215 : vector<16x64xf32> to vector<16x64xbf16>
    %217 = vector.extract_strided_slice %154 {offsets = [64, 0], sizes = [64, 128], strides = [1, 1]} : vector<128x128xbf16> to vector<64x128xbf16>
    %cst_95 = arith.constant dense<0.000000e+00> : vector<16x128xf32>
    %218 = tpu.matmul %216, %217, %cst_95 {dimension_numbers = #tpu.dot_dimension_numbers<[1], [0], [0], [1], [0, 0, 1, 1], [], []>} : vector<16x64xbf16>, vector<64x128xbf16>, vector<16x128xf32> -> vector<16x128xf32>
    %219 = arith.addf %192, %218 : vector<16x128xf32>
    %c1_96 = arith.constant 1 : index
    %c0_97 = arith.constant 0 : index
    %c0_98 = arith.constant 0 : index
    %220 = vector.load %arg6[%c1_96, %c0_97, %c0_98] : memref<2x1x128xf32, #tpu.memory_space<vmem>>, vector<1x1x128xf32>
    %221 = vector.shape_cast %220 : vector<1x1x128xf32> to vector<1x128xf32>
    %222 = vector.broadcast %221 : vector<1x128xf32> to vector<16x128xf32>
    %223 = arith.addf %219, %222 : vector<16x128xf32>
    %224 = arith.addf %150, %223 : vector<16x128xf32>
    %c1_99 = arith.constant 1 : index
    %c0_100 = arith.constant 0 : index
    %c0_101 = arith.constant 0 : index
    %225 = vector.load %arg7[%c1_99, %c0_100, %c0_101] : memref<2x1x128xf32, #tpu.memory_space<vmem>>, vector<1x1x128xf32>
    %226 = vector.shape_cast %225 : vector<1x1x128xf32> to vector<1x128xf32>
    %c1_102 = arith.constant 1 : index
    %c0_103 = arith.constant 0 : index
    %c0_104 = arith.constant 0 : index
    %227 = vector.load %arg8[%c1_102, %c0_103, %c0_104] : memref<2x1x128xf32, #tpu.memory_space<vmem>>, vector<1x1x128xf32>
    %228 = vector.shape_cast %227 : vector<1x1x128xf32> to vector<1x128xf32>
    %cst_105 = arith.constant dense<0.000000e+00> : vector<16xf32>
    %229 = vector.multi_reduction <add>, %224, %cst_105 [1] : vector<16x128xf32> to vector<16xf32>
    %230 = vector.shape_cast %229 : vector<16xf32> to vector<16x1xf32>
    %cst_106 = arith.constant 1.280000e+02 : f32
    %231 = vector.broadcast %cst_106 : f32 to vector<16x1xf32>
    %232 = arith.divf %230, %231 : vector<16x1xf32>
    %233 = vector.broadcast %232 : vector<16x1xf32> to vector<16x128xf32>
    %234 = arith.subf %224, %233 : vector<16x128xf32>
    %235 = arith.mulf %234, %234 : vector<16x128xf32>
    %cst_107 = arith.constant dense<0.000000e+00> : vector<16xf32>
    %236 = vector.multi_reduction <add>, %235, %cst_107 [1] : vector<16x128xf32> to vector<16xf32>
    %237 = vector.shape_cast %236 : vector<16xf32> to vector<16x1xf32>
    %cst_108 = arith.constant 1.280000e+02 : f32
    %238 = vector.broadcast %cst_108 : f32 to vector<16x1xf32>
    %239 = arith.divf %237, %238 : vector<16x1xf32>
    %240 = vector.broadcast %232 : vector<16x1xf32> to vector<16x128xf32>
    %241 = arith.subf %224, %240 : vector<16x128xf32>
    %cst_109 = arith.constant 9.99999974E-6 : f32
    %242 = vector.broadcast %cst_109 : f32 to vector<16x1xf32>
    %243 = arith.addf %239, %242 : vector<16x1xf32>
    %244 = math.rsqrt %243 : vector<16x1xf32>
    %245 = vector.broadcast %244 : vector<16x1xf32> to vector<16x128xf32>
    %246 = arith.mulf %241, %245 : vector<16x128xf32>
    %247 = vector.broadcast %226 : vector<1x128xf32> to vector<16x128xf32>
    %248 = arith.mulf %246, %247 : vector<16x128xf32>
    %249 = vector.broadcast %228 : vector<1x128xf32> to vector<16x128xf32>
    %250 = arith.addf %248, %249 : vector<16x128xf32>
    %251 = arith.truncf %250 : vector<16x128xf32> to vector<16x128xbf16>
    %cst_110 = arith.constant dense<0.000000e+00> : vector<16x512xf32>
    %252 = tpu.matmul %251, %156, %cst_110 {dimension_numbers = #tpu.dot_dimension_numbers<[1], [0], [0], [1], [0, 0, 1, 1], [], []>} : vector<16x128xbf16>, vector<128x512xbf16>, vector<16x512xf32> -> vector<16x512xf32>
    %c1_111 = arith.constant 1 : index
    %c0_112 = arith.constant 0 : index
    %c0_113 = arith.constant 0 : index
    %253 = vector.load %arg10[%c1_111, %c0_112, %c0_113] : memref<2x1x512xf32, #tpu.memory_space<vmem>>, vector<1x1x512xf32>
    %254 = vector.shape_cast %253 : vector<1x1x512xf32> to vector<1x512xf32>
    %255 = vector.broadcast %254 : vector<1x512xf32> to vector<16x512xf32>
    %256 = arith.addf %252, %255 : vector<16x512xf32>
    %cst_114 = arith.constant 0.000000e+00 : f32
    %257 = vector.broadcast %cst_114 : f32 to vector<16x512xf32>
    %258 = arith.maximumf %256, %257 : vector<16x512xf32>
    %259 = arith.truncf %258 : vector<16x512xf32> to vector<16x512xbf16>
    %cst_115 = arith.constant dense<0.000000e+00> : vector<16x128xf32>
    %260 = tpu.matmul %259, %158, %cst_115 {dimension_numbers = #tpu.dot_dimension_numbers<[1], [0], [0], [1], [0, 0, 1, 1], [], []>} : vector<16x512xbf16>, vector<512x128xbf16>, vector<16x128xf32> -> vector<16x128xf32>
    %c1_116 = arith.constant 1 : index
    %c0_117 = arith.constant 0 : index
    %c0_118 = arith.constant 0 : index
    %261 = vector.load %arg12[%c1_116, %c0_117, %c0_118] : memref<2x1x128xf32, #tpu.memory_space<vmem>>, vector<1x1x128xf32>
    %262 = vector.shape_cast %261 : vector<1x1x128xf32> to vector<1x128xf32>
    %263 = vector.broadcast %262 : vector<1x128xf32> to vector<16x128xf32>
    %264 = arith.addf %260, %263 : vector<16x128xf32>
    %265 = arith.addf %250, %264 : vector<16x128xf32>
    %c1_119 = arith.constant 1 : index
    %c0_120 = arith.constant 0 : index
    %c0_121 = arith.constant 0 : index
    %266 = vector.load %arg13[%c1_119, %c0_120, %c0_121] : memref<2x1x128xf32, #tpu.memory_space<vmem>>, vector<1x1x128xf32>
    %267 = vector.shape_cast %266 : vector<1x1x128xf32> to vector<1x128xf32>
    %c1_122 = arith.constant 1 : index
    %c0_123 = arith.constant 0 : index
    %c0_124 = arith.constant 0 : index
    %268 = vector.load %arg14[%c1_122, %c0_123, %c0_124] : memref<2x1x128xf32, #tpu.memory_space<vmem>>, vector<1x1x128xf32>
    %269 = vector.shape_cast %268 : vector<1x1x128xf32> to vector<1x128xf32>
    %cst_125 = arith.constant dense<0.000000e+00> : vector<16xf32>
    %270 = vector.multi_reduction <add>, %265, %cst_125 [1] : vector<16x128xf32> to vector<16xf32>
    %271 = vector.shape_cast %270 : vector<16xf32> to vector<16x1xf32>
    %cst_126 = arith.constant 1.280000e+02 : f32
    %272 = vector.broadcast %cst_126 : f32 to vector<16x1xf32>
    %273 = arith.divf %271, %272 : vector<16x1xf32>
    %274 = vector.broadcast %273 : vector<16x1xf32> to vector<16x128xf32>
    %275 = arith.subf %265, %274 : vector<16x128xf32>
    %276 = arith.mulf %275, %275 : vector<16x128xf32>
    %cst_127 = arith.constant dense<0.000000e+00> : vector<16xf32>
    %277 = vector.multi_reduction <add>, %276, %cst_127 [1] : vector<16x128xf32> to vector<16xf32>
    %278 = vector.shape_cast %277 : vector<16xf32> to vector<16x1xf32>
    %cst_128 = arith.constant 1.280000e+02 : f32
    %279 = vector.broadcast %cst_128 : f32 to vector<16x1xf32>
    %280 = arith.divf %278, %279 : vector<16x1xf32>
    %281 = vector.broadcast %273 : vector<16x1xf32> to vector<16x128xf32>
    %282 = arith.subf %265, %281 : vector<16x128xf32>
    %cst_129 = arith.constant 9.99999974E-6 : f32
    %283 = vector.broadcast %cst_129 : f32 to vector<16x1xf32>
    %284 = arith.addf %280, %283 : vector<16x1xf32>
    %285 = math.rsqrt %284 : vector<16x1xf32>
    %286 = vector.broadcast %285 : vector<16x1xf32> to vector<16x128xf32>
    %287 = arith.mulf %282, %286 : vector<16x128xf32>
    %288 = vector.broadcast %267 : vector<1x128xf32> to vector<16x128xf32>
    %289 = arith.mulf %287, %288 : vector<16x128xf32>
    %290 = vector.broadcast %269 : vector<1x128xf32> to vector<16x128xf32>
    %291 = arith.addf %289, %290 : vector<16x128xf32>
    %292 = vector.shape_cast %291 : vector<16x128xf32> to vector<2x8x128xf32>
    %293 = vector.extract_strided_slice %292 {offsets = [0, 0, 0], sizes = [2, 1, 128], strides = [1, 1, 1]} : vector<2x8x128xf32> to vector<2x1x128xf32>
    %294 = vector.shape_cast %293 : vector<2x1x128xf32> to vector<2x128xf32>
    %295 = arith.truncf %294 : vector<2x128xf32> to vector<2x128xbf16>
    %c0_130 = arith.constant 0 : index
    %c0_131 = arith.constant 0 : index
    %296 = vector.load %arg15[%c0_130, %c0_131] : memref<128x128xbf16, #tpu.memory_space<vmem>>, vector<128x128xbf16>
    %cst_132 = arith.constant dense<0.000000e+00> : vector<2x128xf32>
    %297 = tpu.matmul %295, %296, %cst_132 {dimension_numbers = #tpu.dot_dimension_numbers<[1], [0], [0], [1], [0, 0, 1, 1], [], []>} : vector<2x128xbf16>, vector<128x128xbf16>, vector<2x128xf32> -> vector<2x128xf32>
    %c0_133 = arith.constant 0 : index
    %c0_134 = arith.constant 0 : index
    %298 = vector.load %arg16[%c0_133, %c0_134] : memref<1x128xf32, #tpu.memory_space<vmem>>, vector<1x128xf32>
    %299 = vector.broadcast %298 : vector<1x128xf32> to vector<2x128xf32>
    %300 = arith.addf %297, %299 : vector<2x128xf32>
    %cst_135 = arith.constant dense<0xFF800000> : vector<2xf32>
    %301 = vector.multi_reduction <maximumf>, %300, %cst_135 [1] : vector<2x128xf32> to vector<2xf32>
    %302 = vector.shape_cast %301 : vector<2xf32> to vector<2x1xf32>
    %303 = vector.broadcast %302 : vector<2x1xf32> to vector<2x128xf32>
    %304 = arith.subf %300, %303 : vector<2x128xf32>
    %305 = math.exp %304 : vector<2x128xf32>
    %cst_136 = arith.constant dense<0.000000e+00> : vector<2xf32>
    %306 = vector.multi_reduction <add>, %305, %cst_136 [1] : vector<2x128xf32> to vector<2xf32>
    %307 = vector.shape_cast %306 : vector<2xf32> to vector<2x1xf32>
    %308 = math.log %307 : vector<2x1xf32>
    %309 = vector.broadcast %308 : vector<2x1xf32> to vector<2x128xf32>
    %310 = arith.subf %304, %309 : vector<2x128xf32>
    %c0_137 = arith.constant 0 : index
    %c0_138 = arith.constant 0 : index
    %311 = vector.load %arg17[%c0_137, %c0_138] : memref<2x128xf32, #tpu.memory_space<vmem>>, vector<2x128xf32>
    tpu.vector_store %arg17[%c0_137, %c0_138], %310 {strides = array<i32>} : memref<2x128xf32, #tpu.memory_space<vmem>>, vector<2x128xf32>,
    return
  }
  func.func @transform_0(%arg0: i32) -> (i32, i32) {
    %c0_i32 = arith.constant 0 : i32
    %c0_i32_0 = arith.constant 0 : i32
    return %arg0, %c0_i32 : i32, i32
  }
  func.func @transform_1(%arg0: i32) -> (i32, i32, i32) {
    %c0_i32 = arith.constant 0 : i32
    %c0_i32_0 = arith.constant 0 : i32
    %c0_i32_1 = arith.constant 0 : i32
    return %arg0, %c0_i32, %c0_i32_0 : i32, i32, i32
  }
  func.func @transform_2(%arg0: i32) -> (i32, i32, i32) {
    %c0_i32 = arith.constant 0 : i32
    %c0_i32_0 = arith.constant 0 : i32
    %c0_i32_1 = arith.constant 0 : i32
    %c0_i32_2 = arith.constant 0 : i32
    return %c0_i32, %c0_i32_0, %c0_i32_1 : i32, i32, i32
  }
  func.func @transform_3(%arg0: i32) -> (i32, i32, i32) {
    %c0_i32 = arith.constant 0 : i32
    %c0_i32_0 = arith.constant 0 : i32
    %c0_i32_1 = arith.constant 0 : i32
    %c0_i32_2 = arith.constant 0 : i32
    return %c0_i32, %c0_i32_0, %c0_i32_1 : i32, i32, i32
  }
  func.func @transform_4(%arg0: i32) -> (i32, i32, i32) {
    %c0_i32 = arith.constant 0 : i32
    %c0_i32_0 = arith.constant 0 : i32
    %c0_i32_1 = arith.constant 0 : i32
    %c0_i32_2 = arith.constant 0 : i32
    return %c0_i32, %c0_i32_0, %c0_i32_1 : i32, i32, i32
  }
  func.func @transform_5(%arg0: i32) -> (i32, i32, i32) {
    %c0_i32 = arith.constant 0 : i32
    %c0_i32_0 = arith.constant 0 : i32
    %c0_i32_1 = arith.constant 0 : i32
    %c0_i32_2 = arith.constant 0 : i32
    return %c0_i32, %c0_i32_0, %c0_i32_1 : i32, i32, i32
  }
  func.func @transform_6(%arg0: i32) -> (i32, i32, i32) {
    %c0_i32 = arith.constant 0 : i32
    %c0_i32_0 = arith.constant 0 : i32
    %c0_i32_1 = arith.constant 0 : i32
    %c0_i32_2 = arith.constant 0 : i32
    return %c0_i32, %c0_i32_0, %c0_i32_1 : i32, i32, i32
  }
  func.func @transform_7(%arg0: i32) -> (i32, i32, i32) {
    %c0_i32 = arith.constant 0 : i32
    %c0_i32_0 = arith.constant 0 : i32
    %c0_i32_1 = arith.constant 0 : i32
    %c0_i32_2 = arith.constant 0 : i32
    return %c0_i32, %c0_i32_0, %c0_i32_1 : i32, i32, i32
  }
  func.func @transform_8(%arg0: i32) -> (i32, i32, i32) {
    %c0_i32 = arith.constant 0 : i32
    %c0_i32_0 = arith.constant 0 : i32
    %c0_i32_1 = arith.constant 0 : i32
    %c0_i32_2 = arith.constant 0 : i32
    return %c0_i32, %c0_i32_0, %c0_i32_1 : i32, i32, i32
  }
  func.func @transform_9(%arg0: i32) -> (i32, i32, i32) {
    %c0_i32 = arith.constant 0 : i32
    %c0_i32_0 = arith.constant 0 : i32
    %c0_i32_1 = arith.constant 0 : i32
    %c0_i32_2 = arith.constant 0 : i32
    return %c0_i32, %c0_i32_0, %c0_i32_1 : i32, i32, i32
  }
  func.func @transform_10(%arg0: i32) -> (i32, i32, i32) {
    %c0_i32 = arith.constant 0 : i32
    %c0_i32_0 = arith.constant 0 : i32
    %c0_i32_1 = arith.constant 0 : i32
    %c0_i32_2 = arith.constant 0 : i32
    return %c0_i32, %c0_i32_0, %c0_i32_1 : i32, i32, i32
  }
  func.func @transform_11(%arg0: i32) -> (i32, i32, i32) {
    %c0_i32 = arith.constant 0 : i32
    %c0_i32_0 = arith.constant 0 : i32
    %c0_i32_1 = arith.constant 0 : i32
    %c0_i32_2 = arith.constant 0 : i32
    return %c0_i32, %c0_i32_0, %c0_i32_1 : i32, i32, i32
  }
  func.func @transform_12(%arg0: i32) -> (i32, i32, i32) {
    %c0_i32 = arith.constant 0 : i32
    %c0_i32_0 = arith.constant 0 : i32
    %c0_i32_1 = arith.constant 0 : i32
    %c0_i32_2 = arith.constant 0 : i32
    return %c0_i32, %c0_i32_0, %c0_i32_1 : i32, i32, i32
  }
  func.func @transform_13(%arg0: i32) -> (i32, i32, i32) {
    %c0_i32 = arith.constant 0 : i32
    %c0_i32_0 = arith.constant 0 : i32
    %c0_i32_1 = arith.constant 0 : i32
    %c0_i32_2 = arith.constant 0 : i32
    return %c0_i32, %c0_i32_0, %c0_i32_1 : i32, i32, i32
  }
  func.func @transform_14(%arg0: i32) -> (i32, i32) {
    %c0_i32 = arith.constant 0 : i32
    %c0_i32_0 = arith.constant 0 : i32
    %c0_i32_1 = arith.constant 0 : i32
    return %c0_i32, %c0_i32_0 : i32, i32
  }
  func.func @transform_15(%arg0: i32) -> (i32, i32) {
    %c0_i32 = arith.constant 0 : i32
    %c0_i32_0 = arith.constant 0 : i32
    %c0_i32_1 = arith.constant 0 : i32
    return %c0_i32, %c0_i32_0 : i32, i32
  }
  func.func @transform_16(%arg0: i32) -> (i32, i32) {
    %c0_i32 = arith.constant 0 : i32
    %c0_i32_0 = arith.constant 0 : i32
    return %arg0, %c0_i32 : i32, i32
  }
}

</mosaic_0001>

<llo_original>
// kernel: transformer_forward.1
$region0: #{transformer_forward.1}
  #allocation0 [shape = 'u32[]', space=smem, size = 0x4, offset = 0x4, fixed_abs, tag = 'smem constant byte address 0x4 - core index']
  #allocation1 [shape = 'u32[72,128]{1,0:T(1,128)}', space=vmem, size = 0x9000, scoped, tag = 'internal scratch']
  %s0 = inlined_call_operand.vmem [shape: s32[2,1], index: 0, kind: input, shape index: {}]
  %s1 = inlined_call_operand.vmem [shape: f32[2,8,128], index: 1, kind: input, shape index: {}]
  %s2 = inlined_call_operand.hbm [shape: bf16[2,128,384], index: 2, kind: input, shape index: {}]
  %s3 = inlined_call_operand.vmem [shape: f32[2,1,384], index: 3, kind: input, shape index: {}]
  %s4 = inlined_call_operand.vmem [shape: bf16[2,128,128], index: 4, kind: input, shape index: {}]
  %s5 = inlined_call_operand.vmem [shape: f32[2,1,128], index: 5, kind: input, shape index: {}]
  %s6 = inlined_call_operand.vmem [shape: f32[2,1,128], index: 6, kind: input, shape index: {}]
  %s7 = inlined_call_operand.vmem [shape: f32[2,1,128], index: 7, kind: input, shape index: {}]
  %s8 = inlined_call_operand.hbm [shape: bf16[2,128,512], index: 8, kind: input, shape index: {}]
  %s9 = inlined_call_operand.vmem [shape: f32[2,1,512], index: 9, kind: input, shape index: {}]
  %s10 = inlined_call_operand.hbm [shape: bf16[2,512,128], index: 10, kind: input, shape index: {}]
  %s11 = inlined_call_operand.vmem [shape: f32[2,1,128], index: 11, kind: input, shape index: {}]
  %s12 = inlined_call_operand.vmem [shape: f32[2,1,128], index: 12, kind: input, shape index: {}]
  %s13 = inlined_call_operand.vmem [shape: f32[2,1,128], index: 13, kind: input, shape index: {}]
  %s14 = inlined_call_operand.hbm [shape: bf16[128,128], index: 14, kind: input, shape index: {}]
  %s15 = inlined_call_operand.vmem [shape: f32[1,128], index: 15, kind: input, shape index: {}]
  %s16 = inlined_call_operand.hbm [shape: f32[2,128], index: 16, kind: output, shape index: {}]
  %s17 = sld [smem:[#allocation0]]
  $region90: #{transformer_forward.1} parent=0
    _
  %s19 = ssub.s32 1, %s17
  %s20 = scalar_select 0, %s19, %s17
  $region1: #{transformer_forward.1} parent=0
    #allocation2 [shape = 'u8[196608]{0}', space=vmem, size = 0x30000, scoped, tag = 'input window, operand 2, single buffered']
    #allocation3 [shape = 's32[1]{0}', space=sflag, size = 0x4, scoped, tag = 'scoped memory for transformer_forward.1']
    #allocation4 [shape = 's32[1]{0}', space=sflag, size = 0x4, scoped, tag = 'scoped memory for transformer_forward.1']
    #allocation5 [shape = 'u8[262144]{0}', space=vmem, size = 0x40000, scoped, tag = 'input window, operand 8, single buffered']
    #allocation6 [shape = 's32[1]{0}', space=sflag, size = 0x4, scoped, tag = 'scoped memory for transformer_forward.1']
    #allocation7 [shape = 'u8[262144]{0}', space=vmem, size = 0x40000, scoped, tag = 'input window, operand 10, single buffered']
    #allocation8 [shape = 'u8[32768]{0}', space=vmem, size = 0x8000, scoped, tag = 'input window, operand 14, single buffered']
    #allocation9 [shape = 's32[1]{0}', space=sflag, size = 0x4, scoped, tag = 'scoped memory for transformer_forward.1']
    #allocation10 [shape = 'u8[1024]{0}', space=vmem, size = 0x400, scoped, tag = 'output window, operand 0, single buffered']
    %21 = vsyncpa [#allocation3], 0
    %22 = vsyncpa [#allocation6], 0
    %23 = vsyncpa [#allocation9], 0
    %24 = vsyncpa [#allocation4], 0
    // Predicated region
    $region2: #{transformer_forward.1} parent=1 // pred_check
      _
    $region3: #{transformer_forward.1} parent=1 // pred_check_branch
      %26 = sbr.rel (0) target = $region5
    $region4: #{transformer_forward.1} parent=1 // pred_region
      _
    $region5: #{transformer_forward.1} parent=1 // pred_fallthru
      _
    // Predicated region
    $region6: #{transformer_forward.1} parent=1 // pred_check
      _
    $region7: #{transformer_forward.1} parent=1 // pred_check_branch
      %28 = sbr.rel (0) target = $region9
    $region8: #{transformer_forward.1} parent=1 // pred_region
      _
    $region9: #{transformer_forward.1} parent=1 // pred_fallthru
      _
    // Predicated region
    $region10: #{transformer_forward.1} parent=1 // pred_check
      _
    $region11: #{transformer_forward.1} parent=1 // pred_check_branch
      %30 = sbr.rel (0) target = $region13
    $region12: #{transformer_forward.1} parent=1 // pred_region
      %32 = vsyncadd [#allocation3], 0
      %s33 = sshll.u32 %s2, 4
      %s34 = int_to_ptr.hbm [resolvable:$true] %s33
      %s35 = sshll.u32 [#allocation2], 4
      %s36 = int_to_ptr.vmem [resolvable:$true] %s35
      %41 = dma.hbm_to_vmem [thread:$0]  %s34, 6144, %s36, [#allocation3], 192, 192, 12
    $region13: #{transformer_forward.1} parent=1 // pred_fallthru
      _
    // Predicated region
    $region14: #{transformer_forward.1} parent=1 // pred_check
      _
    $region15: #{transformer_forward.1} parent=1 // pred_check_branch
      %43 = sbr.rel (0) target = $region17
    $region16: #{transformer_forward.1} parent=1 // pred_region
      _
    $region17: #{transformer_forward.1} parent=1 // pred_fallthru
      _
    // Predicated region
    $region18: #{transformer_forward.1} parent=1 // pred_check
      _
    $region19: #{transformer_forward.1} parent=1 // pred_check_branch
      %45 = sbr.rel (0) target = $region21
    $region20: #{transformer_forward.1} parent=1 // pred_region
      _
    $region21: #{transformer_forward.1} parent=1 // pred_fallthru
      _
    // Predicated region
    $region22: #{transformer_forward.1} parent=1 // pred_check
      _
    $region23: #{transformer_forward.1} parent=1 // pred_check_branch
      %47 = sbr.rel (0) target = $region25
    $region24: #{transformer_forward.1} parent=1 // pred_region
      _
    $region25: #{transformer_forward.1} parent=1 // pred_fallthru
      _
    // Predicated region
    $region26: #{transformer_forward.1} parent=1 // pred_check
      _
    $region27: #{transformer_forward.1} parent=1 // pred_check_branch
      %49 = sbr.rel (0) target = $region29
    $region28: #{transformer_forward.1} parent=1 // pred_region
      _
    $region29: #{transformer_forward.1} parent=1 // pred_fallthru
      _
    // Predicated region
    $region30: #{transformer_forward.1} parent=1 // pred_check
      _
    $region31: #{transformer_forward.1} parent=1 // pred_check_branch
      %51 = sbr.rel (0) target = $region33
    $region32: #{transformer_forward.1} parent=1 // pred_region
      _
    $region33: #{transformer_forward.1} parent=1 // pred_fallthru
      _
    // Predicated region
    $region34: #{transformer_forward.1} parent=1 // pred_check
      _
    $region35: #{transformer_forward.1} parent=1 // pred_check_branch
      %53 = sbr.rel (0) target = $region37
    $region36: #{transformer_forward.1} parent=1 // pred_region
      %55 = vsyncadd [#allocation6], 0
      %s56 = sshll.u32 %s8, 4
      %s57 = int_to_ptr.hbm [resolvable:$true] %s56
      %s58 = sshll.u32 [#allocation5], 4
      %s59 = int_to_ptr.vmem [resolvable:$true] %s58
      %64 = dma.hbm_to_vmem [thread:$0]  %s57, 8192, %s59, [#allocation6], 256, 256, 16
    $region37: #{transformer_forward.1} parent=1 // pred_fallthru
      _
    // Predicated region
    $region38: #{transformer_forward.1} parent=1 // pred_check
      _
    $region39: #{transformer_forward.1} parent=1 // pred_check_branch
      %66 = sbr.rel (0) target = $region41
    $region40: #{transformer_forward.1} parent=1 // pred_region
      _
    $region41: #{transformer_forward.1} parent=1 // pred_fallthru
      _
    // Predicated region
    $region42: #{transformer_forward.1} parent=1 // pred_check
      _
    $region43: #{transformer_forward.1} parent=1 // pred_check_branch
      %68 = sbr.rel (0) target = $region45
    $region44: #{transformer_forward.1} parent=1 // pred_region
      %70 = vsyncadd [#allocation6], 0
      %s71 = sshll.u32 %s10, 4
      %s72 = int_to_ptr.hbm [resolvable:$true] %s71
      %s73 = sshll.u32 [#allocation7], 4
      %s74 = int_to_ptr.vmem [resolvable:$true] %s73
      %79 = dma.hbm_to_vmem [thread:$0]  %s72, 8192, %s74, [#allocation6], 64, 64, 4
    $region45: #{transformer_forward.1} parent=1 // pred_fallthru
      _
    // Predicated region
    $region46: #{transformer_forward.1} parent=1 // pred_check
      _
    $region47: #{transformer_forward.1} parent=1 // pred_check_branch
      %81 = sbr.rel (0) target = $region49
    $region48: #{transformer_forward.1} parent=1 // pred_region
      _
    $region49: #{transformer_forward.1} parent=1 // pred_fallthru
      _
    // Predicated region
    $region50: #{transformer_forward.1} parent=1 // pred_check
      _
    $region51: #{transformer_forward.1} parent=1 // pred_check_branch
      %83 = sbr.rel (0) target = $region53
    $region52: #{transformer_forward.1} parent=1 // pred_region
      _
    $region53: #{transformer_forward.1} parent=1 // pred_fallthru
      _
    // Predicated region
    $region54: #{transformer_forward.1} parent=1 // pred_check
      _
    $region55: #{transformer_forward.1} parent=1 // pred_check_branch
      %85 = sbr.rel (0) target = $region57
    $region56: #{transformer_forward.1} parent=1 // pred_region
      _
    $region57: #{transformer_forward.1} parent=1 // pred_fallthru
      _
    // Predicated region
    $region58: #{transformer_forward.1} parent=1 // pred_check
      _
    $region59: #{transformer_forward.1} parent=1 // pred_check_branch
      %87 = sbr.rel (0) target = $region61
    $region60: #{transformer_forward.1} parent=1 // pred_region
      %89 = vsyncadd [#allocation9], 0
      %s90 = sshll.u32 %s14, 4
      %s91 = int_to_ptr.hbm [resolvable:$true] %s90
      %s92 = sshll.u32 [#allocation8], 4
      %s93 = int_to_ptr.vmem [resolvable:$true] %s92
      %98 = dma.hbm_to_vmem [thread:$0]  %s91, 1024, %s93, [#allocation9], 64, 64, 4
    $region61: #{transformer_forward.1} parent=1 // pred_fallthru
      _
    // Predicated region
    $region62: #{transformer_forward.1} parent=1 // pred_check
      _
    $region63: #{transformer_forward.1} parent=1 // pred_check_branch
      %100 = sbr.rel (0) target = $region65
    $region64: #{transformer_forward.1} parent=1 // pred_region
      _
    $region65: #{transformer_forward.1} parent=1 // pred_fallthru
      _
    // Predicated region
    $region66: #{transformer_forward.1} parent=1 // pred_check
      _
    $region67: #{transformer_forward.1} parent=1 // pred_check_branch
      %102 = sbr.rel (0) target = $region69
    $region68: #{transformer_forward.1} parent=1 // pred_region
      %104 = dma.done [#allocation3], 6144
    $region69: #{transformer_forward.1} parent=1 // pred_fallthru
      _
    // Predicated region
    $region70: #{transformer_forward.1} parent=1 // pred_check
      _
    $region71: #{transformer_forward.1} parent=1 // pred_check_branch
      %106 = sbr.rel (0) target = $region73
    $region72: #{transformer_forward.1} parent=1 // pred_region
      %108 = dma.done [#allocation6], 8192
    $region73: #{transformer_forward.1} parent=1 // pred_fallthru
      _
    // Predicated region
    $region74: #{transformer_forward.1} parent=1 // pred_check
      _
    $region75: #{transformer_forward.1} parent=1 // pred_check_branch
      %110 = sbr.rel (0) target = $region77
    $region76: #{transformer_forward.1} parent=1 // pred_region
      %112 = dma.done [#allocation6], 8192
    $region77: #{transformer_forward.1} parent=1 // pred_fallthru
      _
    // Predicated region
    $region78: #{transformer_forward.1} parent=1 // pred_check
      _
    $region79: #{transformer_forward.1} parent=1 // pred_check_branch
      %114 = sbr.rel (0) target = $region81
    $region80: #{transformer_forward.1} parent=1 // pred_region
      %116 = dma.done [#allocation9], 1024
    $region81: #{transformer_forward.1} parent=1 // pred_fallthru
      _
    %v118 = vld [vmem:[%s0] sm:$0x3]
    %v119 = vlaneseq
    %v120 = vand.u32 %v119, 127
    %v121 = vrot.slane %v118, 1
    %122 = vset.pattern.permute.xlu0 0
    %123 = vperm.xlu0 %122, %v118
    %v124 = vpop.permute.xlu0 %123
    %v125 = vperm.slane %v124, 0
    %126 = vset.pattern.permute.xlu0 0
    %127 = vperm.xlu0 %126, %v121
    %v128 = vpop.permute.xlu0 %127
    %v129 = vperm.slane %v128, 0
    %vm130 = vcmp.lt.s32.totalorder %v120, %v125
    %vm131 = vcmp.lt.s32.totalorder %v120, %v129
    %v132 = vsel %vm130, 0.0, -1e+30
    %v133 = vsel %vm131, 0.0, -1e+30
    %v134 = vld [vmem:[%s1] sm:$0xff]
    %v135 = vld [vmem:[%s1 + $0x8] sm:$0xff]
    %v136 = vld [vmem:[#allocation2] sm:$0xff]
    %v137 = vld [vmem:[#allocation2 + $0x8] sm:$0xf]
    %v138 = vld [vmem:[#allocation2 + $0xc] sm:$0xff]
    %v139 = vld [vmem:[#allocation2 + $0x14] sm:$0xf]
    %v140 = vld [vmem:[#allocation2 + $0x18] sm:$0xff]
    %v141 = vld [vmem:[#allocation2 + $0x20] sm:$0xf]
    %v142 = vld [vmem:[#allocation2 + $0x24] sm:$0xff]
    %v143 = vld [vmem:[#allocation2 + $0x2c] sm:$0xf]
    %v144 = vld [vmem:[#allocation2 + $0x30] sm:$0xff]
    %v145 = vld [vmem:[#allocation2 + $0x38] sm:$0xf]
    %v146 = vld [vmem:[#allocation2 + $0x3c] sm:$0xff]
    %v147 = vld [vmem:[#allocation2 + $0x44] sm:$0xf]
    %v148 = vld [vmem:[#allocation2 + $0x48] sm:$0xff]
    %v149 = vld [vmem:[#allocation2 + $0x50] sm:$0xf]
    %v150 = vld [vmem:[#allocation2 + $0x54] sm:$0xff]
    %v151 = vld [vmem:[#allocation2 + $0x5c] sm:$0xf]
    %v152 = vld [vmem:[#allocation2 + $0x60] sm:$0xff]
    %v153 = vld [vmem:[#allocation2 + $0x68] sm:$0xf]
    %v154 = vld [vmem:[#allocation2 + $0x6c] sm:$0xff]
    %v155 = vld [vmem:[#allocation2 + $0x74] sm:$0xf]
    %v156 = vld [vmem:[#allocation2 + $0x78] sm:$0xff]
    %v157 = vld [vmem:[#allocation2 + $0x80] sm:$0xf]
    %v158 = vld [vmem:[#allocation2 + $0x84] sm:$0xff]
    %v159 = vld [vmem:[#allocation2 + $0x8c] sm:$0xf]
    %v160 = vld [vmem:[#allocation2 + $0x90] sm:$0xff]
    %v161 = vld [vmem:[#allocation2 + $0x98] sm:$0xf]
    %v162 = vld [vmem:[#allocation2 + $0x9c] sm:$0xff]
    %v163 = vld [vmem:[#allocation2 + $0xa4] sm:$0xf]
    %v164 = vld [vmem:[#allocation2 + $0xa8] sm:$0xff]
    %v165 = vld [vmem:[#allocation2 + $0xb0] sm:$0xf]
    %v166 = vld [vmem:[#allocation2 + $0xb4] sm:$0xff]
    %v167 = vld [vmem:[#allocation2 + $0xbc] sm:$0xf]
    %v168 = vld [vmem:[%s4] sm:$0xf]
    %v169 = vld [vmem:[%s4 + $0x4] sm:$0xf]
    %v170 = vld [vmem:[%s4 + $0x8] sm:$0xf]
    %v171 = vld [vmem:[%s4 + $0xc] sm:$0xf]
    %v172 = vld [vmem:[%s4 + $0x10] sm:$0xf]
    %v173 = vld [vmem:[%s4 + $0x14] sm:$0xf]
    %v174 = vld [vmem:[%s4 + $0x18] sm:$0xf]
    %v175 = vld [vmem:[%s4 + $0x1c] sm:$0xf]
    %v176 = vld [vmem:[%s4 + $0x20] sm:$0xf]
    %v177 = vld [vmem:[%s4 + $0x24] sm:$0xf]
    %v178 = vld [vmem:[%s4 + $0x28] sm:$0xf]
    %v179 = vld [vmem:[%s4 + $0x2c] sm:$0xf]
    %v180 = vld [vmem:[%s4 + $0x30] sm:$0xf]
    %v181 = vld [vmem:[%s4 + $0x34] sm:$0xf]
    %v182 = vld [vmem:[%s4 + $0x38] sm:$0xf]
    %v183 = vld [vmem:[%s4 + $0x3c] sm:$0xf]
    %v184 = vld [vmem:[#allocation5] sm:$0xff]
    %v185 = vld [vmem:[#allocation5 + $0x8] sm:$0xff]
    %v186 = vld [vmem:[#allocation5 + $0x10] sm:$0xff]
    %v187 = vld [vmem:[#allocation5 + $0x18] sm:$0xff]
    %v188 = vld [vmem:[#allocation5 + $0x20] sm:$0xff]
    %v189 = vld [vmem:[#allocation5 + $0x28] sm:$0xff]
    %v190 = vld [vmem:[#allocation5 + $0x30] sm:$0xff]
    %v191 = vld [vmem:[#allocation5 + $0x38] sm:$0xff]
    %v192 = vld [vmem:[#allocation5 + $0x40] sm:$0xff]
    %v193 = vld [vmem:[#allocation5 + $0x48] sm:$0xff]
    %v194 = vld [vmem:[#allocation5 + $0x50] sm:$0xff]
    %v195 = vld [vmem:[#allocation5 + $0x58] sm:$0xff]
    %v196 = vld [vmem:[#allocation5 + $0x60] sm:$0xff]
    %v197 = vld [vmem:[#allocation5 + $0x68] sm:$0xff]
    %v198 = vld [vmem:[#allocation5 + $0x70] sm:$0xff]
    %v199 = vld [vmem:[#allocation5 + $0x78] sm:$0xff]
    %v200 = vld [vmem:[#allocation5 + $0x80] sm:$0xff]
    %v201 = vld [vmem:[#allocation5 + $0x88] sm:$0xff]
    %v202 = vld [vmem:[#allocation5 + $0x90] sm:$0xff]
    %v203 = vld [vmem:[#allocation5 + $0x98] sm:$0xff]
    %v204 = vld [vmem:[#allocation5 + $0xa0] sm:$0xff]
    %v205 = vld [vmem:[#allocation5 + $0xa8] sm:$0xff]
    %v206 = vld [vmem:[#allocation5 + $0xb0] sm:$0xff]
    %v207 = vld [vmem:[#allocation5 + $0xb8] sm:$0xff]
    %v208 = vld [vmem:[#allocation5 + $0xc0] sm:$0xff]
    %v209 = vld [vmem:[#allocation5 + $0xc8] sm:$0xff]
    %v210 = vld [vmem:[#allocation5 + $0xd0] sm:$0xff]
    %v211 = vld [vmem:[#allocation5 + $0xd8] sm:$0xff]
    %v212 = vld [vmem:[#allocation5 + $0xe0] sm:$0xff]
    %v213 = vld [vmem:[#allocation5 + $0xe8] sm:$0xff]
    %v214 = vld [vmem:[#allocation5 + $0xf0] sm:$0xff]
    %v215 = vld [vmem:[#allocation5 + $0xf8] sm:$0xff]
    %v216 = vld [vmem:[#allocation7] sm:$0xf]
    %v217 = vld [vmem:[#allocation7 + $0x4] sm:$0xf]
    %v218 = vld [vmem:[#allocation7 + $0x8] sm:$0xf]
    %v219 = vld [vmem:[#allocation7 + $0xc] sm:$0xf]
    %v220 = vld [vmem:[#allocation7 + $0x10] sm:$0xf]
    %v221 = vld [vmem:[#allocation7 + $0x14] sm:$0xf]
    %v222 = vld [vmem:[#allocation7 + $0x18] sm:$0xf]
    %v223 = vld [vmem:[#allocation7 + $0x1c] sm:$0xf]
    %v224 = vld [vmem:[#allocation7 + $0x20] sm:$0xf]
    %v225 = vld [vmem:[#allocation7 + $0x24] sm:$0xf]
    %v226 = vld [vmem:[#allocation7 + $0x28] sm:$0xf]
    %v227 = vld [vmem:[#allocation7 + $0x2c] sm:$0xf]
    %v228 = vld [vmem:[#allocation7 + $0x30] sm:$0xf]
    %v229 = vld [vmem:[#allocation7 + $0x34] sm:$0xf]
    %v230 = vld [vmem:[#allocation7 + $0x38] sm:$0xf]
    %v231 = vld [vmem:[#allocation7 + $0x3c] sm:$0xf]
    %v232 = vld [vmem:[#allocation7 + $0x40] sm:$0xf]
    %v233 = vld [vmem:[#allocation7 + $0x44] sm:$0xf]
    %v234 = vld [vmem:[#allocation7 + $0x48] sm:$0xf]
    %v235 = vld [vmem:[#allocation7 + $0x4c] sm:$0xf]
    %v236 = vld [vmem:[#allocation7 + $0x50] sm:$0xf]
    %v237 = vld [vmem:[#allocation7 + $0x54] sm:$0xf]
    %v238 = vld [vmem:[#allocation7 + $0x58] sm:$0xf]
    %v239 = vld [vmem:[#allocation7 + $0x5c] sm:$0xf]
    %v240 = vld [vmem:[#allocation7 + $0x60] sm:$0xf]
    %v241 = vld [vmem:[#allocation7 + $0x64] sm:$0xf]
    %v242 = vld [vmem:[#allocation7 + $0x68] sm:$0xf]
    %v243 = vld [vmem:[#allocation7 + $0x6c] sm:$0xf]
    %v244 = vld [vmem:[#allocation7 + $0x70] sm:$0xf]
    %v245 = vld [vmem:[#allocation7 + $0x74] sm:$0xf]
    %v246 = vld [vmem:[#allocation7 + $0x78] sm:$0xf]
    %v247 = vld [vmem:[#allocation7 + $0x7c] sm:$0xf]
    %v248 = vld [vmem:[#allocation7 + $0x80] sm:$0xf]
    %v249 = vld [vmem:[#allocation7 + $0x84] sm:$0xf]
    %v250 = vld [vmem:[#allocation7 + $0x88] sm:$0xf]
    %v251 = vld [vmem:[#allocation7 + $0x8c] sm:$0xf]
    %v252 = vld [vmem:[#allocation7 + $0x90] sm:$0xf]
    %v253 = vld [vmem:[#allocation7 + $0x94] sm:$0xf]
    %v254 = vld [vmem:[#allocation7 + $0x98] sm:$0xf]
    %v255 = vld [vmem:[#allocation7 + $0x9c] sm:$0xf]
    %v256 = vld [vmem:[#allocation7 + $0xa0] sm:$0xf]
    %v257 = vld [vmem:[#allocation7 + $0xa4] sm:$0xf]
    %v258 = vld [vmem:[#allocation7 + $0xa8] sm:$0xf]
    %v259 = vld [vmem:[#allocation7 + $0xac] sm:$0xf]
    %v260 = vld [vmem:[#allocation7 + $0xb0] sm:$0xf]
    %v261 = vld [vmem:[#allocation7 + $0xb4] sm:$0xf]
    %v262 = vld [vmem:[#allocation7 + $0xb8] sm:$0xf]
    %v263 = vld [vmem:[#allocation7 + $0xbc] sm:$0xf]
    %v264 = vld [vmem:[#allocation7 + $0xc0] sm:$0xf]
    %v265 = vld [vmem:[#allocation7 + $0xc4] sm:$0xf]
    %v266 = vld [vmem:[#allocation7 + $0xc8] sm:$0xf]
    %v267 = vld [vmem:[#allocation7 + $0xcc] sm:$0xf]
    %v268 = vld [vmem:[#allocation7 + $0xd0] sm:$0xf]
    %v269 = vld [vmem:[#allocation7 + $0xd4] sm:$0xf]
    %v270 = vld [vmem:[#allocation7 + $0xd8] sm:$0xf]
    %v271 = vld [vmem:[#allocation7 + $0xdc] sm:$0xf]
    %v272 = vld [vmem:[#allocation7 + $0xe0] sm:$0xf]
    %v273 = vld [vmem:[#allocation7 + $0xe4] sm:$0xf]
    %v274 = vld [vmem:[#allocation7 + $0xe8] sm:$0xf]
    %v275 = vld [vmem:[#allocation7 + $0xec] sm:$0xf]
    %v276 = vld [vmem:[#allocation7 + $0xf0] sm:$0xf]
    %v277 = vld [vmem:[#allocation7 + $0xf4] sm:$0xf]
    %v278 = vld [vmem:[#allocation7 + $0xf8] sm:$0xf]
    %v279 = vld [vmem:[#allocation7 + $0xfc] sm:$0xf]
    %v280 = vpack.c.bf16 %v135, %v134
    %v281 = vld [vmem:[%s3] sm:$0x7]
    %v283 = vperm.slane %v281, 0
    %v284 = vperm.slane %v281, 1
    %v285 = vperm.slane %v281, 2
    %v321 = vunpack.c.l.b16 %v136
    %v322 = vunpack.c.h.b16 %v136
    %v323 = vunpack.c.l.b16 %v137
    %v324 = vunpack.c.l.b16 %v138
    %v325 = vunpack.c.h.b16 %v138
    %v326 = vunpack.c.l.b16 %v139
    %v327 = vunpack.c.l.b16 %v140
    %v328 = vunpack.c.h.b16 %v140
    %v329 = vunpack.c.l.b16 %v141
    %v330 = vunpack.c.l.b16 %v142
    %v331 = vunpack.c.h.b16 %v142
    %v332 = vunpack.c.l.b16 %v143
    %v333 = vunpack.c.l.b16 %v144
    %v334 = vunpack.c.h.b16 %v144
    %v335 = vunpack.c.l.b16 %v145
    %v336 = vunpack.c.l.b16 %v146
    %v337 = vunpack.c.h.b16 %v146
    %v338 = vunpack.c.l.b16 %v147
    %v339 = vunpack.c.l.b16 %v148
    %v340 = vunpack.c.h.b16 %v148
    %v341 = vunpack.c.l.b16 %v149
    %v342 = vunpack.c.l.b16 %v150
    %v343 = vunpack.c.h.b16 %v150
    %v344 = vunpack.c.l.b16 %v151
    %v345 = vunpack.c.l.b16 %v152
    %v346 = vunpack.c.h.b16 %v152
    %v347 = vunpack.c.l.b16 %v153
    %v348 = vunpack.c.l.b16 %v154
    %v349 = vunpack.c.h.b16 %v154
    %v350 = vunpack.c.l.b16 %v155
    %v351 = vunpack.c.l.b16 %v156
    %v352 = vunpack.c.h.b16 %v156
    %v353 = vunpack.c.l.b16 %v157
    %v354 = vunpack.c.l.b16 %v158
    %v355 = vunpack.c.h.b16 %v158
    %v356 = vunpack.c.l.b16 %v159
    %v357 = vunpack.c.l.b16 %v160
    %v358 = vunpack.c.h.b16 %v160
    %v359 = vunpack.c.l.b16 %v161
    %v360 = vunpack.c.l.b16 %v162
    %v361 = vunpack.c.h.b16 %v162
    %v362 = vunpack.c.l.b16 %v163
    %v363 = vunpack.c.l.b16 %v164
    %v364 = vunpack.c.h.b16 %v164
    %v365 = vunpack.c.l.b16 %v165
    %v366 = vunpack.c.l.b16 %v166
    %v367 = vunpack.c.h.b16 %v166
    %v368 = vunpack.c.l.b16 %v167
    %v369 = vpack.c.b16 %v324, %v321
    %v370 = vpack.c.b16 %v325, %v322
    %v371 = vpack.c.b16 %v326, %v323
    %v372 = vpack.c.b16 %v330, %v327
    %v373 = vpack.c.b16 %v331, %v328
    %v374 = vpack.c.b16 %v332, %v329
    %v375 = vpack.c.b16 %v336, %v333
    %v376 = vpack.c.b16 %v337, %v334
    %v377 = vpack.c.b16 %v338, %v335
    %v378 = vpack.c.b16 %v342, %v339
    %v379 = vpack.c.b16 %v343, %v340
    %v380 = vpack.c.b16 %v344, %v341
    %v381 = vpack.c.b16 %v348, %v345
    %v382 = vpack.c.b16 %v349, %v346
    %v383 = vpack.c.b16 %v350, %v347
    %v384 = vpack.c.b16 %v354, %v351
    %v385 = vpack.c.b16 %v355, %v352
    %v386 = vpack.c.b16 %v356, %v353
    %v387 = vpack.c.b16 %v360, %v357
    %v388 = vpack.c.b16 %v361, %v358
    %v389 = vpack.c.b16 %v362, %v359
    %v390 = vpack.c.b16 %v366, %v363
    %v391 = vpack.c.b16 %v367, %v364
    %v392 = vpack.c.b16 %v368, %v365
    %417 = vmatpush.bf16.msra.mxu0 %v390
    %418 = vmatpush.bf16.msra.mxu0 %v387
    %419 = vmatpush.bf16.msra.mxu0 %v384
    %420 = vmatpush.bf16.msra.mxu0 %v381
    %421 = vmatpush.bf16.msra.mxu0 %v378
    %422 = vmatpush.bf16.msra.mxu0 %v375
    %423 = vmatpush.bf16.msra.mxu0 %v372
    %424 = vmatpush.bf16.msra.mxu0 %v369
    %425 = vmatmul.bf16.gmra.mxu0 %v280
    %v426 = vpop.f32.mrf.mxu0
    %v427 = vadd.f32 %v283, %v426
    %v428 = vpop.f32.mrf.mxu0
    %v429 = vadd.f32 %v283, %v428
    %430 = vdwg.mxu0
    %431 = vmatpush.bf16.msra.mxu0 %v391
    %432 = vmatpush.bf16.msra.mxu0 %v388
    %433 = vmatpush.bf16.msra.mxu0 %v385
    %434 = vmatpush.bf16.msra.mxu0 %v382
    %435 = vmatpush.bf16.msra.mxu0 %v379
    %436 = vmatpush.bf16.msra.mxu0 %v376
    %437 = vmatpush.bf16.msra.mxu0 %v373
    %438 = vmatpush.bf16.msra.mxu0 %v370
    %439 = vmatmul.bf16.gmra.mxu0 %v280
    %v440 = vpop.f32.mrf.mxu0
    %v441 = vadd.f32 %v284, %v440
    %v442 = vpop.f32.mrf.mxu0
    %v443 = vadd.f32 %v284, %v442
    %444 = vdwg.mxu0
    %445 = vmatpush.bf16.msra.mxu0 %v392
    %446 = vmatpush.bf16.msra.mxu0 %v389
    %447 = vmatpush.bf16.msra.mxu0 %v386
    %448 = vmatpush.bf16.msra.mxu0 %v383
    %449 = vmatpush.bf16.msra.mxu0 %v380
    %450 = vmatpush.bf16.msra.mxu0 %v377
    %451 = vmatpush.bf16.msra.mxu0 %v374
    %452 = vmatpush.bf16.msra.mxu0 %v371
    %453 = vmatmul.bf16.gmra.mxu0 %v280
    %v454 = vpop.f32.mrf.mxu0
    %v455 = vadd.f32 %v285, %v454
    %v456 = vpop.f32.mrf.mxu0
    %v457 = vadd.f32 %v285, %v456
    %458 = vdwg.mxu0
    %vm459 = vcmask 523264
    %v461 = vsel %vm459, %v427, 0
    %v464 = vsel %vm459, %v441, 0
    %466 = vmatpush.xpose.msra.mxu0 0.0
    %467 = vmatpush.xpose.msra.mxu0 0.0
    %468 = vmatpush.xpose.msra.mxu0 0.0
    %469 = vmatpush.xpose.msra.mxu0 0.0
    %470 = vmatpush.xpose.msra.mxu0 0.0
    %471 = vmatpush.xpose.msra.mxu0 0.0
    %472 = vmatpush.xpose.msra.mxu0 0.0
    %473 = vmatpush.xpose.msra.mxu0 0.0
    %474 = vmatpush.xpose.msra.mxu0 0.0
    %475 = vmatpush.xpose.msra.mxu0 0.0
    %476 = vmatpush.xpose.msra.mxu0 0.0
    %477 = vmatpush.xpose.msra.mxu0 0.0
    %478 = vmatpush.xpose.msra.mxu0 0.0
    %479 = vmatpush.xpose.msra.mxu0 0.0
    %480 = vmatpush.xpose.msra.mxu0 0.0
    %481 = vmatpush.xpose.msra.mxu0 %v464
    %482 = vmatmul.f32.gmra.mxu0 %v461
    %v483 = vpop.f32.mrf.mxu0
    %v484 = vadd.f32 0.0, %v483
    %485 = vdwg.mxu0
    %v487 = vsel %vm459, %v429, 0
    %v490 = vsel %vm459, %v443, 0
    %492 = vmatpush.xpose.msra.mxu0 0.0
    %493 = vmatpush.xpose.msra.mxu0 0.0
    %494 = vmatpush.xpose.msra.mxu0 0.0
    %495 = vmatpush.xpose.msra.mxu0 0.0
    %496 = vmatpush.xpose.msra.mxu0 0.0
    %497 = vmatpush.xpose.msra.mxu0 0.0
    %498 = vmatpush.xpose.msra.mxu0 0.0
    %499 = vmatpush.xpose.msra.mxu0 0.0
    %500 = vmatpush.xpose.msra.mxu0 0.0
    %501 = vmatpush.xpose.msra.mxu0 0.0
    %502 = vmatpush.xpose.msra.mxu0 0.0
    %503 = vmatpush.xpose.msra.mxu0 0.0
    %504 = vmatpush.xpose.msra.mxu0 0.0
    %505 = vmatpush.xpose.msra.mxu0 0.0
    %506 = vmatpush.xpose.msra.mxu0 0.0
    %507 = vmatpush.xpose.msra.mxu0 %v490
    %508 = vmatmul.f32.gmra.mxu0 %v487
    %v509 = vpop.f32.mrf.mxu0
    %v510 = vadd.f32 0.0, %v509
    %511 = vdwg.mxu0
    %v512 = vmul.f32 %v484, 0.125
    %v513 = vmul.f32 %v510, 0.125
    %v514 = vadd.f32 %v512, %v132
    %v515 = vadd.f32 %v513, %v133
    %vm516 = vcmask 64512
    %v517 = vsel %vm516, %v514, -inf
    %518 = vmax.xlane.f32.xlu0 %v517
    %v519 = vpop.xlane.xlu0 %518
    %v520 = vsel %vm516, %v515, -inf
    %521 = vmax.xlane.f32.xlu0 %v520
    %v522 = vpop.xlane.xlu0 %521
    %v523 = vsub.f32 %v514, %v519
    %v524 = vsub.f32 %v515, %v522
    %v525 = vmul.f32 %v523, 1.442695
    %v526 = vpow.pop %v525
    %v527 = vmul.f32 %v524, 1.442695
    %v528 = vpow.pop %v527
    %v529 = vsel %vm516, %v526, 0.0
    %530 = vadd.xlane.f32.xlu0 %v529
    %v531 = vpop.xlane.xlu0 %530
    %v532 = vsel %vm516, %v528, 0.0
    %533 = vadd.xlane.f32.xlu0 %v532
    %v534 = vpop.xlane.xlu0 %533
    %v535 = vrcp.pop %v531
    %v536 = vrcp.pop %v534
    %v537 = vmul.f32 %v526, %v535
    %v538 = vmul.f32 %v528, %v536
    %v540 = vsel %vm516, %v537, 0
    %542 = vmatpush.msra.mxu0 0.0
    %543 = vmatpush.msra.mxu0 0.0
    %544 = vmatpush.msra.mxu0 0.0
    %545 = vmatpush.msra.mxu0 0.0
    %546 = vmatpush.msra.mxu0 0.0
    %547 = vmatpush.msra.mxu0 0.0
    %548 = vmatpush.msra.mxu0 0.0
    %549 = vmatpush.msra.mxu0 0.0
    %550 = vmatpush.msra.mxu0 0.0
    %551 = vmatpush.msra.mxu0 0.0
    %552 = vmatpush.msra.mxu0 0.0
    %553 = vmatpush.msra.mxu0 0.0
    %554 = vmatpush.msra.mxu0 0.0
    %555 = vmatpush.msra.mxu0 0.0
    %556 = vmatpush.msra.mxu0 0.0
    %557 = vmatpush.msra.mxu0 %v455
    %558 = vmatmul.f32.gmra.mxu0 %v540
    %v559 = vpop.f32.mrf.mxu0
    %v560 = vadd.f32 0.0, %v559
    %561 = vdwg.mxu0
    %v563 = vsel %vm516, %v538, 0
    %565 = vmatpush.msra.mxu0 0.0
    %566 = vmatpush.msra.mxu0 0.0
    %567 = vmatpush.msra.mxu0 0.0
    %568 = vmatpush.msra.mxu0 0.0
    %569 = vmatpush.msra.mxu0 0.0
    %570 = vmatpush.msra.mxu0 0.0
    %571 = vmatpush.msra.mxu0 0.0
    %572 = vmatpush.msra.mxu0 0.0
    %573 = vmatpush.msra.mxu0 0.0
    %574 = vmatpush.msra.mxu0 0.0
    %575 = vmatpush.msra.mxu0 0.0
    %576 = vmatpush.msra.mxu0 0.0
    %577 = vmatpush.msra.mxu0 0.0
    %578 = vmatpush.msra.mxu0 0.0
    %579 = vmatpush.msra.mxu0 0.0
    %580 = vmatpush.msra.mxu0 %v457
    %581 = vmatmul.f32.gmra.mxu0 %v563
    %v582 = vpop.f32.mrf.mxu0
    %v583 = vadd.f32 0.0, %v582
    %584 = vdwg.mxu0
    %v585 = vpack.c.bf16 %v583, %v560
    %586 = vrot.lane.b32.xlu0 %v427, 64
    %v587 = vpop.permute.xlu0 %586
    %588 = vrot.lane.b32.xlu0 %v441, 64
    %v589 = vpop.permute.xlu0 %588
    %v590 = vsel %vm459, %v587, 0
    %v592 = vsel %vm459, %v589, 0
    %594 = vmatpush.xpose.msra.mxu0 0.0
    %595 = vmatpush.xpose.msra.mxu0 0.0
    %596 = vmatpush.xpose.msra.mxu0 0.0
    %597 = vmatpush.xpose.msra.mxu0 0.0
    %598 = vmatpush.xpose.msra.mxu0 0.0
    %599 = vmatpush.xpose.msra.mxu0 0.0
    %600 = vmatpush.xpose.msra.mxu0 0.0
    %601 = vmatpush.xpose.msra.mxu0 0.0
    %602 = vmatpush.xpose.msra.mxu0 0.0
    %603 = vmatpush.xpose.msra.mxu0 0.0
    %604 = vmatpush.xpose.msra.mxu0 0.0
    %605 = vmatpush.xpose.msra.mxu0 0.0
    %606 = vmatpush.xpose.msra.mxu0 0.0
    %607 = vmatpush.xpose.msra.mxu0 0.0
    %608 = vmatpush.xpose.msra.mxu0 0.0
    %609 = vmatpush.xpose.msra.mxu0 %v592
    %610 = vmatmul.f32.gmra.mxu0 %v590
    %v611 = vpop.f32.mrf.mxu0
    %v612 = vadd.f32 0.0, %v611
    %613 = vdwg.mxu0
    %614 = vrot.lane.b32.xlu0 %v429, 64
    %v615 = vpop.permute.xlu0 %614
    %616 = vrot.lane.b32.xlu0 %v443, 64
    %v617 = vpop.permute.xlu0 %616
    %v618 = vsel %vm459, %v615, 0
    %v620 = vsel %vm459, %v617, 0
    %622 = vmatpush.xpose.msra.mxu0 0.0
    %623 = vmatpush.xpose.msra.mxu0 0.0
    %624 = vmatpush.xpose.msra.mxu0 0.0
    %625 = vmatpush.xpose.msra.mxu0 0.0
    %626 = vmatpush.xpose.msra.mxu0 0.0
    %627 = vmatpush.xpose.msra.mxu0 0.0
    %628 = vmatpush.xpose.msra.mxu0 0.0
    %629 = vmatpush.xpose.msra.mxu0 0.0
    %630 = vmatpush.xpose.msra.mxu0 0.0
    %631 = vmatpush.xpose.msra.mxu0 0.0
    %632 = vmatpush.xpose.msra.mxu0 0.0
    %633 = vmatpush.xpose.msra.mxu0 0.0
    %634 = vmatpush.xpose.msra.mxu0 0.0
    %635 = vmatpush.xpose.msra.mxu0 0.0
    %636 = vmatpush.xpose.msra.mxu0 0.0
    %637 = vmatpush.xpose.msra.mxu0 %v620
    %638 = vmatmul.f32.gmra.mxu0 %v618
    %v639 = vpop.f32.mrf.mxu0
    %v640 = vadd.f32 0.0, %v639
    %641 = vdwg.mxu0
    %v642 = vmul.f32 %v612, 0.125
    %v643 = vmul.f32 %v640, 0.125
    %v644 = vadd.f32 %v642, %v132
    %v645 = vadd.f32 %v643, %v133
    %v646 = vsel %vm516, %v644, -inf
    %647 = vmax.xlane.f32.xlu0 %v646
    %v648 = vpop.xlane.xlu0 %647
    %v649 = vsel %vm516, %v645, -inf
    %650 = vmax.xlane.f32.xlu0 %v649
    %v651 = vpop.xlane.xlu0 %650
    %v652 = vsub.f32 %v644, %v648
    %v653 = vsub.f32 %v645, %v651
    %v654 = vmul.f32 %v652, 1.442695
    %v655 = vpow.pop %v654
    %v656 = vmul.f32 %v653, 1.442695
    %v657 = vpow.pop %v656
    %v658 = vsel %vm516, %v655, 0.0
    %659 = vadd.xlane.f32.xlu0 %v658
    %v660 = vpop.xlane.xlu0 %659
    %v661 = vsel %vm516, %v657, 0.0
    %662 = vadd.xlane.f32.xlu0 %v661
    %v663 = vpop.xlane.xlu0 %662
    %v664 = vrcp.pop %v660
    %v665 = vrcp.pop %v663
    %v666 = vmul.f32 %v655, %v664
    %v667 = vmul.f32 %v657, %v665
    %669 = vrot.lane.b32.xlu0 %v455, 64
    %v670 = vpop.permute.xlu0 %669
    %v673 = vsel %vm516, %v666, 0
    %675 = vmatpush.msra.mxu0 0.0
    %676 = vmatpush.msra.mxu0 0.0
    %677 = vmatpush.msra.mxu0 0.0
    %678 = vmatpush.msra.mxu0 0.0
    %679 = vmatpush.msra.mxu0 0.0
    %680 = vmatpush.msra.mxu0 0.0
    %681 = vmatpush.msra.mxu0 0.0
    %682 = vmatpush.msra.mxu0 0.0
    %683 = vmatpush.msra.mxu0 0.0
    %684 = vmatpush.msra.mxu0 0.0
    %685 = vmatpush.msra.mxu0 0.0
    %686 = vmatpush.msra.mxu0 0.0
    %687 = vmatpush.msra.mxu0 0.0
    %688 = vmatpush.msra.mxu0 0.0
    %689 = vmatpush.msra.mxu0 0.0
    %690 = vmatpush.msra.mxu0 %v670
    %691 = vmatmul.f32.gmra.mxu0 %v673
    %v692 = vpop.f32.mrf.mxu0
    %v693 = vadd.f32 0.0, %v692
    %694 = vdwg.mxu0
    %696 = vrot.lane.b32.xlu0 %v457, 64
    %v697 = vpop.permute.xlu0 %696
    %v700 = vsel %vm516, %v667, 0
    %702 = vmatpush.msra.mxu0 0.0
    %703 = vmatpush.msra.mxu0 0.0
    %704 = vmatpush.msra.mxu0 0.0
    %705 = vmatpush.msra.mxu0 0.0
    %706 = vmatpush.msra.mxu0 0.0
    %707 = vmatpush.msra.mxu0 0.0
    %708 = vmatpush.msra.mxu0 0.0
    %709 = vmatpush.msra.mxu0 0.0
    %710 = vmatpush.msra.mxu0 0.0
    %711 = vmatpush.msra.mxu0 0.0
    %712 = vmatpush.msra.mxu0 0.0
    %713 = vmatpush.msra.mxu0 0.0
    %714 = vmatpush.msra.mxu0 0.0
    %715 = vmatpush.msra.mxu0 0.0
    %716 = vmatpush.msra.mxu0 0.0
    %717 = vmatpush.msra.mxu0 %v697
    %718 = vmatmul.f32.gmra.mxu0 %v700
    %v719 = vpop.f32.mrf.mxu0
    %v720 = vadd.f32 0.0, %v719
    %721 = vdwg.mxu0
    %v722 = vpack.c.bf16 %v720, %v693
    %v731 = vunpack.c.l.b16 %v176
    %v732 = vunpack.c.l.b16 %v177
    %v733 = vunpack.c.l.b16 %v178
    %v734 = vunpack.c.l.b16 %v179
    %v735 = vunpack.c.l.b16 %v180
    %v736 = vunpack.c.l.b16 %v181
    %v737 = vunpack.c.l.b16 %v182
    %v738 = vunpack.c.l.b16 %v183
    %v739 = vpack.c.b16 %v732, %v731
    %v740 = vpack.c.b16 %v734, %v733
    %v741 = vpack.c.b16 %v736, %v735
    %v742 = vpack.c.b16 %v738, %v737
    %v748 = vsel %vm459, %v722, 0
    %750 = vmatpush.bf16.msra.mxu0 0
    %751 = vmatpush.bf16.msra.mxu0 0
    %752 = vmatpush.bf16.msra.mxu0 0
    %753 = vmatpush.bf16.msra.mxu0 0
    %754 = vmatpush.bf16.msra.mxu0 %v742
    %755 = vmatpush.bf16.msra.mxu0 %v741
    %756 = vmatpush.bf16.msra.mxu0 %v740
    %757 = vmatpush.bf16.msra.mxu0 %v739
    %758 = vmatmul.bf16.gmra.mxu0 %v748
    %v759 = vpop.f32.mrf.mxu0
    %v760 = vadd.f32 0.0, %v759
    %v761 = vpop.f32.mrf.mxu0
    %v762 = vadd.f32 0.0, %v761
    %763 = vdwg.mxu0
    %v772 = vunpack.c.l.b16 %v168
    %v773 = vunpack.c.l.b16 %v169
    %v774 = vunpack.c.l.b16 %v170
    %v775 = vunpack.c.l.b16 %v171
    %v776 = vunpack.c.l.b16 %v172
    %v777 = vunpack.c.l.b16 %v173
    %v778 = vunpack.c.l.b16 %v174
    %v779 = vunpack.c.l.b16 %v175
    %v780 = vpack.c.b16 %v773, %v772
    %v781 = vpack.c.b16 %v775, %v774
    %v782 = vpack.c.b16 %v777, %v776
    %v783 = vpack.c.b16 %v779, %v778
    %v789 = vsel %vm459, %v585, 0
    %791 = vmatpush.bf16.msra.mxu0 0
    %792 = vmatpush.bf16.msra.mxu0 0
    %793 = vmatpush.bf16.msra.mxu0 0
    %794 = vmatpush.bf16.msra.mxu0 0
    %795 = vmatpush.bf16.msra.mxu0 %v783
    %796 = vmatpush.bf16.msra.mxu0 %v782
    %797 = vmatpush.bf16.msra.mxu0 %v781
    %798 = vmatpush.bf16.msra.mxu0 %v780
    %799 = vmatmul.bf16.gmra.mxu0 %v789
    %v800 = vpop.f32.mrf.mxu0
    %v801 = vadd.f32 %v760, %v800
    %v802 = vpop.f32.mrf.mxu0
    %v803 = vadd.f32 %v762, %v802
    %804 = vdwg.mxu0
    %v805 = vld [vmem:[%s5] sm:$0x1]
    %v807 = vperm.slane %v805, 0
    %v809 = vadd.f32 %v801, %v807
    %v810 = vadd.f32 %v803, %v807
    %v811 = vadd.f32 %v134, %v809
    %v812 = vadd.f32 %v135, %v810
    %v813 = vld [vmem:[%s6] sm:$0x1]
    %v814 = vld [vmem:[%s7] sm:$0x1]
    %815 = vadd.xlane.f32.xlu0 %v811
    %v816 = vpop.xlane.xlu0 %815
    %817 = vadd.xlane.f32.xlu0 %v812
    %v818 = vpop.xlane.xlu0 %817
    %v819 = vrcp.pop 128.0
    %v820 = vmul.f32 128.0, %v819
    %v821 = vsub.f32 1.0, %v820
    %v822 = vmul.f32 %v819, %v821
    %v823 = vadd.f32 %v819, %v822
    %vm824 = vweird.f32 %v819
    %v825 = vsel %vm824, %v819, %v823
    %v826 = vmul.f32 %v816, %v825
    %v827 = vmul.f32 %v818, %v825
    %v828 = vsub.f32 %v811, %v826
    %v829 = vsub.f32 %v812, %v827
    %v830 = vmul.f32 %v828, %v828
    %v831 = vmul.f32 %v829, %v829
    %832 = vadd.xlane.f32.xlu0 %v830
    %v833 = vpop.xlane.xlu0 %832
    %834 = vadd.xlane.f32.xlu0 %v831
    %v835 = vpop.xlane.xlu0 %834
    %v836 = vmul.f32 %v833, %v825
    %v837 = vmul.f32 %v835, %v825
    %v838 = vadd.f32 %v836, 1e-05
    %v839 = vadd.f32 %v837, 1e-05
    %v840 = vrsqrt.pop %v838
    %v841 = vmul.f32 %v840, %v838
    %v842 = vmul.f32 %v841, %v840
    %v843 = vmul.f32 0.5, %v842
    %v844 = vsub.f32 1.5, %v843
    %v845 = vmul.f32 %v840, %v844
    %vm846 = vweird.f32 %v838
    %vm847 = vweird.f32 %v840
    %vm848 = vmor %vm846, %vm847
    %v849 = vsel %vm848, %v840, %v845
    %v850 = vrsqrt.pop %v839
    %v851 = vmul.f32 %v850, %v839
    %v852 = vmul.f32 %v851, %v850
    %v853 = vmul.f32 0.5, %v852
    %v854 = vsub.f32 1.5, %v853
    %v855 = vmul.f32 %v850, %v854
    %vm856 = vweird.f32 %v839
    %vm857 = vweird.f32 %v850
    %vm858 = vmor %vm856, %vm857
    %v859 = vsel %vm858, %v850, %v855
    %v860 = vmul.f32 %v828, %v849
    %v861 = vmul.f32 %v829, %v859
    %v863 = vperm.slane %v813, 0
    %v865 = vmul.f32 %v860, %v863
    %v866 = vmul.f32 %v861, %v863
    %v868 = vperm.slane %v814, 0
    %v870 = vadd.f32 %v865, %v868
    %v871 = vadd.f32 %v866, %v868
    %v872 = vpack.c.bf16 %v871, %v870
    %v873 = vld [vmem:[%s9] sm:$0xf]
    %v875 = vperm.slane %v873, 0
    %v876 = vperm.slane %v873, 1
    %v877 = vperm.slane %v873, 2
    %v878 = vperm.slane %v873, 3
    %v915 = vunpack.c.l.b16 %v184
    %v916 = vunpack.c.h.b16 %v184
    %v917 = vunpack.c.l.b16 %v185
    %v918 = vunpack.c.h.b16 %v185
    %v919 = vunpack.c.l.b16 %v186
    %v920 = vunpack.c.h.b16 %v186
    %v921 = vunpack.c.l.b16 %v187
    %v922 = vunpack.c.h.b16 %v187
    %v923 = vunpack.c.l.b16 %v188
    %v924 = vunpack.c.h.b16 %v188
    %v925 = vunpack.c.l.b16 %v189
    %v926 = vunpack.c.h.b16 %v189
    %v927 = vunpack.c.l.b16 %v190
    %v928 = vunpack.c.h.b16 %v190
    %v929 = vunpack.c.l.b16 %v191
    %v930 = vunpack.c.h.b16 %v191
    %v931 = vunpack.c.l.b16 %v192
    %v932 = vunpack.c.h.b16 %v192
    %v933 = vunpack.c.l.b16 %v193
    %v934 = vunpack.c.h.b16 %v193
    %v935 = vunpack.c.l.b16 %v194
    %v936 = vunpack.c.h.b16 %v194
    %v937 = vunpack.c.l.b16 %v195
    %v938 = vunpack.c.h.b16 %v195
    %v939 = vunpack.c.l.b16 %v196
    %v940 = vunpack.c.h.b16 %v196
    %v941 = vunpack.c.l.b16 %v197
    %v942 = vunpack.c.h.b16 %v197
    %v943 = vunpack.c.l.b16 %v198
    %v944 = vunpack.c.h.b16 %v198
    %v945 = vunpack.c.l.b16 %v199
    %v946 = vunpack.c.h.b16 %v199
    %v947 = vunpack.c.l.b16 %v200
    %v948 = vunpack.c.h.b16 %v200
    %v949 = vunpack.c.l.b16 %v201
    %v950 = vunpack.c.h.b16 %v201
    %v951 = vunpack.c.l.b16 %v202
    %v952 = vunpack.c.h.b16 %v202
    %v953 = vunpack.c.l.b16 %v203
    %v954 = vunpack.c.h.b16 %v203
    %v955 = vunpack.c.l.b16 %v204
    %v956 = vunpack.c.h.b16 %v204
    %v957 = vunpack.c.l.b16 %v205
    %v958 = vunpack.c.h.b16 %v205
    %v959 = vunpack.c.l.b16 %v206
    %v960 = vunpack.c.h.b16 %v206
    %v961 = vunpack.c.l.b16 %v207
    %v962 = vunpack.c.h.b16 %v207
    %v963 = vunpack.c.l.b16 %v208
    %v964 = vunpack.c.h.b16 %v208
    %v965 = vunpack.c.l.b16 %v209
    %v966 = vunpack.c.h.b16 %v209
    %v967 = vunpack.c.l.b16 %v210
    %v968 = vunpack.c.h.b16 %v210
    %v969 = vunpack.c.l.b16 %v211
    %v970 = vunpack.c.h.b16 %v211
    %v971 = vunpack.c.l.b16 %v212
    %v972 = vunpack.c.h.b16 %v212
    %v973 = vunpack.c.l.b16 %v213
    %v974 = vunpack.c.h.b16 %v213
    %v975 = vunpack.c.l.b16 %v214
    %v976 = vunpack.c.h.b16 %v214
    %v977 = vunpack.c.l.b16 %v215
    %v978 = vunpack.c.h.b16 %v215
    %v979 = vpack.c.b16 %v919, %v915
    %v980 = vpack.c.b16 %v920, %v916
    %v981 = vpack.c.b16 %v921, %v917
    %v982 = vpack.c.b16 %v922, %v918
    %v983 = vpack.c.b16 %v927, %v923
    %v984 = vpack.c.b16 %v928, %v924
    %v985 = vpack.c.b16 %v929, %v925
    %v986 = vpack.c.b16 %v930, %v926
    %v987 = vpack.c.b16 %v935, %v931
    %v988 = vpack.c.b16 %v936, %v932
    %v989 = vpack.c.b16 %v937, %v933
    %v990 = vpack.c.b16 %v938, %v934
    %v991 = vpack.c.b16 %v943, %v939
    %v992 = vpack.c.b16 %v944, %v940
    %v993 = vpack.c.b16 %v945, %v941
    %v994 = vpack.c.b16 %v946, %v942
    %v995 = vpack.c.b16 %v951, %v947
    %v996 = vpack.c.b16 %v952, %v948
    %v997 = vpack.c.b16 %v953, %v949
    %v998 = vpack.c.b16 %v954, %v950
    %v999 = vpack.c.b16 %v959, %v955
    %v1000 = vpack.c.b16 %v960, %v956
    %v1001 = vpack.c.b16 %v961, %v957
    %v1002 = vpack.c.b16 %v962, %v958
    %v1003 = vpack.c.b16 %v967, %v963
    %v1004 = vpack.c.b16 %v968, %v964
    %v1005 = vpack.c.b16 %v969, %v965
    %v1006 = vpack.c.b16 %v970, %v966
    %v1007 = vpack.c.b16 %v975, %v971
    %v1008 = vpack.c.b16 %v976, %v972
    %v1009 = vpack.c.b16 %v977, %v973
    %v1010 = vpack.c.b16 %v978, %v974
    %1043 = vmatpush.bf16.msra.mxu0 %v1007
    %1044 = vmatpush.bf16.msra.mxu0 %v1003
    %1045 = vmatpush.bf16.msra.mxu0 %v999
    %1046 = vmatpush.bf16.msra.mxu0 %v995
    %1047 = vmatpush.bf16.msra.mxu0 %v991
    %1048 = vmatpush.bf16.msra.mxu0 %v987
    %1049 = vmatpush.bf16.msra.mxu0 %v983
    %1050 = vmatpush.bf16.msra.mxu0 %v979
    %1051 = vmatmul.bf16.gmra.mxu0 %v872
    %v1052 = vpop.f32.mrf.mxu0
    %v1053 = vadd.f32 %v875, %v1052
    %v1054 = vpop.f32.mrf.mxu0
    %v1055 = vadd.f32 %v875, %v1054
    %1056 = vdwg.mxu0
    %1057 = vmatpush.bf16.msra.mxu0 %v1008
    %1058 = vmatpush.bf16.msra.mxu0 %v1004
    %1059 = vmatpush.bf16.msra.mxu0 %v1000
    %1060 = vmatpush.bf16.msra.mxu0 %v996
    %1061 = vmatpush.bf16.msra.mxu0 %v992
    %1062 = vmatpush.bf16.msra.mxu0 %v988
    %1063 = vmatpush.bf16.msra.mxu0 %v984
    %1064 = vmatpush.bf16.msra.mxu0 %v980
    %1065 = vmatmul.bf16.gmra.mxu0 %v872
    %v1066 = vpop.f32.mrf.mxu0
    %v1067 = vadd.f32 %v876, %v1066
    %v1068 = vpop.f32.mrf.mxu0
    %v1069 = vadd.f32 %v876, %v1068
    %1070 = vdwg.mxu0
    %1071 = vmatpush.bf16.msra.mxu0 %v1009
    %1072 = vmatpush.bf16.msra.mxu0 %v1005
    %1073 = vmatpush.bf16.msra.mxu0 %v1001
    %1074 = vmatpush.bf16.msra.mxu0 %v997
    %1075 = vmatpush.bf16.msra.mxu0 %v993
    %1076 = vmatpush.bf16.msra.mxu0 %v989
    %1077 = vmatpush.bf16.msra.mxu0 %v985
    %1078 = vmatpush.bf16.msra.mxu0 %v981
    %1079 = vmatmul.bf16.gmra.mxu0 %v872
    %v1080 = vpop.f32.mrf.mxu0
    %v1081 = vadd.f32 %v877, %v1080
    %v1082 = vpop.f32.mrf.mxu0
    %v1083 = vadd.f32 %v877, %v1082
    %1084 = vdwg.mxu0
    %1085 = vmatpush.bf16.msra.mxu0 %v1010
    %1086 = vmatpush.bf16.msra.mxu0 %v1006
    %1087 = vmatpush.bf16.msra.mxu0 %v1002
    %1088 = vmatpush.bf16.msra.mxu0 %v998
    %1089 = vmatpush.bf16.msra.mxu0 %v994
    %1090 = vmatpush.bf16.msra.mxu0 %v990
    %1091 = vmatpush.bf16.msra.mxu0 %v986
    %1092 = vmatpush.bf16.msra.mxu0 %v982
    %1093 = vmatmul.bf16.gmra.mxu0 %v872
    %v1094 = vpop.f32.mrf.mxu0
    %v1095 = vadd.f32 %v878, %v1094
    %v1096 = vpop.f32.mrf.mxu0
    %v1097 = vadd.f32 %v878, %v1096
    %1098 = vdwg.mxu0
    %v1099 = vmax.f32 %v1053, 0.0
    %v1100 = vmax.f32 %v1067, 0.0
    %v1101 = vmax.f32 %v1081, 0.0
    %v1102 = vmax.f32 %v1095, 0.0
    %v1103 = vmax.f32 %v1055, 0.0
    %v1104 = vmax.f32 %v1069, 0.0
    %v1105 = vmax.f32 %v1083, 0.0
    %v1106 = vmax.f32 %v1097, 0.0
    %v1107 = vpack.c.bf16 %v1103, %v1099
    %v1108 = vpack.c.bf16 %v1104, %v1100
    %v1109 = vpack.c.bf16 %v1105, %v1101
    %v1110 = vpack.c.bf16 %v1106, %v1102
    %v1111 = vld [vmem:[%s11] sm:$0x1]
    %v1113 = vperm.slane %v1111, 0
    %v1179 = vunpack.c.l.b16 %v216
    %v1180 = vunpack.c.l.b16 %v217
    %v1181 = vunpack.c.l.b16 %v218
    %v1182 = vunpack.c.l.b16 %v219
    %v1183 = vunpack.c.l.b16 %v220
    %v1184 = vunpack.c.l.b16 %v221
    %v1185 = vunpack.c.l.b16 %v222
    %v1186 = vunpack.c.l.b16 %v223
    %v1187 = vunpack.c.l.b16 %v224
    %v1188 = vunpack.c.l.b16 %v225
    %v1189 = vunpack.c.l.b16 %v226
    %v1190 = vunpack.c.l.b16 %v227
    %v1191 = vunpack.c.l.b16 %v228
    %v1192 = vunpack.c.l.b16 %v229
    %v1193 = vunpack.c.l.b16 %v230
    %v1194 = vunpack.c.l.b16 %v231
    %v1195 = vunpack.c.l.b16 %v232
    %v1196 = vunpack.c.l.b16 %v233
    %v1197 = vunpack.c.l.b16 %v234
    %v1198 = vunpack.c.l.b16 %v235
    %v1199 = vunpack.c.l.b16 %v236
    %v1200 = vunpack.c.l.b16 %v237
    %v1201 = vunpack.c.l.b16 %v238
    %v1202 = vunpack.c.l.b16 %v239
    %v1203 = vunpack.c.l.b16 %v240
    %v1204 = vunpack.c.l.b16 %v241
    %v1205 = vunpack.c.l.b16 %v242
    %v1206 = vunpack.c.l.b16 %v243
    %v1207 = vunpack.c.l.b16 %v244
    %v1208 = vunpack.c.l.b16 %v245
    %v1209 = vunpack.c.l.b16 %v246
    %v1210 = vunpack.c.l.b16 %v247
    %v1211 = vunpack.c.l.b16 %v248
    %v1212 = vunpack.c.l.b16 %v249
    %v1213 = vunpack.c.l.b16 %v250
    %v1214 = vunpack.c.l.b16 %v251
    %v1215 = vunpack.c.l.b16 %v252
    %v1216 = vunpack.c.l.b16 %v253
    %v1217 = vunpack.c.l.b16 %v254
    %v1218 = vunpack.c.l.b16 %v255
    %v1219 = vunpack.c.l.b16 %v256
    %v1220 = vunpack.c.l.b16 %v257
    %v1221 = vunpack.c.l.b16 %v258
    %v1222 = vunpack.c.l.b16 %v259
    %v1223 = vunpack.c.l.b16 %v260
    %v1224 = vunpack.c.l.b16 %v261
    %v1225 = vunpack.c.l.b16 %v262
    %v1226 = vunpack.c.l.b16 %v263
    %v1227 = vunpack.c.l.b16 %v264
    %v1228 = vunpack.c.l.b16 %v265
    %v1229 = vunpack.c.l.b16 %v266
    %v1230 = vunpack.c.l.b16 %v267
    %v1231 = vunpack.c.l.b16 %v268
    %v1232 = vunpack.c.l.b16 %v269
    %v1233 = vunpack.c.l.b16 %v270
    %v1234 = vunpack.c.l.b16 %v271
    %v1235 = vunpack.c.l.b16 %v272
    %v1236 = vunpack.c.l.b16 %v273
    %v1237 = vunpack.c.l.b16 %v274
    %v1238 = vunpack.c.l.b16 %v275
    %v1239 = vunpack.c.l.b16 %v276
    %v1240 = vunpack.c.l.b16 %v277
    %v1241 = vunpack.c.l.b16 %v278
    %v1242 = vunpack.c.l.b16 %v279
    %v1243 = vpack.c.b16 %v1180, %v1179
    %v1244 = vpack.c.b16 %v1182, %v1181
    %v1245 = vpack.c.b16 %v1184, %v1183
    %v1246 = vpack.c.b16 %v1186, %v1185
    %v1247 = vpack.c.b16 %v1188, %v1187
    %v1248 = vpack.c.b16 %v1190, %v1189
    %v1249 = vpack.c.b16 %v1192, %v1191
    %v1250 = vpack.c.b16 %v1194, %v1193
    %v1251 = vpack.c.b16 %v1196, %v1195
    %v1252 = vpack.c.b16 %v1198, %v1197
    %v1253 = vpack.c.b16 %v1200, %v1199
    %v1254 = vpack.c.b16 %v1202, %v1201
    %v1255 = vpack.c.b16 %v1204, %v1203
    %v1256 = vpack.c.b16 %v1206, %v1205
    %v1257 = vpack.c.b16 %v1208, %v1207
    %v1258 = vpack.c.b16 %v1210, %v1209
    %v1259 = vpack.c.b16 %v1212, %v1211
    %v1260 = vpack.c.b16 %v1214, %v1213
    %v1261 = vpack.c.b16 %v1216, %v1215
    %v1262 = vpack.c.b16 %v1218, %v1217
    %v1263 = vpack.c.b16 %v1220, %v1219
    %v1264 = vpack.c.b16 %v1222, %v1221
    %v1265 = vpack.c.b16 %v1224, %v1223
    %v1266 = vpack.c.b16 %v1226, %v1225
    %v1267 = vpack.c.b16 %v1228, %v1227
    %v1268 = vpack.c.b16 %v1230, %v1229
    %v1269 = vpack.c.b16 %v1232, %v1231
    %v1270 = vpack.c.b16 %v1234, %v1233
    %v1271 = vpack.c.b16 %v1236, %v1235
    %v1272 = vpack.c.b16 %v1238, %v1237
    %v1273 = vpack.c.b16 %v1240, %v1239
    %v1274 = vpack.c.b16 %v1242, %v1241
    %1307 = vmatpush.bf16.msra.mxu0 %v1250
    %1308 = vmatpush.bf16.msra.mxu0 %v1249
    %1309 = vmatpush.bf16.msra.mxu0 %v1248
    %1310 = vmatpush.bf16.msra.mxu0 %v1247
    %1311 = vmatpush.bf16.msra.mxu0 %v1246
    %1312 = vmatpush.bf16.msra.mxu0 %v1245
    %1313 = vmatpush.bf16.msra.mxu0 %v1244
    %1314 = vmatpush.bf16.msra.mxu0 %v1243
    %1315 = vmatmul.bf16.gmra.mxu0 %v1107
    %v1316 = vpop.f32.mrf.mxu0
    %v1317 = vadd.f32 %v1113, %v1316
    %v1318 = vpop.f32.mrf.mxu0
    %v1319 = vadd.f32 %v1113, %v1318
    %1320 = vdwg.mxu0
    %1321 = vmatpush.bf16.msra.mxu0 %v1258
    %1322 = vmatpush.bf16.msra.mxu0 %v1257
    %1323 = vmatpush.bf16.msra.mxu0 %v1256
    %1324 = vmatpush.bf16.msra.mxu0 %v1255
    %1325 = vmatpush.bf16.msra.mxu0 %v1254
    %1326 = vmatpush.bf16.msra.mxu0 %v1253
    %1327 = vmatpush.bf16.msra.mxu0 %v1252
    %1328 = vmatpush.bf16.msra.mxu0 %v1251
    %1329 = vmatmul.bf16.gmra.mxu0 %v1108
    %v1330 = vpop.f32.mrf.mxu0
    %v1331 = vadd.f32 %v1317, %v1330
    %v1332 = vpop.f32.mrf.mxu0
    %v1333 = vadd.f32 %v1319, %v1332
    %1334 = vdwg.mxu0
    %1335 = vmatpush.bf16.msra.mxu0 %v1266
    %1336 = vmatpush.bf16.msra.mxu0 %v1265
    %1337 = vmatpush.bf16.msra.mxu0 %v1264
    %1338 = vmatpush.bf16.msra.mxu0 %v1263
    %1339 = vmatpush.bf16.msra.mxu0 %v1262
    %1340 = vmatpush.bf16.msra.mxu0 %v1261
    %1341 = vmatpush.bf16.msra.mxu0 %v1260
    %1342 = vmatpush.bf16.msra.mxu0 %v1259
    %1343 = vmatmul.bf16.gmra.mxu0 %v1109
    %v1344 = vpop.f32.mrf.mxu0
    %v1345 = vadd.f32 %v1331, %v1344
    %v1346 = vpop.f32.mrf.mxu0
    %v1347 = vadd.f32 %v1333, %v1346
    %1348 = vdwg.mxu0
    %1349 = vmatpush.bf16.msra.mxu0 %v1274
    %1350 = vmatpush.bf16.msra.mxu0 %v1273
    %1351 = vmatpush.bf16.msra.mxu0 %v1272
    %1352 = vmatpush.bf16.msra.mxu0 %v1271
    %1353 = vmatpush.bf16.msra.mxu0 %v1270
    %1354 = vmatpush.bf16.msra.mxu0 %v1269
    %1355 = vmatpush.bf16.msra.mxu0 %v1268
    %1356 = vmatpush.bf16.msra.mxu0 %v1267
    %1357 = vmatmul.bf16.gmra.mxu0 %v1110
    %v1358 = vpop.f32.mrf.mxu0
    %v1359 = vadd.f32 %v1345, %v1358
    %v1360 = vpop.f32.mrf.mxu0
    %v1361 = vadd.f32 %v1347, %v1360
    %1362 = vdwg.mxu0
    %v1363 = vadd.f32 %v870, %v1359
    %v1364 = vadd.f32 %v871, %v1361
    %v1365 = vld [vmem:[%s12] sm:$0x1]
    %v1366 = vld [vmem:[%s13] sm:$0x1]
    %1367 = vadd.xlane.f32.xlu0 %v1363
    %v1368 = vpop.xlane.xlu0 %1367
    %1369 = vadd.xlane.f32.xlu0 %v1364
    %v1370 = vpop.xlane.xlu0 %1369
    %v1371 = vmul.f32 %v1368, %v825
    %v1372 = vmul.f32 %v1370, %v825
    %v1373 = vsub.f32 %v1363, %v1371
    %v1374 = vsub.f32 %v1364, %v1372
    %v1375 = vmul.f32 %v1373, %v1373
    %v1376 = vmul.f32 %v1374, %v1374
    %1377 = vadd.xlane.f32.xlu0 %v1375
    %v1378 = vpop.xlane.xlu0 %1377
    %1379 = vadd.xlane.f32.xlu0 %v1376
    %v1380 = vpop.xlane.xlu0 %1379
    %v1381 = vmul.f32 %v1378, %v825
    %v1382 = vmul.f32 %v1380, %v825
    %v1383 = vadd.f32 %v1381, 1e-05
    %v1384 = vadd.f32 %v1382, 1e-05
    %v1385 = vrsqrt.pop %v1383
    %v1386 = vmul.f32 %v1385, %v1383
    %v1387 = vmul.f32 %v1386, %v1385
    %v1388 = vmul.f32 0.5, %v1387
    %v1389 = vsub.f32 1.5, %v1388
    %v1390 = vmul.f32 %v1385, %v1389
    %vm1391 = vweird.f32 %v1383
    %vm1392 = vweird.f32 %v1385
    %vm1393 = vmor %vm1391, %vm1392
    %v1394 = vsel %vm1393, %v1385, %v1390
    %v1395 = vrsqrt.pop %v1384
    %v1396 = vmul.f32 %v1395, %v1384
    %v1397 = vmul.f32 %v1396, %v1395
    %v1398 = vmul.f32 0.5, %v1397
    %v1399 = vsub.f32 1.5, %v1398
    %v1400 = vmul.f32 %v1395, %v1399
    %vm1401 = vweird.f32 %v1384
    %vm1402 = vweird.f32 %v1395
    %vm1403 = vmor %vm1401, %vm1402
    %v1404 = vsel %vm1403, %v1395, %v1400
    %v1405 = vmul.f32 %v1373, %v1394
    %v1406 = vmul.f32 %v1374, %v1404
    %v1408 = vperm.slane %v1365, 0
    %v1410 = vmul.f32 %v1405, %v1408
    %v1411 = vmul.f32 %v1406, %v1408
    %v1413 = vperm.slane %v1366, 0
    %v1415 = vadd.f32 %v1410, %v1413
    %v1416 = vadd.f32 %v1411, %v1413
    %s1417 = scalar_lea.vmem [#allocation2], 192
    %v1418 = vld [vmem:[%s1417] sm:$0xff]
    %v1419 = vld [vmem:[%s1417 + $0x8] sm:$0xf]
    %v1420 = vld [vmem:[%s1417 + $0xc] sm:$0xff]
    %v1421 = vld [vmem:[%s1417 + $0x14] sm:$0xf]
    %v1422 = vld [vmem:[%s1417 + $0x18] sm:$0xff]
    %v1423 = vld [vmem:[%s1417 + $0x20] sm:$0xf]
    %v1424 = vld [vmem:[%s1417 + $0x24] sm:$0xff]
    %v1425 = vld [vmem:[%s1417 + $0x2c] sm:$0xf]
    %v1426 = vld [vmem:[%s1417 + $0x30] sm:$0xff]
    %v1427 = vld [vmem:[%s1417 + $0x38] sm:$0xf]
    %v1428 = vld [vmem:[%s1417 + $0x3c] sm:$0xff]
    %v1429 = vld [vmem:[%s1417 + $0x44] sm:$0xf]
    %v1430 = vld [vmem:[%s1417 + $0x48] sm:$0xff]
    %v1431 = vld [vmem:[%s1417 + $0x50] sm:$0xf]
    %v1432 = vld [vmem:[%s1417 + $0x54] sm:$0xff]
    %v1433 = vld [vmem:[%s1417 + $0x5c] sm:$0xf]
    %v1434 = vld [vmem:[%s1417 + $0x60] sm:$0xff]
    %v1435 = vld [vmem:[%s1417 + $0x68] sm:$0xf]
    %v1436 = vld [vmem:[%s1417 + $0x6c] sm:$0xff]
    %v1437 = vld [vmem:[%s1417 + $0x74] sm:$0xf]
    %v1438 = vld [vmem:[%s1417 + $0x78] sm:$0xff]
    %v1439 = vld [vmem:[%s1417 + $0x80] sm:$0xf]
    %v1440 = vld [vmem:[%s1417 + $0x84] sm:$0xff]
    %v1441 = vld [vmem:[%s1417 + $0x8c] sm:$0xf]
    %v1442 = vld [vmem:[%s1417 + $0x90] sm:$0xff]
    %v1443 = vld [vmem:[%s1417 + $0x98] sm:$0xf]
    %v1444 = vld [vmem:[%s1417 + $0x9c] sm:$0xff]
    %v1445 = vld [vmem:[%s1417 + $0xa4] sm:$0xf]
    %v1446 = vld [vmem:[%s1417 + $0xa8] sm:$0xff]
    %v1447 = vld [vmem:[%s1417 + $0xb0] sm:$0xf]
    %v1448 = vld [vmem:[%s1417 + $0xb4] sm:$0xff]
    %v1449 = vld [vmem:[%s1417 + $0xbc] sm:$0xf]
    %s1450 = scalar_lea.vmem %s4, 64
    %v1451 = vld [vmem:[%s1450] sm:$0xf]
    %v1452 = vld [vmem:[%s1450 + $0x4] sm:$0xf]
    %v1453 = vld [vmem:[%s1450 + $0x8] sm:$0xf]
    %v1454 = vld [vmem:[%s1450 + $0xc] sm:$0xf]
    %v1455 = vld [vmem:[%s1450 + $0x10] sm:$0xf]
    %v1456 = vld [vmem:[%s1450 + $0x14] sm:$0xf]
    %v1457 = vld [vmem:[%s1450 + $0x18] sm:$0xf]
    %v1458 = vld [vmem:[%s1450 + $0x1c] sm:$0xf]
    %v1459 = vld [vmem:[%s1450 + $0x20] sm:$0xf]
    %v1460 = vld [vmem:[%s1450 + $0x24] sm:$0xf]
    %v1461 = vld [vmem:[%s1450 + $0x28] sm:$0xf]
    %v1462 = vld [vmem:[%s1450 + $0x2c] sm:$0xf]
    %v1463 = vld [vmem:[%s1450 + $0x30] sm:$0xf]
    %v1464 = vld [vmem:[%s1450 + $0x34] sm:$0xf]
    %v1465 = vld [vmem:[%s1450 + $0x38] sm:$0xf]
    %v1466 = vld [vmem:[%s1450 + $0x3c] sm:$0xf]
    %s1467 = scalar_lea.vmem [#allocation5], 256
    %v1468 = vld [vmem:[%s1467] sm:$0xff]
    %v1469 = vld [vmem:[%s1467 + $0x8] sm:$0xff]
    %v1470 = vld [vmem:[%s1467 + $0x10] sm:$0xff]
    %v1471 = vld [vmem:[%s1467 + $0x18] sm:$0xff]
    %v1472 = vld [vmem:[%s1467 + $0x20] sm:$0xff]
    %v1473 = vld [vmem:[%s1467 + $0x28] sm:$0xff]
    %v1474 = vld [vmem:[%s1467 + $0x30] sm:$0xff]
    %v1475 = vld [vmem:[%s1467 + $0x38] sm:$0xff]
    %v1476 = vld [vmem:[%s1467 + $0x40] sm:$0xff]
    %v1477 = vld [vmem:[%s1467 + $0x48] sm:$0xff]
    %v1478 = vld [vmem:[%s1467 + $0x50] sm:$0xff]
    %v1479 = vld [vmem:[%s1467 + $0x58] sm:$0xff]
    %v1480 = vld [vmem:[%s1467 + $0x60] sm:$0xff]
    %v1481 = vld [vmem:[%s1467 + $0x68] sm:$0xff]
    %v1482 = vld [vmem:[%s1467 + $0x70] sm:$0xff]
    %v1483 = vld [vmem:[%s1467 + $0x78] sm:$0xff]
    %v1484 = vld [vmem:[%s1467 + $0x80] sm:$0xff]
    %v1485 = vld [vmem:[%s1467 + $0x88] sm:$0xff]
    %v1486 = vld [vmem:[%s1467 + $0x90] sm:$0xff]
    %v1487 = vld [vmem:[%s1467 + $0x98] sm:$0xff]
    %v1488 = vld [vmem:[%s1467 + $0xa0] sm:$0xff]
    %v1489 = vld [vmem:[%s1467 + $0xa8] sm:$0xff]
    %v1490 = vld [vmem:[%s1467 + $0xb0] sm:$0xff]
    %v1491 = vld [vmem:[%s1467 + $0xb8] sm:$0xff]
    %v1492 = vld [vmem:[%s1467 + $0xc0] sm:$0xff]
    %v1493 = vld [vmem:[%s1467 + $0xc8] sm:$0xff]
    %v1494 = vld [vmem:[%s1467 + $0xd0] sm:$0xff]
    %v1495 = vld [vmem:[%s1467 + $0xd8] sm:$0xff]
    %v1496 = vld [vmem:[%s1467 + $0xe0] sm:$0xff]
    %v1497 = vld [vmem:[%s1467 + $0xe8] sm:$0xff]
    %v1498 = vld [vmem:[%s1467 + $0xf0] sm:$0xff]
    %v1499 = vld [vmem:[%s1467 + $0xf8] sm:$0xff]
    %s1500 = scalar_lea.vmem [#allocation7], 256
    %v1501 = vld [vmem:[%s1500] sm:$0xf]
    %v1502 = vld [vmem:[%s1500 + $0x4] sm:$0xf]
    %v1503 = vld [vmem:[%s1500 + $0x8] sm:$0xf]
    %v1504 = vld [vmem:[%s1500 + $0xc] sm:$0xf]
    %v1505 = vld [vmem:[%s1500 + $0x10] sm:$0xf]
    %v1506 = vld [vmem:[%s1500 + $0x14] sm:$0xf]
    %v1507 = vld [vmem:[%s1500 + $0x18] sm:$0xf]
    %v1508 = vld [vmem:[%s1500 + $0x1c] sm:$0xf]
    %v1509 = vld [vmem:[%s1500 + $0x20] sm:$0xf]
    %v1510 = vld [vmem:[%s1500 + $0x24] sm:$0xf]
    %v1511 = vld [vmem:[%s1500 + $0x28] sm:$0xf]
    %v1512 = vld [vmem:[%s1500 + $0x2c] sm:$0xf]
    %v1513 = vld [vmem:[%s1500 + $0x30] sm:$0xf]
    %v1514 = vld [vmem:[%s1500 + $0x34] sm:$0xf]
    %v1515 = vld [vmem:[%s1500 + $0x38] sm:$0xf]
    %v1516 = vld [vmem:[%s1500 + $0x3c] sm:$0xf]
    %v1517 = vld [vmem:[%s1500 + $0x40] sm:$0xf]
    %v1518 = vld [vmem:[%s1500 + $0x44] sm:$0xf]
    %v1519 = vld [vmem:[%s1500 + $0x48] sm:$0xf]
    %v1520 = vld [vmem:[%s1500 + $0x4c] sm:$0xf]
    %v1521 = vld [vmem:[%s1500 + $0x50] sm:$0xf]
    %v1522 = vld [vmem:[%s1500 + $0x54] sm:$0xf]
    %v1523 = vld [vmem:[%s1500 + $0x58] sm:$0xf]
    %v1524 = vld [vmem:[%s1500 + $0x5c] sm:$0xf]
    %v1525 = vld [vmem:[%s1500 + $0x60] sm:$0xf]
    %v1526 = vld [vmem:[%s1500 + $0x64] sm:$0xf]
    %v1527 = vld [vmem:[%s1500 + $0x68] sm:$0xf]
    %v1528 = vld [vmem:[%s1500 + $0x6c] sm:$0xf]
    %v1529 = vld [vmem:[%s1500 + $0x70] sm:$0xf]
    %v1530 = vld [vmem:[%s1500 + $0x74] sm:$0xf]
    %v1531 = vld [vmem:[%s1500 + $0x78] sm:$0xf]
    %v1532 = vld [vmem:[%s1500 + $0x7c] sm:$0xf]
    %v1533 = vld [vmem:[%s1500 + $0x80] sm:$0xf]
    %v1534 = vld [vmem:[%s1500 + $0x84] sm:$0xf]
    %v1535 = vld [vmem:[%s1500 + $0x88] sm:$0xf]
    %v1536 = vld [vmem:[%s1500 + $0x8c] sm:$0xf]
    %v1537 = vld [vmem:[%s1500 + $0x90] sm:$0xf]
    %v1538 = vld [vmem:[%s1500 + $0x94] sm:$0xf]
    %v1539 = vld [vmem:[%s1500 + $0x98] sm:$0xf]
    %v1540 = vld [vmem:[%s1500 + $0x9c] sm:$0xf]
    %v1541 = vld [vmem:[%s1500 + $0xa0] sm:$0xf]
    %v1542 = vld [vmem:[%s1500 + $0xa4] sm:$0xf]
    %v1543 = vld [vmem:[%s1500 + $0xa8] sm:$0xf]
    %v1544 = vld [vmem:[%s1500 + $0xac] sm:$0xf]
    %v1545 = vld [vmem:[%s1500 + $0xb0] sm:$0xf]
    %v1546 = vld [vmem:[%s1500 + $0xb4] sm:$0xf]
    %v1547 = vld [vmem:[%s1500 + $0xb8] sm:$0xf]
    %v1548 = vld [vmem:[%s1500 + $0xbc] sm:$0xf]
    %v1549 = vld [vmem:[%s1500 + $0xc0] sm:$0xf]
    %v1550 = vld [vmem:[%s1500 + $0xc4] sm:$0xf]
    %v1551 = vld [vmem:[%s1500 + $0xc8] sm:$0xf]
    %v1552 = vld [vmem:[%s1500 + $0xcc] sm:$0xf]
    %v1553 = vld [vmem:[%s1500 + $0xd0] sm:$0xf]
    %v1554 = vld [vmem:[%s1500 + $0xd4] sm:$0xf]
    %v1555 = vld [vmem:[%s1500 + $0xd8] sm:$0xf]
    %v1556 = vld [vmem:[%s1500 + $0xdc] sm:$0xf]
    %v1557 = vld [vmem:[%s1500 + $0xe0] sm:$0xf]
    %v1558 = vld [vmem:[%s1500 + $0xe4] sm:$0xf]
    %v1559 = vld [vmem:[%s1500 + $0xe8] sm:$0xf]
    %v1560 = vld [vmem:[%s1500 + $0xec] sm:$0xf]
    %v1561 = vld [vmem:[%s1500 + $0xf0] sm:$0xf]
    %v1562 = vld [vmem:[%s1500 + $0xf4] sm:$0xf]
    %v1563 = vld [vmem:[%s1500 + $0xf8] sm:$0xf]
    %v1564 = vld [vmem:[%s1500 + $0xfc] sm:$0xf]
    %v1565 = vpack.c.bf16 %v1416, %v1415
    %s1566 = scalar_lea.vmem %s3, 3
    %v1567 = vld [vmem:[%s1566] sm:$0x7]
    %v1569 = vperm.slane %v1567, 0
    %v1570 = vperm.slane %v1567, 1
    %v1571 = vperm.slane %v1567, 2
    %v1607 = vunpack.c.l.b16 %v1418
    %v1608 = vunpack.c.h.b16 %v1418
    %v1609 = vunpack.c.l.b16 %v1419
    %v1610 = vunpack.c.l.b16 %v1420
    %v1611 = vunpack.c.h.b16 %v1420
    %v1612 = vunpack.c.l.b16 %v1421
    %v1613 = vunpack.c.l.b16 %v1422
    %v1614 = vunpack.c.h.b16 %v1422
    %v1615 = vunpack.c.l.b16 %v1423
    %v1616 = vunpack.c.l.b16 %v1424
    %v1617 = vunpack.c.h.b16 %v1424
    %v1618 = vunpack.c.l.b16 %v1425
    %v1619 = vunpack.c.l.b16 %v1426
    %v1620 = vunpack.c.h.b16 %v1426
    %v1621 = vunpack.c.l.b16 %v1427
    %v1622 = vunpack.c.l.b16 %v1428
    %v1623 = vunpack.c.h.b16 %v1428
    %v1624 = vunpack.c.l.b16 %v1429
    %v1625 = vunpack.c.l.b16 %v1430
    %v1626 = vunpack.c.h.b16 %v1430
    %v1627 = vunpack.c.l.b16 %v1431
    %v1628 = vunpack.c.l.b16 %v1432
    %v1629 = vunpack.c.h.b16 %v1432
    %v1630 = vunpack.c.l.b16 %v1433
    %v1631 = vunpack.c.l.b16 %v1434
    %v1632 = vunpack.c.h.b16 %v1434
    %v1633 = vunpack.c.l.b16 %v1435
    %v1634 = vunpack.c.l.b16 %v1436
    %v1635 = vunpack.c.h.b16 %v1436
    %v1636 = vunpack.c.l.b16 %v1437
    %v1637 = vunpack.c.l.b16 %v1438
    %v1638 = vunpack.c.h.b16 %v1438
    %v1639 = vunpack.c.l.b16 %v1439
    %v1640 = vunpack.c.l.b16 %v1440
    %v1641 = vunpack.c.h.b16 %v1440
    %v1642 = vunpack.c.l.b16 %v1441
    %v1643 = vunpack.c.l.b16 %v1442
    %v1644 = vunpack.c.h.b16 %v1442
    %v1645 = vunpack.c.l.b16 %v1443
    %v1646 = vunpack.c.l.b16 %v1444
    %v1647 = vunpack.c.h.b16 %v1444
    %v1648 = vunpack.c.l.b16 %v1445
    %v1649 = vunpack.c.l.b16 %v1446
    %v1650 = vunpack.c.h.b16 %v1446
    %v1651 = vunpack.c.l.b16 %v1447
    %v1652 = vunpack.c.l.b16 %v1448
    %v1653 = vunpack.c.h.b16 %v1448
    %v1654 = vunpack.c.l.b16 %v1449
    %v1655 = vpack.c.b16 %v1610, %v1607
    %v1656 = vpack.c.b16 %v1611, %v1608
    %v1657 = vpack.c.b16 %v1612, %v1609
    %v1658 = vpack.c.b16 %v1616, %v1613
    %v1659 = vpack.c.b16 %v1617, %v1614
    %v1660 = vpack.c.b16 %v1618, %v1615
    %v1661 = vpack.c.b16 %v1622, %v1619
    %v1662 = vpack.c.b16 %v1623, %v1620
    %v1663 = vpack.c.b16 %v1624, %v1621
    %v1664 = vpack.c.b16 %v1628, %v1625
    %v1665 = vpack.c.b16 %v1629, %v1626
    %v1666 = vpack.c.b16 %v1630, %v1627
    %v1667 = vpack.c.b16 %v1634, %v1631
    %v1668 = vpack.c.b16 %v1635, %v1632
    %v1669 = vpack.c.b16 %v1636, %v1633
    %v1670 = vpack.c.b16 %v1640, %v1637
    %v1671 = vpack.c.b16 %v1641, %v1638
    %v1672 = vpack.c.b16 %v1642, %v1639
    %v1673 = vpack.c.b16 %v1646, %v1643
    %v1674 = vpack.c.b16 %v1647, %v1644
    %v1675 = vpack.c.b16 %v1648, %v1645
    %v1676 = vpack.c.b16 %v1652, %v1649
    %v1677 = vpack.c.b16 %v1653, %v1650
    %v1678 = vpack.c.b16 %v1654, %v1651
    %1703 = vmatpush.bf16.msra.mxu0 %v1676
    %1704 = vmatpush.bf16.msra.mxu0 %v1673
    %1705 = vmatpush.bf16.msra.mxu0 %v1670
    %1706 = vmatpush.bf16.msra.mxu0 %v1667
    %1707 = vmatpush.bf16.msra.mxu0 %v1664
    %1708 = vmatpush.bf16.msra.mxu0 %v1661
    %1709 = vmatpush.bf16.msra.mxu0 %v1658
    %1710 = vmatpush.bf16.msra.mxu0 %v1655
    %1711 = vmatmul.bf16.gmra.mxu0 %v1565
    %v1712 = vpop.f32.mrf.mxu0
    %v1713 = vadd.f32 %v1569, %v1712
    %v1714 = vpop.f32.mrf.mxu0
    %v1715 = vadd.f32 %v1569, %v1714
    %1716 = vdwg.mxu0
    %1717 = vmatpush.bf16.msra.mxu0 %v1677
    %1718 = vmatpush.bf16.msra.mxu0 %v1674
    %1719 = vmatpush.bf16.msra.mxu0 %v1671
    %1720 = vmatpush.bf16.msra.mxu0 %v1668
    %1721 = vmatpush.bf16.msra.mxu0 %v1665
    %1722 = vmatpush.bf16.msra.mxu0 %v1662
    %1723 = vmatpush.bf16.msra.mxu0 %v1659
    %1724 = vmatpush.bf16.msra.mxu0 %v1656
    %1725 = vmatmul.bf16.gmra.mxu0 %v1565
    %v1726 = vpop.f32.mrf.mxu0
    %v1727 = vadd.f32 %v1570, %v1726
    %v1728 = vpop.f32.mrf.mxu0
    %v1729 = vadd.f32 %v1570, %v1728
    %1730 = vdwg.mxu0
    %1731 = vmatpush.bf16.msra.mxu0 %v1678
    %1732 = vmatpush.bf16.msra.mxu0 %v1675
    %1733 = vmatpush.bf16.msra.mxu0 %v1672
    %1734 = vmatpush.bf16.msra.mxu0 %v1669
    %1735 = vmatpush.bf16.msra.mxu0 %v1666
    %1736 = vmatpush.bf16.msra.mxu0 %v1663
    %1737 = vmatpush.bf16.msra.mxu0 %v1660
    %1738 = vmatpush.bf16.msra.mxu0 %v1657
    %1739 = vmatmul.bf16.gmra.mxu0 %v1565
    %v1740 = vpop.f32.mrf.mxu0
    %v1741 = vadd.f32 %v1571, %v1740
    %v1742 = vpop.f32.mrf.mxu0
    %v1743 = vadd.f32 %v1571, %v1742
    %1744 = vdwg.mxu0
    %v1746 = vsel %vm459, %v1713, 0
    %v1749 = vsel %vm459, %v1727, 0
    %1751 = vmatpush.xpose.msra.mxu0 0.0
    %1752 = vmatpush.xpose.msra.mxu0 0.0
    %1753 = vmatpush.xpose.msra.mxu0 0.0
    %1754 = vmatpush.xpose.msra.mxu0 0.0
    %1755 = vmatpush.xpose.msra.mxu0 0.0
    %1756 = vmatpush.xpose.msra.mxu0 0.0
    %1757 = vmatpush.xpose.msra.mxu0 0.0
    %1758 = vmatpush.xpose.msra.mxu0 0.0
    %1759 = vmatpush.xpose.msra.mxu0 0.0
    %1760 = vmatpush.xpose.msra.mxu0 0.0
    %1761 = vmatpush.xpose.msra.mxu0 0.0
    %1762 = vmatpush.xpose.msra.mxu0 0.0
    %1763 = vmatpush.xpose.msra.mxu0 0.0
    %1764 = vmatpush.xpose.msra.mxu0 0.0
    %1765 = vmatpush.xpose.msra.mxu0 0.0
    %1766 = vmatpush.xpose.msra.mxu0 %v1749
    %1767 = vmatmul.f32.gmra.mxu0 %v1746
    %v1768 = vpop.f32.mrf.mxu0
    %v1769 = vadd.f32 0.0, %v1768
    %1770 = vdwg.mxu0
    %v1772 = vsel %vm459, %v1715, 0
    %v1775 = vsel %vm459, %v1729, 0
    %1777 = vmatpush.xpose.msra.mxu0 0.0
    %1778 = vmatpush.xpose.msra.mxu0 0.0
    %1779 = vmatpush.xpose.msra.mxu0 0.0
    %1780 = vmatpush.xpose.msra.mxu0 0.0
    %1781 = vmatpush.xpose.msra.mxu0 0.0
    %1782 = vmatpush.xpose.msra.mxu0 0.0
    %1783 = vmatpush.xpose.msra.mxu0 0.0
    %1784 = vmatpush.xpose.msra.mxu0 0.0
    %1785 = vmatpush.xpose.msra.mxu0 0.0
    %1786 = vmatpush.xpose.msra.mxu0 0.0
    %1787 = vmatpush.xpose.msra.mxu0 0.0
    %1788 = vmatpush.xpose.msra.mxu0 0.0
    %1789 = vmatpush.xpose.msra.mxu0 0.0
    %1790 = vmatpush.xpose.msra.mxu0 0.0
    %1791 = vmatpush.xpose.msra.mxu0 0.0
    %1792 = vmatpush.xpose.msra.mxu0 %v1775
    %1793 = vmatmul.f32.gmra.mxu0 %v1772
    %v1794 = vpop.f32.mrf.mxu0
    %v1795 = vadd.f32 0.0, %v1794
    %1796 = vdwg.mxu0
    %v1797 = vmul.f32 %v1769, 0.125
    %v1798 = vmul.f32 %v1795, 0.125
    %v1799 = vadd.f32 %v1797, %v132
    %v1800 = vadd.f32 %v1798, %v133
    %v1801 = vsel %vm516, %v1799, -inf
    %1802 = vmax.xlane.f32.xlu0 %v1801
    %v1803 = vpop.xlane.xlu0 %1802
    %v1804 = vsel %vm516, %v1800, -inf
    %1805 = vmax.xlane.f32.xlu0 %v1804
    %v1806 = vpop.xlane.xlu0 %1805
    %v1807 = vsub.f32 %v1799, %v1803
    %v1808 = vsub.f32 %v1800, %v1806
    %v1809 = vmul.f32 %v1807, 1.442695
    %v1810 = vpow.pop %v1809
    %v1811 = vmul.f32 %v1808, 1.442695
    %v1812 = vpow.pop %v1811
    %v1813 = vsel %vm516, %v1810, 0.0
    %1814 = vadd.xlane.f32.xlu0 %v1813
    %v1815 = vpop.xlane.xlu0 %1814
    %v1816 = vsel %vm516, %v1812, 0.0
    %1817 = vadd.xlane.f32.xlu0 %v1816
    %v1818 = vpop.xlane.xlu0 %1817
    %v1819 = vrcp.pop %v1815
    %v1820 = vrcp.pop %v1818
    %v1821 = vmul.f32 %v1810, %v1819
    %v1822 = vmul.f32 %v1812, %v1820
    %v1824 = vsel %vm516, %v1821, 0
    %1826 = vmatpush.msra.mxu0 0.0
    %1827 = vmatpush.msra.mxu0 0.0
    %1828 = vmatpush.msra.mxu0 0.0
    %1829 = vmatpush.msra.mxu0 0.0
    %1830 = vmatpush.msra.mxu0 0.0
    %1831 = vmatpush.msra.mxu0 0.0
    %1832 = vmatpush.msra.mxu0 0.0
    %1833 = vmatpush.msra.mxu0 0.0
    %1834 = vmatpush.msra.mxu0 0.0
    %1835 = vmatpush.msra.mxu0 0.0
    %1836 = vmatpush.msra.mxu0 0.0
    %1837 = vmatpush.msra.mxu0 0.0
    %1838 = vmatpush.msra.mxu0 0.0
    %1839 = vmatpush.msra.mxu0 0.0
    %1840 = vmatpush.msra.mxu0 0.0
    %1841 = vmatpush.msra.mxu0 %v1741
    %1842 = vmatmul.f32.gmra.mxu0 %v1824
    %v1843 = vpop.f32.mrf.mxu0
    %v1844 = vadd.f32 0.0, %v1843
    %1845 = vdwg.mxu0
    %v1847 = vsel %vm516, %v1822, 0
    %1849 = vmatpush.msra.mxu0 0.0
    %1850 = vmatpush.msra.mxu0 0.0
    %1851 = vmatpush.msra.mxu0 0.0
    %1852 = vmatpush.msra.mxu0 0.0
    %1853 = vmatpush.msra.mxu0 0.0
    %1854 = vmatpush.msra.mxu0 0.0
    %1855 = vmatpush.msra.mxu0 0.0
    %1856 = vmatpush.msra.mxu0 0.0
    %1857 = vmatpush.msra.mxu0 0.0
    %1858 = vmatpush.msra.mxu0 0.0
    %1859 = vmatpush.msra.mxu0 0.0
    %1860 = vmatpush.msra.mxu0 0.0
    %1861 = vmatpush.msra.mxu0 0.0
    %1862 = vmatpush.msra.mxu0 0.0
    %1863 = vmatpush.msra.mxu0 0.0
    %1864 = vmatpush.msra.mxu0 %v1743
    %1865 = vmatmul.f32.gmra.mxu0 %v1847
    %v1866 = vpop.f32.mrf.mxu0
    %v1867 = vadd.f32 0.0, %v1866
    %1868 = vdwg.mxu0
    %v1869 = vpack.c.bf16 %v1867, %v1844
    %1870 = vrot.lane.b32.xlu0 %v1713, 64
    %v1871 = vpop.permute.xlu0 %1870
    %1872 = vrot.lane.b32.xlu0 %v1727, 64
    %v1873 = vpop.permute.xlu0 %1872
    %v1874 = vsel %vm459, %v1871, 0
    %v1876 = vsel %vm459, %v1873, 0
    %1878 = vmatpush.xpose.msra.mxu0 0.0
    %1879 = vmatpush.xpose.msra.mxu0 0.0
    %1880 = vmatpush.xpose.msra.mxu0 0.0
    %1881 = vmatpush.xpose.msra.mxu0 0.0
    %1882 = vmatpush.xpose.msra.mxu0 0.0
    %1883 = vmatpush.xpose.msra.mxu0 0.0
    %1884 = vmatpush.xpose.msra.mxu0 0.0
    %1885 = vmatpush.xpose.msra.mxu0 0.0
    %1886 = vmatpush.xpose.msra.mxu0 0.0
    %1887 = vmatpush.xpose.msra.mxu0 0.0
    %1888 = vmatpush.xpose.msra.mxu0 0.0
    %1889 = vmatpush.xpose.msra.mxu0 0.0
    %1890 = vmatpush.xpose.msra.mxu0 0.0
    %1891 = vmatpush.xpose.msra.mxu0 0.0
    %1892 = vmatpush.xpose.msra.mxu0 0.0
    %1893 = vmatpush.xpose.msra.mxu0 %v1876
    %1894 = vmatmul.f32.gmra.mxu0 %v1874
    %v1895 = vpop.f32.mrf.mxu0
    %v1896 = vadd.f32 0.0, %v1895
    %1897 = vdwg.mxu0
    %1898 = vrot.lane.b32.xlu0 %v1715, 64
    %v1899 = vpop.permute.xlu0 %1898
    %1900 = vrot.lane.b32.xlu0 %v1729, 64
    %v1901 = vpop.permute.xlu0 %1900
    %v1902 = vsel %vm459, %v1899, 0
    %v1904 = vsel %vm459, %v1901, 0
    %1906 = vmatpush.xpose.msra.mxu0 0.0
    %1907 = vmatpush.xpose.msra.mxu0 0.0
    %1908 = vmatpush.xpose.msra.mxu0 0.0
    %1909 = vmatpush.xpose.msra.mxu0 0.0
    %1910 = vmatpush.xpose.msra.mxu0 0.0
    %1911 = vmatpush.xpose.msra.mxu0 0.0
    %1912 = vmatpush.xpose.msra.mxu0 0.0
    %1913 = vmatpush.xpose.msra.mxu0 0.0
    %1914 = vmatpush.xpose.msra.mxu0 0.0
    %1915 = vmatpush.xpose.msra.mxu0 0.0
    %1916 = vmatpush.xpose.msra.mxu0 0.0
    %1917 = vmatpush.xpose.msra.mxu0 0.0
    %1918 = vmatpush.xpose.msra.mxu0 0.0
    %1919 = vmatpush.xpose.msra.mxu0 0.0
    %1920 = vmatpush.xpose.msra.mxu0 0.0
    %1921 = vmatpush.xpose.msra.mxu0 %v1904
    %1922 = vmatmul.f32.gmra.mxu0 %v1902
    %v1923 = vpop.f32.mrf.mxu0
    %v1924 = vadd.f32 0.0, %v1923
    %1925 = vdwg.mxu0
    %v1926 = vmul.f32 %v1896, 0.125
    %v1927 = vmul.f32 %v1924, 0.125
    %v1928 = vadd.f32 %v1926, %v132
    %v1929 = vadd.f32 %v1927, %v133
    %v1930 = vsel %vm516, %v1928, -inf
    %1931 = vmax.xlane.f32.xlu0 %v1930
    %v1932 = vpop.xlane.xlu0 %1931
    %v1933 = vsel %vm516, %v1929, -inf
    %1934 = vmax.xlane.f32.xlu0 %v1933
    %v1935 = vpop.xlane.xlu0 %1934
    %v1936 = vsub.f32 %v1928, %v1932
    %v1937 = vsub.f32 %v1929, %v1935
    %v1938 = vmul.f32 %v1936, 1.442695
    %v1939 = vpow.pop %v1938
    %v1940 = vmul.f32 %v1937, 1.442695
    %v1941 = vpow.pop %v1940
    %v1942 = vsel %vm516, %v1939, 0.0
    %1943 = vadd.xlane.f32.xlu0 %v1942
    %v1944 = vpop.xlane.xlu0 %1943
    %v1945 = vsel %vm516, %v1941, 0.0
    %1946 = vadd.xlane.f32.xlu0 %v1945
    %v1947 = vpop.xlane.xlu0 %1946
    %v1948 = vrcp.pop %v1944
    %v1949 = vrcp.pop %v1947
    %v1950 = vmul.f32 %v1939, %v1948
    %v1951 = vmul.f32 %v1941, %v1949
    %1953 = vrot.lane.b32.xlu0 %v1741, 64
    %v1954 = vpop.permute.xlu0 %1953
    %v1957 = vsel %vm516, %v1950, 0
    %1959 = vmatpush.msra.mxu0 0.0
    %1960 = vmatpush.msra.mxu0 0.0
    %1961 = vmatpush.msra.mxu0 0.0
    %1962 = vmatpush.msra.mxu0 0.0
    %1963 = vmatpush.msra.mxu0 0.0
    %1964 = vmatpush.msra.mxu0 0.0
    %1965 = vmatpush.msra.mxu0 0.0
    %1966 = vmatpush.msra.mxu0 0.0
    %1967 = vmatpush.msra.mxu0 0.0
    %1968 = vmatpush.msra.mxu0 0.0
    %1969 = vmatpush.msra.mxu0 0.0
    %1970 = vmatpush.msra.mxu0 0.0
    %1971 = vmatpush.msra.mxu0 0.0
    %1972 = vmatpush.msra.mxu0 0.0
    %1973 = vmatpush.msra.mxu0 0.0
    %1974 = vmatpush.msra.mxu0 %v1954
    %1975 = vmatmul.f32.gmra.mxu0 %v1957
    %v1976 = vpop.f32.mrf.mxu0
    %v1977 = vadd.f32 0.0, %v1976
    %1978 = vdwg.mxu0
    %1980 = vrot.lane.b32.xlu0 %v1743, 64
    %v1981 = vpop.permute.xlu0 %1980
    %v1984 = vsel %vm516, %v1951, 0
    %1986 = vmatpush.msra.mxu0 0.0
    %1987 = vmatpush.msra.mxu0 0.0
    %1988 = vmatpush.msra.mxu0 0.0
    %1989 = vmatpush.msra.mxu0 0.0
    %1990 = vmatpush.msra.mxu0 0.0
    %1991 = vmatpush.msra.mxu0 0.0
    %1992 = vmatpush.msra.mxu0 0.0
    %1993 = vmatpush.msra.mxu0 0.0
    %1994 = vmatpush.msra.mxu0 0.0
    %1995 = vmatpush.msra.mxu0 0.0
    %1996 = vmatpush.msra.mxu0 0.0
    %1997 = vmatpush.msra.mxu0 0.0
    %1998 = vmatpush.msra.mxu0 0.0
    %1999 = vmatpush.msra.mxu0 0.0
    %2000 = vmatpush.msra.mxu0 0.0
    %2001 = vmatpush.msra.mxu0 %v1981
    %2002 = vmatmul.f32.gmra.mxu0 %v1984
    %v2003 = vpop.f32.mrf.mxu0
    %v2004 = vadd.f32 0.0, %v2003
    %2005 = vdwg.mxu0
    %v2006 = vpack.c.bf16 %v2004, %v1977
    %v2015 = vunpack.c.l.b16 %v1459
    %v2016 = vunpack.c.l.b16 %v1460
    %v2017 = vunpack.c.l.b16 %v1461
    %v2018 = vunpack.c.l.b16 %v1462
    %v2019 = vunpack.c.l.b16 %v1463
    %v2020 = vunpack.c.l.b16 %v1464
    %v2021 = vunpack.c.l.b16 %v1465
    %v2022 = vunpack.c.l.b16 %v1466
    %v2023 = vpack.c.b16 %v2016, %v2015
    %v2024 = vpack.c.b16 %v2018, %v2017
    %v2025 = vpack.c.b16 %v2020, %v2019
    %v2026 = vpack.c.b16 %v2022, %v2021
    %v2032 = vsel %vm459, %v2006, 0
    %2034 = vmatpush.bf16.msra.mxu0 0
    %2035 = vmatpush.bf16.msra.mxu0 0
    %2036 = vmatpush.bf16.msra.mxu0 0
    %2037 = vmatpush.bf16.msra.mxu0 0
    %2038 = vmatpush.bf16.msra.mxu0 %v2026
    %2039 = vmatpush.bf16.msra.mxu0 %v2025
    %2040 = vmatpush.bf16.msra.mxu0 %v2024
    %2041 = vmatpush.bf16.msra.mxu0 %v2023
    %2042 = vmatmul.bf16.gmra.mxu0 %v2032
    %v2043 = vpop.f32.mrf.mxu0
    %v2044 = vadd.f32 0.0, %v2043
    %v2045 = vpop.f32.mrf.mxu0
    %v2046 = vadd.f32 0.0, %v2045
    %2047 = vdwg.mxu0
    %v2056 = vunpack.c.l.b16 %v1451
    %v2057 = vunpack.c.l.b16 %v1452
    %v2058 = vunpack.c.l.b16 %v1453
    %v2059 = vunpack.c.l.b16 %v1454
    %v2060 = vunpack.c.l.b16 %v1455
    %v2061 = vunpack.c.l.b16 %v1456
    %v2062 = vunpack.c.l.b16 %v1457
    %v2063 = vunpack.c.l.b16 %v1458
    %v2064 = vpack.c.b16 %v2057, %v2056
    %v2065 = vpack.c.b16 %v2059, %v2058
    %v2066 = vpack.c.b16 %v2061, %v2060
    %v2067 = vpack.c.b16 %v2063, %v2062
    %v2073 = vsel %vm459, %v1869, 0
    %2075 = vmatpush.bf16.msra.mxu0 0
    %2076 = vmatpush.bf16.msra.mxu0 0
    %2077 = vmatpush.bf16.msra.mxu0 0
    %2078 = vmatpush.bf16.msra.mxu0 0
    %2079 = vmatpush.bf16.msra.mxu0 %v2067
    %2080 = vmatpush.bf16.msra.mxu0 %v2066
    %2081 = vmatpush.bf16.msra.mxu0 %v2065
    %2082 = vmatpush.bf16.msra.mxu0 %v2064
    %2083 = vmatmul.bf16.gmra.mxu0 %v2073
    %v2084 = vpop.f32.mrf.mxu0
    %v2085 = vadd.f32 %v2044, %v2084
    %v2086 = vpop.f32.mrf.mxu0
    %v2087 = vadd.f32 %v2046, %v2086
    %2088 = vdwg.mxu0
    %s2089 = scalar_lea.vmem %s5, 1
    %v2090 = vld [vmem:[%s2089] sm:$0x1]
    %v2092 = vperm.slane %v2090, 0
    %v2094 = vadd.f32 %v2085, %v2092
    %v2095 = vadd.f32 %v2087, %v2092
    %v2096 = vadd.f32 %v1415, %v2094
    %v2097 = vadd.f32 %v1416, %v2095
    %s2098 = scalar_lea.vmem %s6, 1
    %v2099 = vld [vmem:[%s2098] sm:$0x1]
    %s2100 = scalar_lea.vmem %s7, 1
    %v2101 = vld [vmem:[%s2100] sm:$0x1]
    %2102 = vadd.xlane.f32.xlu0 %v2096
    %v2103 = vpop.xlane.xlu0 %2102
    %2104 = vadd.xlane.f32.xlu0 %v2097
    %v2105 = vpop.xlane.xlu0 %2104
    %v2106 = vmul.f32 %v2103, %v825
    %v2107 = vmul.f32 %v2105, %v825
    %v2108 = vsub.f32 %v2096, %v2106
    %v2109 = vsub.f32 %v2097, %v2107
    %v2110 = vmul.f32 %v2108, %v2108
    %v2111 = vmul.f32 %v2109, %v2109
    %2112 = vadd.xlane.f32.xlu0 %v2110
    %v2113 = vpop.xlane.xlu0 %2112
    %2114 = vadd.xlane.f32.xlu0 %v2111
    %v2115 = vpop.xlane.xlu0 %2114
    %v2116 = vmul.f32 %v2113, %v825
    %v2117 = vmul.f32 %v2115, %v825
    %v2118 = vadd.f32 %v2116, 1e-05
    %v2119 = vadd.f32 %v2117, 1e-05
    %v2120 = vrsqrt.pop %v2118
    %v2121 = vmul.f32 %v2120, %v2118
    %v2122 = vmul.f32 %v2121, %v2120
    %v2123 = vmul.f32 0.5, %v2122
    %v2124 = vsub.f32 1.5, %v2123
    %v2125 = vmul.f32 %v2120, %v2124
    %vm2126 = vweird.f32 %v2118
    %vm2127 = vweird.f32 %v2120
    %vm2128 = vmor %vm2126, %vm2127
    %v2129 = vsel %vm2128, %v2120, %v2125
    %v2130 = vrsqrt.pop %v2119
    %v2131 = vmul.f32 %v2130, %v2119
    %v2132 = vmul.f32 %v2131, %v2130
    %v2133 = vmul.f32 0.5, %v2132
    %v2134 = vsub.f32 1.5, %v2133
    %v2135 = vmul.f32 %v2130, %v2134
    %vm2136 = vweird.f32 %v2119
    %vm2137 = vweird.f32 %v2130
    %vm2138 = vmor %vm2136, %vm2137
    %v2139 = vsel %vm2138, %v2130, %v2135
    %v2140 = vmul.f32 %v2108, %v2129
    %v2141 = vmul.f32 %v2109, %v2139
    %v2143 = vperm.slane %v2099, 0
    %v2145 = vmul.f32 %v2140, %v2143
    %v2146 = vmul.f32 %v2141, %v2143
    %v2148 = vperm.slane %v2101, 0
    %v2150 = vadd.f32 %v2145, %v2148
    %v2151 = vadd.f32 %v2146, %v2148
    %v2152 = vpack.c.bf16 %v2151, %v2150
    %s2153 = scalar_lea.vmem %s9, 4
    %v2154 = vld [vmem:[%s2153] sm:$0xf]
    %v2156 = vperm.slane %v2154, 0
    %v2157 = vperm.slane %v2154, 1
    %v2158 = vperm.slane %v2154, 2
    %v2159 = vperm.slane %v2154, 3
    %v2196 = vunpack.c.l.b16 %v1468
    %v2197 = vunpack.c.h.b16 %v1468
    %v2198 = vunpack.c.l.b16 %v1469
    %v2199 = vunpack.c.h.b16 %v1469
    %v2200 = vunpack.c.l.b16 %v1470
    %v2201 = vunpack.c.h.b16 %v1470
    %v2202 = vunpack.c.l.b16 %v1471
    %v2203 = vunpack.c.h.b16 %v1471
    %v2204 = vunpack.c.l.b16 %v1472
    %v2205 = vunpack.c.h.b16 %v1472
    %v2206 = vunpack.c.l.b16 %v1473
    %v2207 = vunpack.c.h.b16 %v1473
    %v2208 = vunpack.c.l.b16 %v1474
    %v2209 = vunpack.c.h.b16 %v1474
    %v2210 = vunpack.c.l.b16 %v1475
    %v2211 = vunpack.c.h.b16 %v1475
    %v2212 = vunpack.c.l.b16 %v1476
    %v2213 = vunpack.c.h.b16 %v1476
    %v2214 = vunpack.c.l.b16 %v1477
    %v2215 = vunpack.c.h.b16 %v1477
    %v2216 = vunpack.c.l.b16 %v1478
    %v2217 = vunpack.c.h.b16 %v1478
    %v2218 = vunpack.c.l.b16 %v1479
    %v2219 = vunpack.c.h.b16 %v1479
    %v2220 = vunpack.c.l.b16 %v1480
    %v2221 = vunpack.c.h.b16 %v1480
    %v2222 = vunpack.c.l.b16 %v1481
    %v2223 = vunpack.c.h.b16 %v1481
    %v2224 = vunpack.c.l.b16 %v1482
    %v2225 = vunpack.c.h.b16 %v1482
    %v2226 = vunpack.c.l.b16 %v1483
    %v2227 = vunpack.c.h.b16 %v1483
    %v2228 = vunpack.c.l.b16 %v1484
    %v2229 = vunpack.c.h.b16 %v1484
    %v2230 = vunpack.c.l.b16 %v1485
    %v2231 = vunpack.c.h.b16 %v1485
    %v2232 = vunpack.c.l.b16 %v1486
    %v2233 = vunpack.c.h.b16 %v1486
    %v2234 = vunpack.c.l.b16 %v1487
    %v2235 = vunpack.c.h.b16 %v1487
    %v2236 = vunpack.c.l.b16 %v1488
    %v2237 = vunpack.c.h.b16 %v1488
    %v2238 = vunpack.c.l.b16 %v1489
    %v2239 = vunpack.c.h.b16 %v1489
    %v2240 = vunpack.c.l.b16 %v1490
    %v2241 = vunpack.c.h.b16 %v1490
    %v2242 = vunpack.c.l.b16 %v1491
    %v2243 = vunpack.c.h.b16 %v1491
    %v2244 = vunpack.c.l.b16 %v1492
    %v2245 = vunpack.c.h.b16 %v1492
    %v2246 = vunpack.c.l.b16 %v1493
    %v2247 = vunpack.c.h.b16 %v1493
    %v2248 = vunpack.c.l.b16 %v1494
    %v2249 = vunpack.c.h.b16 %v1494
    %v2250 = vunpack.c.l.b16 %v1495
    %v2251 = vunpack.c.h.b16 %v1495
    %v2252 = vunpack.c.l.b16 %v1496
    %v2253 = vunpack.c.h.b16 %v1496
    %v2254 = vunpack.c.l.b16 %v1497
    %v2255 = vunpack.c.h.b16 %v1497
    %v2256 = vunpack.c.l.b16 %v1498
    %v2257 = vunpack.c.h.b16 %v1498
    %v2258 = vunpack.c.l.b16 %v1499
    %v2259 = vunpack.c.h.b16 %v1499
    %v2260 = vpack.c.b16 %v2200, %v2196
    %v2261 = vpack.c.b16 %v2201, %v2197
    %v2262 = vpack.c.b16 %v2202, %v2198
    %v2263 = vpack.c.b16 %v2203, %v2199
    %v2264 = vpack.c.b16 %v2208, %v2204
    %v2265 = vpack.c.b16 %v2209, %v2205
    %v2266 = vpack.c.b16 %v2210, %v2206
    %v2267 = vpack.c.b16 %v2211, %v2207
    %v2268 = vpack.c.b16 %v2216, %v2212
    %v2269 = vpack.c.b16 %v2217, %v2213
    %v2270 = vpack.c.b16 %v2218, %v2214
    %v2271 = vpack.c.b16 %v2219, %v2215
    %v2272 = vpack.c.b16 %v2224, %v2220
    %v2273 = vpack.c.b16 %v2225, %v2221
    %v2274 = vpack.c.b16 %v2226, %v2222
    %v2275 = vpack.c.b16 %v2227, %v2223
    %v2276 = vpack.c.b16 %v2232, %v2228
    %v2277 = vpack.c.b16 %v2233, %v2229
    %v2278 = vpack.c.b16 %v2234, %v2230
    %v2279 = vpack.c.b16 %v2235, %v2231
    %v2280 = vpack.c.b16 %v2240, %v2236
    %v2281 = vpack.c.b16 %v2241, %v2237
    %v2282 = vpack.c.b16 %v2242, %v2238
    %v2283 = vpack.c.b16 %v2243, %v2239
    %v2284 = vpack.c.b16 %v2248, %v2244
    %v2285 = vpack.c.b16 %v2249, %v2245
    %v2286 = vpack.c.b16 %v2250, %v2246
    %v2287 = vpack.c.b16 %v2251, %v2247
    %v2288 = vpack.c.b16 %v2256, %v2252
    %v2289 = vpack.c.b16 %v2257, %v2253
    %v2290 = vpack.c.b16 %v2258, %v2254
    %v2291 = vpack.c.b16 %v2259, %v2255
    %2324 = vmatpush.bf16.msra.mxu0 %v2288
    %2325 = vmatpush.bf16.msra.mxu0 %v2284
    %2326 = vmatpush.bf16.msra.mxu0 %v2280
    %2327 = vmatpush.bf16.msra.mxu0 %v2276
    %2328 = vmatpush.bf16.msra.mxu0 %v2272
    %2329 = vmatpush.bf16.msra.mxu0 %v2268
    %2330 = vmatpush.bf16.msra.mxu0 %v2264
    %2331 = vmatpush.bf16.msra.mxu0 %v2260
    %2332 = vmatmul.bf16.gmra.mxu0 %v2152
    %v2333 = vpop.f32.mrf.mxu0
    %v2334 = vadd.f32 %v2156, %v2333
    %v2335 = vpop.f32.mrf.mxu0
    %v2336 = vadd.f32 %v2156, %v2335
    %2337 = vdwg.mxu0
    %2338 = vmatpush.bf16.msra.mxu0 %v2289
    %2339 = vmatpush.bf16.msra.mxu0 %v2285
    %2340 = vmatpush.bf16.msra.mxu0 %v2281
    %2341 = vmatpush.bf16.msra.mxu0 %v2277
    %2342 = vmatpush.bf16.msra.mxu0 %v2273
    %2343 = vmatpush.bf16.msra.mxu0 %v2269
    %2344 = vmatpush.bf16.msra.mxu0 %v2265
    %2345 = vmatpush.bf16.msra.mxu0 %v2261
    %2346 = vmatmul.bf16.gmra.mxu0 %v2152
    %v2347 = vpop.f32.mrf.mxu0
    %v2348 = vadd.f32 %v2157, %v2347
    %v2349 = vpop.f32.mrf.mxu0
    %v2350 = vadd.f32 %v2157, %v2349
    %2351 = vdwg.mxu0
    %2352 = vmatpush.bf16.msra.mxu0 %v2290
    %2353 = vmatpush.bf16.msra.mxu0 %v2286
    %2354 = vmatpush.bf16.msra.mxu0 %v2282
    %2355 = vmatpush.bf16.msra.mxu0 %v2278
    %2356 = vmatpush.bf16.msra.mxu0 %v2274
    %2357 = vmatpush.bf16.msra.mxu0 %v2270
    %2358 = vmatpush.bf16.msra.mxu0 %v2266
    %2359 = vmatpush.bf16.msra.mxu0 %v2262
    %2360 = vmatmul.bf16.gmra.mxu0 %v2152
    %v2361 = vpop.f32.mrf.mxu0
    %v2362 = vadd.f32 %v2158, %v2361
    %v2363 = vpop.f32.mrf.mxu0
    %v2364 = vadd.f32 %v2158, %v2363
    %2365 = vdwg.mxu0
    %2366 = vmatpush.bf16.msra.mxu0 %v2291
    %2367 = vmatpush.bf16.msra.mxu0 %v2287
    %2368 = vmatpush.bf16.msra.mxu0 %v2283
    %2369 = vmatpush.bf16.msra.mxu0 %v2279
    %2370 = vmatpush.bf16.msra.mxu0 %v2275
    %2371 = vmatpush.bf16.msra.mxu0 %v2271
    %2372 = vmatpush.bf16.msra.mxu0 %v2267
    %2373 = vmatpush.bf16.msra.mxu0 %v2263
    %2374 = vmatmul.bf16.gmra.mxu0 %v2152
    %v2375 = vpop.f32.mrf.mxu0
    %v2376 = vadd.f32 %v2159, %v2375
    %v2377 = vpop.f32.mrf.mxu0
    %v2378 = vadd.f32 %v2159, %v2377
    %2379 = vdwg.mxu0
    %v2380 = vmax.f32 %v2334, 0.0
    %v2381 = vmax.f32 %v2348, 0.0
    %v2382 = vmax.f32 %v2362, 0.0
    %v2383 = vmax.f32 %v2376, 0.0
    %v2384 = vmax.f32 %v2336, 0.0
    %v2385 = vmax.f32 %v2350, 0.0
    %v2386 = vmax.f32 %v2364, 0.0
    %v2387 = vmax.f32 %v2378, 0.0
    %v2388 = vpack.c.bf16 %v2384, %v2380
    %v2389 = vpack.c.bf16 %v2385, %v2381
    %v2390 = vpack.c.bf16 %v2386, %v2382
    %v2391 = vpack.c.bf16 %v2387, %v2383
    %s2392 = scalar_lea.vmem %s11, 1
    %v2393 = vld [vmem:[%s2392] sm:$0x1]
    %v2395 = vperm.slane %v2393, 0
    %v2461 = vunpack.c.l.b16 %v1501
    %v2462 = vunpack.c.l.b16 %v1502
    %v2463 = vunpack.c.l.b16 %v1503
    %v2464 = vunpack.c.l.b16 %v1504
    %v2465 = vunpack.c.l.b16 %v1505
    %v2466 = vunpack.c.l.b16 %v1506
    %v2467 = vunpack.c.l.b16 %v1507
    %v2468 = vunpack.c.l.b16 %v1508
    %v2469 = vunpack.c.l.b16 %v1509
    %v2470 = vunpack.c.l.b16 %v1510
    %v2471 = vunpack.c.l.b16 %v1511
    %v2472 = vunpack.c.l.b16 %v1512
    %v2473 = vunpack.c.l.b16 %v1513
    %v2474 = vunpack.c.l.b16 %v1514
    %v2475 = vunpack.c.l.b16 %v1515
    %v2476 = vunpack.c.l.b16 %v1516
    %v2477 = vunpack.c.l.b16 %v1517
    %v2478 = vunpack.c.l.b16 %v1518
    %v2479 = vunpack.c.l.b16 %v1519
    %v2480 = vunpack.c.l.b16 %v1520
    %v2481 = vunpack.c.l.b16 %v1521
    %v2482 = vunpack.c.l.b16 %v1522
    %v2483 = vunpack.c.l.b16 %v1523
    %v2484 = vunpack.c.l.b16 %v1524
    %v2485 = vunpack.c.l.b16 %v1525
    %v2486 = vunpack.c.l.b16 %v1526
    %v2487 = vunpack.c.l.b16 %v1527
    %v2488 = vunpack.c.l.b16 %v1528
    %v2489 = vunpack.c.l.b16 %v1529
    %v2490 = vunpack.c.l.b16 %v1530
    %v2491 = vunpack.c.l.b16 %v1531
    %v2492 = vunpack.c.l.b16 %v1532
    %v2493 = vunpack.c.l.b16 %v1533
    %v2494 = vunpack.c.l.b16 %v1534
    %v2495 = vunpack.c.l.b16 %v1535
    %v2496 = vunpack.c.l.b16 %v1536
    %v2497 = vunpack.c.l.b16 %v1537
    %v2498 = vunpack.c.l.b16 %v1538
    %v2499 = vunpack.c.l.b16 %v1539
    %v2500 = vunpack.c.l.b16 %v1540
    %v2501 = vunpack.c.l.b16 %v1541
    %v2502 = vunpack.c.l.b16 %v1542
    %v2503 = vunpack.c.l.b16 %v1543
    %v2504 = vunpack.c.l.b16 %v1544
    %v2505 = vunpack.c.l.b16 %v1545
    %v2506 = vunpack.c.l.b16 %v1546
    %v2507 = vunpack.c.l.b16 %v1547
    %v2508 = vunpack.c.l.b16 %v1548
    %v2509 = vunpack.c.l.b16 %v1549
    %v2510 = vunpack.c.l.b16 %v1550
    %v2511 = vunpack.c.l.b16 %v1551
    %v2512 = vunpack.c.l.b16 %v1552
    %v2513 = vunpack.c.l.b16 %v1553
    %v2514 = vunpack.c.l.b16 %v1554
    %v2515 = vunpack.c.l.b16 %v1555
    %v2516 = vunpack.c.l.b16 %v1556
    %v2517 = vunpack.c.l.b16 %v1557
    %v2518 = vunpack.c.l.b16 %v1558
    %v2519 = vunpack.c.l.b16 %v1559
    %v2520 = vunpack.c.l.b16 %v1560
    %v2521 = vunpack.c.l.b16 %v1561
    %v2522 = vunpack.c.l.b16 %v1562
    %v2523 = vunpack.c.l.b16 %v1563
    %v2524 = vunpack.c.l.b16 %v1564
    %v2525 = vpack.c.b16 %v2462, %v2461
    %v2526 = vpack.c.b16 %v2464, %v2463
    %v2527 = vpack.c.b16 %v2466, %v2465
    %v2528 = vpack.c.b16 %v2468, %v2467
    %v2529 = vpack.c.b16 %v2470, %v2469
    %v2530 = vpack.c.b16 %v2472, %v2471
    %v2531 = vpack.c.b16 %v2474, %v2473
    %v2532 = vpack.c.b16 %v2476, %v2475
    %v2533 = vpack.c.b16 %v2478, %v2477
    %v2534 = vpack.c.b16 %v2480, %v2479
    %v2535 = vpack.c.b16 %v2482, %v2481
    %v2536 = vpack.c.b16 %v2484, %v2483
    %v2537 = vpack.c.b16 %v2486, %v2485
    %v2538 = vpack.c.b16 %v2488, %v2487
    %v2539 = vpack.c.b16 %v2490, %v2489
    %v2540 = vpack.c.b16 %v2492, %v2491
    %v2541 = vpack.c.b16 %v2494, %v2493
    %v2542 = vpack.c.b16 %v2496, %v2495
    %v2543 = vpack.c.b16 %v2498, %v2497
    %v2544 = vpack.c.b16 %v2500, %v2499
    %v2545 = vpack.c.b16 %v2502, %v2501
    %v2546 = vpack.c.b16 %v2504, %v2503
    %v2547 = vpack.c.b16 %v2506, %v2505
    %v2548 = vpack.c.b16 %v2508, %v2507
    %v2549 = vpack.c.b16 %v2510, %v2509
    %v2550 = vpack.c.b16 %v2512, %v2511
    %v2551 = vpack.c.b16 %v2514, %v2513
    %v2552 = vpack.c.b16 %v2516, %v2515
    %v2553 = vpack.c.b16 %v2518, %v2517
    %v2554 = vpack.c.b16 %v2520, %v2519
    %v2555 = vpack.c.b16 %v2522, %v2521
    %v2556 = vpack.c.b16 %v2524, %v2523
    %2589 = vmatpush.bf16.msra.mxu0 %v2532
    %2590 = vmatpush.bf16.msra.mxu0 %v2531
    %2591 = vmatpush.bf16.msra.mxu0 %v2530
    %2592 = vmatpush.bf16.msra.mxu0 %v2529
    %2593 = vmatpush.bf16.msra.mxu0 %v2528
    %2594 = vmatpush.bf16.msra.mxu0 %v2527
    %2595 = vmatpush.bf16.msra.mxu0 %v2526
    %2596 = vmatpush.bf16.msra.mxu0 %v2525
    %2597 = vmatmul.bf16.gmra.mxu0 %v2388
    %v2598 = vpop.f32.mrf.mxu0
    %v2599 = vadd.f32 %v2395, %v2598
    %v2600 = vpop.f32.mrf.mxu0
    %v2601 = vadd.f32 %v2395, %v2600
    %2602 = vdwg.mxu0
    %2603 = vmatpush.bf16.msra.mxu0 %v2540
    %2604 = vmatpush.bf16.msra.mxu0 %v2539
    %2605 = vmatpush.bf16.msra.mxu0 %v2538
    %2606 = vmatpush.bf16.msra.mxu0 %v2537
    %2607 = vmatpush.bf16.msra.mxu0 %v2536
    %2608 = vmatpush.bf16.msra.mxu0 %v2535
    %2609 = vmatpush.bf16.msra.mxu0 %v2534
    %2610 = vmatpush.bf16.msra.mxu0 %v2533
    %2611 = vmatmul.bf16.gmra.mxu0 %v2389
    %v2612 = vpop.f32.mrf.mxu0
    %v2613 = vadd.f32 %v2599, %v2612
    %v2614 = vpop.f32.mrf.mxu0
    %v2615 = vadd.f32 %v2601, %v2614
    %2616 = vdwg.mxu0
    %2617 = vmatpush.bf16.msra.mxu0 %v2548
    %2618 = vmatpush.bf16.msra.mxu0 %v2547
    %2619 = vmatpush.bf16.msra.mxu0 %v2546
    %2620 = vmatpush.bf16.msra.mxu0 %v2545
    %2621 = vmatpush.bf16.msra.mxu0 %v2544
    %2622 = vmatpush.bf16.msra.mxu0 %v2543
    %2623 = vmatpush.bf16.msra.mxu0 %v2542
    %2624 = vmatpush.bf16.msra.mxu0 %v2541
    %2625 = vmatmul.bf16.gmra.mxu0 %v2390
    %v2626 = vpop.f32.mrf.mxu0
    %v2627 = vadd.f32 %v2613, %v2626
    %v2628 = vpop.f32.mrf.mxu0
    %v2629 = vadd.f32 %v2615, %v2628
    %2630 = vdwg.mxu0
    %2631 = vmatpush.bf16.msra.mxu0 %v2556
    %2632 = vmatpush.bf16.msra.mxu0 %v2555
    %2633 = vmatpush.bf16.msra.mxu0 %v2554
    %2634 = vmatpush.bf16.msra.mxu0 %v2553
    %2635 = vmatpush.bf16.msra.mxu0 %v2552
    %2636 = vmatpush.bf16.msra.mxu0 %v2551
    %2637 = vmatpush.bf16.msra.mxu0 %v2550
    %2638 = vmatpush.bf16.msra.mxu0 %v2549
    %2639 = vmatmul.bf16.gmra.mxu0 %v2391
    %v2640 = vpop.f32.mrf.mxu0
    %v2641 = vadd.f32 %v2627, %v2640
    %v2642 = vpop.f32.mrf.mxu0
    %v2643 = vadd.f32 %v2629, %v2642
    %2644 = vdwg.mxu0
    %v2645 = vadd.f32 %v2150, %v2641
    %v2646 = vadd.f32 %v2151, %v2643
    %s2647 = scalar_lea.vmem %s12, 1
    %v2648 = vld [vmem:[%s2647] sm:$0x1]
    %s2649 = scalar_lea.vmem %s13, 1
    %v2650 = vld [vmem:[%s2649] sm:$0x1]
    %2651 = vadd.xlane.f32.xlu0 %v2645
    %v2652 = vpop.xlane.xlu0 %2651
    %2653 = vadd.xlane.f32.xlu0 %v2646
    %v2654 = vpop.xlane.xlu0 %2653
    %v2655 = vmul.f32 %v2652, %v825
    %v2656 = vmul.f32 %v2654, %v825
    %v2657 = vsub.f32 %v2645, %v2655
    %v2658 = vsub.f32 %v2646, %v2656
    %v2659 = vmul.f32 %v2657, %v2657
    %v2660 = vmul.f32 %v2658, %v2658
    %2661 = vadd.xlane.f32.xlu0 %v2659
    %v2662 = vpop.xlane.xlu0 %2661
    %2663 = vadd.xlane.f32.xlu0 %v2660
    %v2664 = vpop.xlane.xlu0 %2663
    %v2665 = vmul.f32 %v2662, %v825
    %v2666 = vmul.f32 %v2664, %v825
    %v2667 = vadd.f32 %v2665, 1e-05
    %v2668 = vadd.f32 %v2666, 1e-05
    %v2669 = vrsqrt.pop %v2667
    %v2670 = vmul.f32 %v2669, %v2667
    %v2671 = vmul.f32 %v2670, %v2669
    %v2672 = vmul.f32 0.5, %v2671
    %v2673 = vsub.f32 1.5, %v2672
    %v2674 = vmul.f32 %v2669, %v2673
    %vm2675 = vweird.f32 %v2667
    %vm2676 = vweird.f32 %v2669
    %vm2677 = vmor %vm2675, %vm2676
    %v2678 = vsel %vm2677, %v2669, %v2674
    %v2679 = vrsqrt.pop %v2668
    %v2680 = vmul.f32 %v2679, %v2668
    %v2681 = vmul.f32 %v2680, %v2679
    %v2682 = vmul.f32 0.5, %v2681
    %v2683 = vsub.f32 1.5, %v2682
    %v2684 = vmul.f32 %v2679, %v2683
    %vm2685 = vweird.f32 %v2668
    %vm2686 = vweird.f32 %v2679
    %vm2687 = vmor %vm2685, %vm2686
    %v2688 = vsel %vm2687, %v2679, %v2684
    %v2689 = vmul.f32 %v2657, %v2678
    %v2690 = vmul.f32 %v2658, %v2688
    %v2692 = vperm.slane %v2648, 0
    %v2694 = vmul.f32 %v2689, %v2692
    %v2695 = vmul.f32 %v2690, %v2692
    %v2697 = vperm.slane %v2650, 0
    %v2699 = vadd.f32 %v2694, %v2697
    %v2700 = vadd.f32 %v2695, %v2697
    %v2701 = vpack.c.bf16 %v2699, %v2699
    %v2702 = vpack.c.bf16 %v2700, %v2700
    %v2703 = vld [vmem:[#allocation8] sm:$0xf]
    %v2704 = vld [vmem:[#allocation8 + $0x4] sm:$0xf]
    %v2705 = vld [vmem:[#allocation8 + $0x8] sm:$0xf]
    %v2706 = vld [vmem:[#allocation8 + $0xc] sm:$0xf]
    %v2707 = vld [vmem:[#allocation8 + $0x10] sm:$0xf]
    %v2708 = vld [vmem:[#allocation8 + $0x14] sm:$0xf]
    %v2709 = vld [vmem:[#allocation8 + $0x18] sm:$0xf]
    %v2710 = vld [vmem:[#allocation8 + $0x1c] sm:$0xf]
    %v2711 = vld [vmem:[#allocation8 + $0x20] sm:$0xf]
    %v2712 = vld [vmem:[#allocation8 + $0x24] sm:$0xf]
    %v2713 = vld [vmem:[#allocation8 + $0x28] sm:$0xf]
    %v2714 = vld [vmem:[#allocation8 + $0x2c] sm:$0xf]
    %v2715 = vld [vmem:[#allocation8 + $0x30] sm:$0xf]
    %v2716 = vld [vmem:[#allocation8 + $0x34] sm:$0xf]
    %v2717 = vld [vmem:[#allocation8 + $0x38] sm:$0xf]
    %v2718 = vld [vmem:[#allocation8 + $0x3c] sm:$0xf]
    %v2719 = vld [vmem:[%s15] sm:$0x1]
    %v2721 = vperm.slane %v2719, 0
    %v2725 = vunpack.c.l.b16 %v2701
    %v2726 = vunpack.c.l.b16 %v2702
    %v2727 = vrot.slane %v2726, 7
    %vm2728 = vcmask 1041409
    %v2729 = vsel %vm2728, %v2727, %v2725
    %v2730 = vpack.c.b16 %v2729, %v2729
    %v2748 = vunpack.c.l.b16 %v2703
    %v2749 = vunpack.c.l.b16 %v2704
    %v2750 = vunpack.c.l.b16 %v2705
    %v2751 = vunpack.c.l.b16 %v2706
    %v2752 = vunpack.c.l.b16 %v2707
    %v2753 = vunpack.c.l.b16 %v2708
    %v2754 = vunpack.c.l.b16 %v2709
    %v2755 = vunpack.c.l.b16 %v2710
    %v2756 = vunpack.c.l.b16 %v2711
    %v2757 = vunpack.c.l.b16 %v2712
    %v2758 = vunpack.c.l.b16 %v2713
    %v2759 = vunpack.c.l.b16 %v2714
    %v2760 = vunpack.c.l.b16 %v2715
    %v2761 = vunpack.c.l.b16 %v2716
    %v2762 = vunpack.c.l.b16 %v2717
    %v2763 = vunpack.c.l.b16 %v2718
    %v2764 = vpack.c.b16 %v2749, %v2748
    %v2765 = vpack.c.b16 %v2751, %v2750
    %v2766 = vpack.c.b16 %v2753, %v2752
    %v2767 = vpack.c.b16 %v2755, %v2754
    %v2768 = vpack.c.b16 %v2757, %v2756
    %v2769 = vpack.c.b16 %v2759, %v2758
    %v2770 = vpack.c.b16 %v2761, %v2760
    %v2771 = vpack.c.b16 %v2763, %v2762
    %2780 = vmatpush.bf16.msra.mxu0 %v2771
    %2781 = vmatpush.bf16.msra.mxu0 %v2770
    %2782 = vmatpush.bf16.msra.mxu0 %v2769
    %2783 = vmatpush.bf16.msra.mxu0 %v2768
    %2784 = vmatpush.bf16.msra.mxu0 %v2767
    %2785 = vmatpush.bf16.msra.mxu0 %v2766
    %2786 = vmatpush.bf16.msra.mxu0 %v2765
    %2787 = vmatpush.bf16.msra.mxu0 %v2764
    %2788 = vmatmul.bf16.gmra.mxu0 %v2730
    %v2789 = vpop.f32.mrf.mxu0
    %v2790 = vadd.f32 %v2721, %v2789
    %v2791 = vpop.f32.mrf.mxu0
    %2792 = vdwg.mxu0
    %vm2793 = vcmask 1041408
    %v2794 = vsel %vm2793, %v2790, -inf
    %2795 = vmax.xlane.f32.xlu0 %v2794
    %v2796 = vpop.xlane.xlu0 %2795
    %v2797 = vsub.f32 %v2790, %v2796
    %v2798 = vmul.f32 %v2797, 1.442695
    %v2799 = vpow.pop %v2798
    %v2800 = vsel %vm2793, %v2799, 0.0
    %2801 = vadd.xlane.f32.xlu0 %v2800
    %v2802 = vpop.xlane.xlu0 %2801
    %v2803 = vlog2.pop %v2802
    %v2804 = vmul.f32 %v2803, 0.6931472
    %v2805 = vsub.f32 %v2797, %v2804
    %2806 = vst [vmem:[#allocation10] sm:$0x3] %v2805
    // Predicated region
    $region82: #{transformer_forward.1} parent=1 // pred_check
      _
    $region83: #{transformer_forward.1} parent=1 // pred_check_branch
      %2808 = sbr.rel (0) target = $region85
    $region84: #{transformer_forward.1} parent=1 // pred_region
      %2810 = vsyncadd [#allocation4], 0
      %s2812 = sshll.u32 [#allocation10], 4
      %s2813 = int_to_ptr.vmem [resolvable:$true] %s2812
      %s2814 = sshll.u32 %s16, 4
      %s2815 = int_to_ptr.hbm [resolvable:$true] %s2814
      %2817 = dma.vmem_to_hbm [thread:$0]  %s2813, 32, %s2815, [#allocation4]
    $region85: #{transformer_forward.1} parent=1 // pred_fallthru
      _
    // Predicated region
    $region86: #{transformer_forward.1} parent=1 // pred_check
      _
    $region87: #{transformer_forward.1} parent=1 // pred_check_branch
      %2819 = sbr.rel (0) target = $region89
    $region88: #{transformer_forward.1} parent=1 // pred_region
      %2821 = dma.done [#allocation4], 32
    $region89: #{transformer_forward.1} parent=1 // pred_fallthru
      _
    %2822 = vsyncpa [#allocation3], 1
    %2823 = vsyncpa [#allocation6], 1
    %2824 = vsyncpa [#allocation9], 1
    %2825 = vsyncpa [#allocation4], 1

</llo_original>
